<compile_context>
chip_gen: v7x
topology: tpu7x:2x2x1
jax: 0.10.0
libtpu: 0.0.40
codegen_flags: <defaults>
</compile_context>

<pallas_src>
import functools
import math

import jax
import jax.numpy as jnp
from jax.experimental import pallas as pl
from jax.experimental.pallas import tpu as pltpu


# -----------------------------------------------------------------------------
# Fused kernel: one grid step == B_tile images (NHWC, channels on lanes).
# -----------------------------------------------------------------------------
def _res_bottleneck_kernel(*refs, stride, has_proj, fuse_proj, w_b):
    if has_proj and not fuse_proj:
        (x_ref, wa_ref, ba_ref, wdw_ref, bb_ref,
         wc_ref, bc_ref, wp_ref, bp_ref, o_ref, xa_pad_ref) = refs
    else:
        (x_ref, wa_ref, ba_ref, wdw_ref, bb_ref,
         wc_ref, bc_ref, o_ref, xa_pad_ref) = refs

    B, H, W, Cin = x_ref.shape
    _, Ho, Wo, Wout = o_ref.shape
    Wb = w_b
    M = B * H * W

    # ---- a (1x1 conv, optionally fused with the projection conv): MXU matmul,
    #      bf16 operands, f32 accumulation, folded-BN bias, ReLU on the a half.
    x2d = x_ref[...].reshape(M, Cin).astype(jnp.bfloat16)
    ya = jnp.dot(x2d, wa_ref[...], preferred_element_type=jnp.float32) + ba_ref[...]
    if fuse_proj:
        xa = jnp.maximum(ya[:, :Wb], 0.0)        # a branch: BN + ReLU
        skip = ya[:, Wb:]                        # projection skip: BN, no ReLU
    else:
        xa = jnp.maximum(ya, 0.0)                # (M, Wb)

    # ---- stage xa into a zero-halo VMEM scratch.  Interior lives at rows 1..H,
    #      cols 8..W+7 (column offset 8 keeps the store sublane-aligned); tap
    #      (kh, kw) for output (ho, wo) sits at row kh+stride*ho, col 7+kw+stride*wo.
    xa_pad_ref[:, 1:H + 1, 8:W + 8, :] = xa.reshape(B, H, W, Wb)
    # Zero only the halo cells the 9 taps can actually read (rows 0 and H+1,
    # plus column strips 7 and W+8) -- NOT the whole scratch, and every
    # iteration (megacore-safe).
    Wp = W + 16
    zrow = jnp.zeros((B, 1, Wp, Wb), jnp.float32)
    xa_pad_ref[:, 0:1, :, :] = zrow
    xa_pad_ref[:, H + 1:H + 2, :, :] = zrow
    zcol = jnp.zeros((B, H, 1, Wb), jnp.float32)
    xa_pad_ref[:, 1:H + 1, 7:8, :] = zcol
    xa_pad_ref[:, 1:H + 1, W + 8:W + 9, :] = zcol

    # ---- b: depthwise 3x3 (groups == Wb, i.e. gw == 1) + folded BN + ReLU (VPU, f32)
    acc = None
    for kh in range(3):
        for kw in range(3):
            col0 = 7 + kw
            if stride == 1:
                tap = xa_pad_ref[:, kh:kh + Ho, col0:col0 + Wo, :]
            else:
                tap = xa_pad_ref[:, pl.ds(kh, Ho, stride),
                                 pl.ds(col0, Wo, stride), :]
            contrib = tap * wdw_ref[3 * kh + kw, :]
            acc = contrib if acc is None else acc + contrib
    xb = jnp.maximum(acc + bb_ref[...], 0.0)         # (B, Ho, Wo, Wb)

    # ---- c: 1x1 conv + folded BN (no ReLU before the residual add)
    xc = jnp.dot(xb.reshape(B * Ho * Wo, Wb).astype(jnp.bfloat16), wc_ref[...],
                 preferred_element_type=jnp.float32) + bc_ref[...]

    # ---- skip path (when not already produced by the fused matmul)
    if not fuse_proj:
        if has_proj:                                 # projection with stride > 1
            xs = x_ref[:, pl.ds(0, Ho, stride), pl.ds(0, Wo, stride), :]
            xs = xs.reshape(B * Ho * Wo, Cin).astype(jnp.bfloat16)
            skip = jnp.dot(xs, wp_ref[...],
                           preferred_element_type=jnp.float32) + bp_ref[...]
        else:                                        # identity skip: reload at use
            skip = x_ref[...].astype(jnp.float32).reshape(B * Ho * Wo, Cin)

    out = jnp.maximum(xc + skip, 0.0)                # residual add + final ReLU
    o_ref[...] = out.reshape(B, Ho, Wo, Wout).astype(o_ref.dtype)


# -----------------------------------------------------------------------------
# Wrappers.  BN is folded into the conv weights (free); NCHW interface matches
# the PyTorch module, NHWC variant avoids the layout transposes if the caller
# already has NHWC data.
# -----------------------------------------------------------------------------
def _fold_bn(gamma, beta, mean, var, eps):
    scale = gamma / jnp.sqrt(var + eps)
    shift = beta - mean * scale
    return scale, shift


def _pick_b_tile(n, cap=8):
    """Largest batch tile dividing N that keeps >= 2 grid steps (v7x: 2 TCs)."""
    cands = [d for d in range(1, min(n, cap) + 1) if n % d == 0 and n // d >= 2]
    return max(cands) if cands else n


def res_bottleneck_forward_nhwc(x, params, *, stride=1, eps=1e-5, b_tile=None):
    """x: (N, H, W, w_in) NHWC; params: PyTorch-layout conv weights + BN stats."""
    N, H, W, Cin = x.shape
    a_w, b_w, c_w = params["a_w"], params["b_w"], params["c_w"]
    Wb, Wout = a_w.shape[0], c_w.shape[0]
    assert b_w.shape == (Wb, 1, 3, 3), "only gw=1 (depthwise) 3x3 supported"
    has_proj = (Cin != Wout) or (stride != 1)
    fuse_proj = has_proj and (stride == 1)
    Ho = (H - 1) // stride + 1
    Wo = (W - 1) // stride + 1
    if b_tile is None:
        b_tile = _pick_b_tile(N)
    assert N % b_tile == 0

    # Fold inference-mode BN into weights / biases.
    sa, ba = _fold_bn(params["a_gamma"], params["a_beta"],
                      params["a_mean"], params["a_var"], eps)
    wa = jnp.transpose(a_w[:, :, 0, 0]) * sa                          # (Cin, Wb)
    sb, bb = _fold_bn(params["b_gamma"], params["b_beta"],
                      params["b_mean"], params["b_var"], eps)
    wdw = jnp.transpose(b_w[:, 0], (1, 2, 0)).reshape(9, Wb) * sb     # (9, Wb) f32
    sc, bc = _fold_bn(params["c_gamma"], params["c_beta"],
                      params["c_mean"], params["c_var"], eps)
    wc = (jnp.transpose(c_w[:, :, 0, 0]) * sc).astype(jnp.bfloat16)   # (Wb, Wout)
    if has_proj:
        sp, bp = _fold_bn(params["p_gamma"], params["p_beta"],
                          params["p_mean"], params["p_var"], eps)
        wp = jnp.transpose(params["p_w"][:, :, 0, 0]) * sp            # (Cin, Wout)

    if fuse_proj:
        # Fuse a-conv and projection conv into one MXU matmul (N = Wb + Wout).
        w_ap = jnp.concatenate([wa, wp], axis=1).astype(jnp.bfloat16)
        b_ap = jnp.concatenate([ba, bp]).reshape(1, Wb + Wout)
        na = Wb + Wout
        args = [x, w_ap, b_ap, wdw, bb.reshape(1, Wb), wc, bc.reshape(1, Wout)]
    else:
        na = Wb
        args = [x, wa.astype(jnp.bfloat16), ba.reshape(1, Wb), wdw,
                bb.reshape(1, Wb), wc, bc.reshape(1, Wout)]

    in_specs = [
        pl.BlockSpec((b_tile, H, W, Cin), lambda n: (n, 0, 0, 0)),
        pl.BlockSpec((Cin, na), lambda n: (0, 0)),
        pl.BlockSpec((1, na), lambda n: (0, 0)),
        pl.BlockSpec((9, Wb), lambda n: (0, 0)),
        pl.BlockSpec((1, Wb), lambda n: (0, 0)),
        pl.BlockSpec((Wb, Wout), lambda n: (0, 0)),
        pl.BlockSpec((1, Wout), lambda n: (0, 0)),
    ]
    if has_proj and not fuse_proj:
        args += [wp.astype(jnp.bfloat16), bp.reshape(1, Wout)]
        in_specs += [pl.BlockSpec((Cin, Wout), lambda n: (0, 0)),
                     pl.BlockSpec((1, Wout), lambda n: (0, 0))]

    kernel = functools.partial(_res_bottleneck_kernel, stride=stride,
                               has_proj=has_proj, fuse_proj=fuse_proj, w_b=Wb)
    grid_spec = pltpu.PrefetchScalarGridSpec(
        num_scalar_prefetch=0,
        grid=(N // b_tile,),
        in_specs=in_specs,
        out_specs=pl.BlockSpec((b_tile, Ho, Wo, Wout), lambda n: (n, 0, 0, 0)),
        scratch_shapes=[pltpu.VMEM((b_tile, H + 2, W + 16, Wb), jnp.float32)],
    )
    return pl.pallas_call(
        kernel,
        out_shape=jax.ShapeDtypeStruct((N, Ho, Wo, Wout), x.dtype),
        grid_spec=grid_spec,
        compiler_params=pltpu.CompilerParams(
            dimension_semantics=("parallel",)),
    )(*args)


def res_bottleneck_forward(x_nchw, params, *, stride=1, eps=1e-5, b_tile=None):
    # TODO(synk): if the surrounding model can stay NHWC, drop these two full
    # HBM transpose passes (use res_bottleneck_forward_nhwc directly).
    x = jnp.transpose(x_nchw, (0, 2, 3, 1))          # NCHW -> NHWC (C on lanes)
    out = res_bottleneck_forward_nhwc(x, params, stride=stride, eps=eps,
                                      b_tile=b_tile)
    return jnp.transpose(out, (0, 3, 1, 2))          # back to NCHW


# -----------------------------------------------------------------------------
# Pure-JAX (XLA) f32 reference with identical inference-mode math, NCHW.
# -----------------------------------------------------------------------------
def res_bottleneck_reference(x_nchw, params, *, stride=1, eps=1e-5):
    P = jax.lax.Precision.HIGHEST

    def bn(y, pfx):
        scale = params[pfx + "_gamma"] / jnp.sqrt(params[pfx + "_var"] + eps)
        shift = params[pfx + "_beta"] - params[pfx + "_mean"] * scale
        return y * scale[None, :, None, None] + shift[None, :, None, None]

    def conv(y, w, s, pad, groups=1):
        return jax.lax.conv_general_dilated(
            y, w, (s, s), pad, dimension_numbers=("NCHW", "OIHW", "NCHW"),
            feature_group_count=groups, precision=P)

    a = jax.nn.relu(bn(conv(x_nchw, params["a_w"], 1, "VALID"), "a"))
    wb = params["b_w"].shape[0]
    b = jax.nn.relu(bn(conv(a, params["b_w"], stride, ((1, 1), (1, 1)),
                            groups=wb), "b"))
    c = bn(conv(b, params["c_w"], 1, "VALID"), "c")
    if (x_nchw.shape[1] != params["c_w"].shape[0]) or (stride != 1):
        skip = bn(conv(x_nchw, params["p_w"], stride, "VALID"), "p")
    else:
        skip = x_nchw
    return jax.nn.relu(skip + c)


# -----------------------------------------------------------------------------
# Deterministic parameter construction (PyTorch layouts, eval-mode BN stats).
# -----------------------------------------------------------------------------
def _bn_init(key, c):
    k1, k2, k3, k4 = jax.random.split(key, 4)
    return {"gamma": jax.random.uniform(k1, (c,), minval=0.5, maxval=1.5,
                                        dtype=jnp.float32),
            "beta": jax.random.uniform(k2, (c,), minval=-0.2, maxval=0.2,
                                       dtype=jnp.float32),
            "mean": 0.1 * jax.random.normal(k3, (c,), dtype=jnp.float32),
            "var": jax.random.uniform(k4, (c,), minval=0.5, maxval=1.5,
                                      dtype=jnp.float32)}


def init_params(key, w_in, w_out, *, stride=1, bm=1.0, gw=1):
    assert gw == 1, "demo builds gw=1 (depthwise) blocks only"
    w_b = int(round(w_out * bm))
    ks = jax.random.split(key, 8)

    def conv_w(k, co, ci, kh, kw):
        bound = 1.0 / math.sqrt(ci * kh * kw)
        return jax.random.uniform(k, (co, ci, kh, kw), minval=-bound,
                                  maxval=bound, dtype=jnp.float32)

    p = {"a_w": conv_w(ks[0], w_b, w_in, 1, 1),
         "b_w": conv_w(ks[2], w_b, 1, 3, 3),
         "c_w": conv_w(ks[4], w_out, w_b, 1, 1)}
    p.update({f"a_{k}": v for k, v in _bn_init(ks[1], w_b).items()})
    p.update({f"b_{k}": v for k, v in _bn_init(ks[3], w_b).items()})
    p.update({f"c_{k}": v for k, v in _bn_init(ks[5], w_out).items()})
    if (w_in != w_out) or (stride != 1):
        p["p_w"] = conv_w(ks[6], w_out, w_in, 1, 1)
        p.update({f"p_{k}": v for k, v in _bn_init(ks[7], w_out).items()})
    return p


if __name__ == "__main__":
    N, H, W = 4, 16, 16                              # N=4 -> B_tile=2, grid=(2,)
    k_p1, k_x1, k_p2, k_x2 = jax.random.split(jax.random.PRNGKey(0), 4)
    # bf16 MXU operands (f32 accumulation) -> bf16-level tolerance vs f32 reference.
    TOL = 5e-2

    # Config 1: projection block (w_in != w_out, stride 1) -> fused a+proj matmul.
    w_in, w_out = 64, 128
    params1 = init_params(k_p1, w_in, w_out, stride=1)
    x1 = jax.random.normal(k_x1, (N, w_in, H, W), dtype=jnp.float32)
    out1 = jax.block_until_ready(res_bottleneck_forward(x1, params1, stride=1))
    ref1 = res_bottleneck_reference(x1, params1, stride=1)
    assert out1.shape == (N, w_out, H, W)
    err1 = float(jnp.max(jnp.abs(out1 - ref1)))
    assert jnp.allclose(out1, ref1, atol=TOL, rtol=TOL), f"proj block err={err1}"

    # Config 2: identity-skip block (w_in == w_out, stride 1) -> skip = x (f32).
    w_in2 = w_out2 = 128
    params2 = init_params(k_p2, w_in2, w_out2, stride=1)
    x2 = jax.random.normal(k_x2, (N, w_in2, H, W), dtype=jnp.float32)
    out2 = jax.block_until_ready(res_bottleneck_forward(x2, params2, stride=1))
    ref2 = res_bottleneck_reference(x2, params2, stride=1)
    assert out2.shape == (N, w_out2, H, W)
    err2 = float(jnp.max(jnp.abs(out2 - ref2)))
    assert jnp.allclose(out2, ref2, atol=TOL, rtol=TOL), f"identity block err={err2}"

    print("KERNEL_OK")
</pallas_src>

<mosaic_0001>
module attributes {stable_mosaic.version = 11 : i64} {
  func.func @_res_bottleneck_kernel(%arg0: i32, %arg1: memref<2x16x16x64xf32, #tpu.memory_space<vmem>>, %arg2: memref<64x256xbf16, #tpu.memory_space<vmem>>, %arg3: memref<1x256xf32, #tpu.memory_space<vmem>>, %arg4: memref<9x128xf32, #tpu.memory_space<vmem>>, %arg5: memref<1x128xf32, #tpu.memory_space<vmem>>, %arg6: memref<128x128xbf16, #tpu.memory_space<vmem>>, %arg7: memref<1x128xf32, #tpu.memory_space<vmem>>, %arg8: memref<2x16x16x128xf32, #tpu.memory_space<vmem>>, %arg9: memref<2x18x32x128xf32, #tpu.memory_space<vmem>>) attributes {dimension_semantics = [#tpu.dimension_semantics<parallel>], iteration_bounds = array<i64: 2>, scalar_prefetch = 0 : i64, scratch_operands = 1 : i64, tpu.core_type = #tpu.core_type<tc>, window_params = [{transform_indices = @transform_0, window_bounds = array<i64: 2, 16, 16, 64>}, {pipeline_mode = #tpu.pipeline_mode<synchronous>, transform_indices = @transform_1, window_bounds = array<i64: 64, 256>}, {pipeline_mode = #tpu.pipeline_mode<synchronous>, transform_indices = @transform_2, window_bounds = array<i64: 1, 256>}, {pipeline_mode = #tpu.pipeline_mode<synchronous>, transform_indices = @transform_3, window_bounds = array<i64: 9, 128>}, {pipeline_mode = #tpu.pipeline_mode<synchronous>, transform_indices = @transform_4, window_bounds = array<i64: 1, 128>}, {pipeline_mode = #tpu.pipeline_mode<synchronous>, transform_indices = @transform_5, window_bounds = array<i64: 128, 128>}, {pipeline_mode = #tpu.pipeline_mode<synchronous>, transform_indices = @transform_6, window_bounds = array<i64: 1, 128>}, {transform_indices = @transform_7, window_bounds = array<i64: 2, 16, 16, 128>}]} {
    %c0 = arith.constant 0 : index
    %c0_0 = arith.constant 0 : index
    %c0_1 = arith.constant 0 : index
    %c0_2 = arith.constant 0 : index
    %0 = vector.load %arg1[%c0, %c0_0, %c0_1, %c0_2] : memref<2x16x16x64xf32, #tpu.memory_space<vmem>>, vector<2x16x16x64xf32>
    %1 = vector.shape_cast %0 : vector<2x16x16x64xf32> to vector<512x64xf32>
    %2 = arith.truncf %1 : vector<512x64xf32> to vector<512x64xbf16>
    %c0_3 = arith.constant 0 : index
    %c0_4 = arith.constant 0 : index
    %3 = vector.load %arg2[%c0_3, %c0_4] : memref<64x256xbf16, #tpu.memory_space<vmem>>, vector<64x256xbf16>
    %cst = arith.constant dense<0.000000e+00> : vector<512x256xf32>
    %4 = tpu.matmul %2, %3, %cst {dimension_numbers = #tpu.dot_dimension_numbers<[1], [0], [0], [1], [0, 0, 1, 1], [], []>} : vector<512x64xbf16>, vector<64x256xbf16>, vector<512x256xf32> -> vector<512x256xf32>
    %c0_5 = arith.constant 0 : index
    %c0_6 = arith.constant 0 : index
    %5 = vector.load %arg3[%c0_5, %c0_6] : memref<1x256xf32, #tpu.memory_space<vmem>>, vector<1x256xf32>
    %6 = vector.broadcast %5 : vector<1x256xf32> to vector<512x256xf32>
    %7 = arith.addf %4, %6 : vector<512x256xf32>
    %8 = vector.extract_strided_slice %7 {offsets = [0, 0], sizes = [512, 128], strides = [1, 1]} : vector<512x256xf32> to vector<512x128xf32>
    %cst_7 = arith.constant 0.000000e+00 : f32
    %9 = vector.broadcast %cst_7 : f32 to vector<512x128xf32>
    %10 = arith.maximumf %8, %9 : vector<512x128xf32>
    %11 = vector.extract_strided_slice %7 {offsets = [0, 128], sizes = [512, 128], strides = [1, 1]} : vector<512x256xf32> to vector<512x128xf32>
    %12 = vector.shape_cast %10 : vector<512x128xf32> to vector<2x16x16x128xf32>
    %c0_8 = arith.constant 0 : index
    %c1 = arith.constant 1 : index
    %c8 = arith.constant 8 : index
    %c0_9 = arith.constant 0 : index
    %13 = vector.load %arg9[%c0_8, %c1, %c8, %c0_9] : memref<2x18x32x128xf32, #tpu.memory_space<vmem>>, vector<2x16x16x128xf32>
    tpu.vector_store %arg9[%c0_8, %c1, %c8, %c0_9], %12 {strides = array<i32>} : memref<2x18x32x128xf32, #tpu.memory_space<vmem>>, vector<2x16x16x128xf32>,
    %cst_10 = arith.constant 0.000000e+00 : f32
    %14 = vector.broadcast %cst_10 : f32 to vector<2x1x32x128xf32>
    %c0_11 = arith.constant 0 : index
    %c0_12 = arith.constant 0 : index
    %c0_13 = arith.constant 0 : index
    %c0_14 = arith.constant 0 : index
    %15 = vector.load %arg9[%c0_11, %c0_12, %c0_13, %c0_14] : memref<2x18x32x128xf32, #tpu.memory_space<vmem>>, vector<2x1x32x128xf32>
    tpu.vector_store %arg9[%c0_11, %c0_12, %c0_13, %c0_14], %14 {strides = array<i32>} : memref<2x18x32x128xf32, #tpu.memory_space<vmem>>, vector<2x1x32x128xf32>,
    %c0_15 = arith.constant 0 : index
    %c17 = arith.constant 17 : index
    %c0_16 = arith.constant 0 : index
    %c0_17 = arith.constant 0 : index
    %16 = vector.load %arg9[%c0_15, %c17, %c0_16, %c0_17] : memref<2x18x32x128xf32, #tpu.memory_space<vmem>>, vector<2x1x32x128xf32>
    tpu.vector_store %arg9[%c0_15, %c17, %c0_16, %c0_17], %14 {strides = array<i32>} : memref<2x18x32x128xf32, #tpu.memory_space<vmem>>, vector<2x1x32x128xf32>,
    %cst_18 = arith.constant 0.000000e+00 : f32
    %17 = vector.broadcast %cst_18 : f32 to vector<2x16x1x128xf32>
    %c0_19 = arith.constant 0 : index
    %c1_20 = arith.constant 1 : index
    %c7 = arith.constant 7 : index
    %c0_21 = arith.constant 0 : index
    %18 = vector.load %arg9[%c0_19, %c1_20, %c7, %c0_21] : memref<2x18x32x128xf32, #tpu.memory_space<vmem>>, vector<2x16x1x128xf32>
    tpu.vector_store %arg9[%c0_19, %c1_20, %c7, %c0_21], %17 {strides = array<i32>} : memref<2x18x32x128xf32, #tpu.memory_space<vmem>>, vector<2x16x1x128xf32>,
    %c0_22 = arith.constant 0 : index
    %c1_23 = arith.constant 1 : index
    %c24 = arith.constant 24 : index
    %c0_24 = arith.constant 0 : index
    %19 = vector.load %arg9[%c0_22, %c1_23, %c24, %c0_24] : memref<2x18x32x128xf32, #tpu.memory_space<vmem>>, vector<2x16x1x128xf32>
    tpu.vector_store %arg9[%c0_22, %c1_23, %c24, %c0_24], %17 {strides = array<i32>} : memref<2x18x32x128xf32, #tpu.memory_space<vmem>>, vector<2x16x1x128xf32>,
    %c0_25 = arith.constant 0 : index
    %c0_26 = arith.constant 0 : index
    %c7_27 = arith.constant 7 : index
    %c0_28 = arith.constant 0 : index
    %20 = vector.load %arg9[%c0_25, %c0_26, %c7_27, %c0_28] : memref<2x18x32x128xf32, #tpu.memory_space<vmem>>, vector<2x16x16x128xf32>
    %c0_29 = arith.constant 0 : index
    %c0_30 = arith.constant 0 : index
    %21 = vector.load %arg4[%c0_29, %c0_30] : memref<9x128xf32, #tpu.memory_space<vmem>>, vector<1x128xf32>
    %22 = vector.shape_cast %21 : vector<1x128xf32> to vector<128xf32>
    %23 = vector.shape_cast %22 : vector<128xf32> to vector<1x1x1x128xf32>
    %24 = vector.broadcast %23 : vector<1x1x1x128xf32> to vector<2x16x16x128xf32>
    %25 = arith.mulf %20, %24 : vector<2x16x16x128xf32>
    %c0_31 = arith.constant 0 : index
    %c0_32 = arith.constant 0 : index
    %c8_33 = arith.constant 8 : index
    %c0_34 = arith.constant 0 : index
    %26 = vector.load %arg9[%c0_31, %c0_32, %c8_33, %c0_34] : memref<2x18x32x128xf32, #tpu.memory_space<vmem>>, vector<2x16x16x128xf32>
    %c1_35 = arith.constant 1 : index
    %c0_36 = arith.constant 0 : index
    %27 = vector.load %arg4[%c1_35, %c0_36] : memref<9x128xf32, #tpu.memory_space<vmem>>, vector<1x128xf32>
    %28 = vector.shape_cast %27 : vector<1x128xf32> to vector<128xf32>
    %29 = vector.shape_cast %28 : vector<128xf32> to vector<1x1x1x128xf32>
    %30 = vector.broadcast %29 : vector<1x1x1x128xf32> to vector<2x16x16x128xf32>
    %31 = arith.mulf %26, %30 : vector<2x16x16x128xf32>
    %32 = arith.addf %25, %31 : vector<2x16x16x128xf32>
    %c0_37 = arith.constant 0 : index
    %c0_38 = arith.constant 0 : index
    %c9 = arith.constant 9 : index
    %c0_39 = arith.constant 0 : index
    %33 = vector.load %arg9[%c0_37, %c0_38, %c9, %c0_39] : memref<2x18x32x128xf32, #tpu.memory_space<vmem>>, vector<2x16x16x128xf32>
    %c2 = arith.constant 2 : index
    %c0_40 = arith.constant 0 : index
    %34 = vector.load %arg4[%c2, %c0_40] : memref<9x128xf32, #tpu.memory_space<vmem>>, vector<1x128xf32>
    %35 = vector.shape_cast %34 : vector<1x128xf32> to vector<128xf32>
    %36 = vector.shape_cast %35 : vector<128xf32> to vector<1x1x1x128xf32>
    %37 = vector.broadcast %36 : vector<1x1x1x128xf32> to vector<2x16x16x128xf32>
    %38 = arith.mulf %33, %37 : vector<2x16x16x128xf32>
    %39 = arith.addf %32, %38 : vector<2x16x16x128xf32>
    %c0_41 = arith.constant 0 : index
    %c1_42 = arith.constant 1 : index
    %c7_43 = arith.constant 7 : index
    %c0_44 = arith.constant 0 : index
    %40 = vector.load %arg9[%c0_41, %c1_42, %c7_43, %c0_44] : memref<2x18x32x128xf32, #tpu.memory_space<vmem>>, vector<2x16x16x128xf32>
    %c3 = arith.constant 3 : index
    %c0_45 = arith.constant 0 : index
    %41 = vector.load %arg4[%c3, %c0_45] : memref<9x128xf32, #tpu.memory_space<vmem>>, vector<1x128xf32>
    %42 = vector.shape_cast %41 : vector<1x128xf32> to vector<128xf32>
    %43 = vector.shape_cast %42 : vector<128xf32> to vector<1x1x1x128xf32>
    %44 = vector.broadcast %43 : vector<1x1x1x128xf32> to vector<2x16x16x128xf32>
    %45 = arith.mulf %40, %44 : vector<2x16x16x128xf32>
    %46 = arith.addf %39, %45 : vector<2x16x16x128xf32>
    %c0_46 = arith.constant 0 : index
    %c1_47 = arith.constant 1 : index
    %c8_48 = arith.constant 8 : index
    %c0_49 = arith.constant 0 : index
    %47 = vector.load %arg9[%c0_46, %c1_47, %c8_48, %c0_49] : memref<2x18x32x128xf32, #tpu.memory_space<vmem>>, vector<2x16x16x128xf32>
    %c4 = arith.constant 4 : index
    %c0_50 = arith.constant 0 : index
    %48 = vector.load %arg4[%c4, %c0_50] : memref<9x128xf32, #tpu.memory_space<vmem>>, vector<1x128xf32>
    %49 = vector.shape_cast %48 : vector<1x128xf32> to vector<128xf32>
    %50 = vector.shape_cast %49 : vector<128xf32> to vector<1x1x1x128xf32>
    %51 = vector.broadcast %50 : vector<1x1x1x128xf32> to vector<2x16x16x128xf32>
    %52 = arith.mulf %47, %51 : vector<2x16x16x128xf32>
    %53 = arith.addf %46, %52 : vector<2x16x16x128xf32>
    %c0_51 = arith.constant 0 : index
    %c1_52 = arith.constant 1 : index
    %c9_53 = arith.constant 9 : index
    %c0_54 = arith.constant 0 : index
    %54 = vector.load %arg9[%c0_51, %c1_52, %c9_53, %c0_54] : memref<2x18x32x128xf32, #tpu.memory_space<vmem>>, vector<2x16x16x128xf32>
    %c5 = arith.constant 5 : index
    %c0_55 = arith.constant 0 : index
    %55 = vector.load %arg4[%c5, %c0_55] : memref<9x128xf32, #tpu.memory_space<vmem>>, vector<1x128xf32>
    %56 = vector.shape_cast %55 : vector<1x128xf32> to vector<128xf32>
    %57 = vector.shape_cast %56 : vector<128xf32> to vector<1x1x1x128xf32>
    %58 = vector.broadcast %57 : vector<1x1x1x128xf32> to vector<2x16x16x128xf32>
    %59 = arith.mulf %54, %58 : vector<2x16x16x128xf32>
    %60 = arith.addf %53, %59 : vector<2x16x16x128xf32>
    %c0_56 = arith.constant 0 : index
    %c2_57 = arith.constant 2 : index
    %c7_58 = arith.constant 7 : index
    %c0_59 = arith.constant 0 : index
    %61 = vector.load %arg9[%c0_56, %c2_57, %c7_58, %c0_59] : memref<2x18x32x128xf32, #tpu.memory_space<vmem>>, vector<2x16x16x128xf32>
    %c6 = arith.constant 6 : index
    %c0_60 = arith.constant 0 : index
    %62 = vector.load %arg4[%c6, %c0_60] : memref<9x128xf32, #tpu.memory_space<vmem>>, vector<1x128xf32>
    %63 = vector.shape_cast %62 : vector<1x128xf32> to vector<128xf32>
    %64 = vector.shape_cast %63 : vector<128xf32> to vector<1x1x1x128xf32>
    %65 = vector.broadcast %64 : vector<1x1x1x128xf32> to vector<2x16x16x128xf32>
    %66 = arith.mulf %61, %65 : vector<2x16x16x128xf32>
    %67 = arith.addf %60, %66 : vector<2x16x16x128xf32>
    %c0_61 = arith.constant 0 : index
    %c2_62 = arith.constant 2 : index
    %c8_63 = arith.constant 8 : index
    %c0_64 = arith.constant 0 : index
    %68 = vector.load %arg9[%c0_61, %c2_62, %c8_63, %c0_64] : memref<2x18x32x128xf32, #tpu.memory_space<vmem>>, vector<2x16x16x128xf32>
    %c7_65 = arith.constant 7 : index
    %c0_66 = arith.constant 0 : index
    %69 = vector.load %arg4[%c7_65, %c0_66] : memref<9x128xf32, #tpu.memory_space<vmem>>, vector<1x128xf32>
    %70 = vector.shape_cast %69 : vector<1x128xf32> to vector<128xf32>
    %71 = vector.shape_cast %70 : vector<128xf32> to vector<1x1x1x128xf32>
    %72 = vector.broadcast %71 : vector<1x1x1x128xf32> to vector<2x16x16x128xf32>
    %73 = arith.mulf %68, %72 : vector<2x16x16x128xf32>
    %74 = arith.addf %67, %73 : vector<2x16x16x128xf32>
    %c0_67 = arith.constant 0 : index
    %c2_68 = arith.constant 2 : index
    %c9_69 = arith.constant 9 : index
    %c0_70 = arith.constant 0 : index
    %75 = vector.load %arg9[%c0_67, %c2_68, %c9_69, %c0_70] : memref<2x18x32x128xf32, #tpu.memory_space<vmem>>, vector<2x16x16x128xf32>
    %c8_71 = arith.constant 8 : index
    %c0_72 = arith.constant 0 : index
    %76 = vector.load %arg4[%c8_71, %c0_72] : memref<9x128xf32, #tpu.memory_space<vmem>>, vector<1x128xf32>
    %77 = vector.shape_cast %76 : vector<1x128xf32> to vector<128xf32>
    %78 = vector.shape_cast %77 : vector<128xf32> to vector<1x1x1x128xf32>
    %79 = vector.broadcast %78 : vector<1x1x1x128xf32> to vector<2x16x16x128xf32>
    %80 = arith.mulf %75, %79 : vector<2x16x16x128xf32>
    %81 = arith.addf %74, %80 : vector<2x16x16x128xf32>
    %c0_73 = arith.constant 0 : index
    %c0_74 = arith.constant 0 : index
    %82 = vector.load %arg5[%c0_73, %c0_74] : memref<1x128xf32, #tpu.memory_space<vmem>>, vector<1x128xf32>
    %83 = vector.shape_cast %82 : vector<1x128xf32> to vector<1x1x1x128xf32>
    %84 = vector.broadcast %83 : vector<1x1x1x128xf32> to vector<2x16x16x128xf32>
    %85 = arith.addf %81, %84 : vector<2x16x16x128xf32>
    %cst_75 = arith.constant 0.000000e+00 : f32
    %86 = vector.broadcast %cst_75 : f32 to vector<2x16x16x128xf32>
    %87 = arith.maximumf %85, %86 : vector<2x16x16x128xf32>
    %88 = vector.shape_cast %87 : vector<2x16x16x128xf32> to vector<512x128xf32>
    %89 = arith.truncf %88 : vector<512x128xf32> to vector<512x128xbf16>
    %c0_76 = arith.constant 0 : index
    %c0_77 = arith.constant 0 : index
    %90 = vector.load %arg6[%c0_76, %c0_77] : memref<128x128xbf16, #tpu.memory_space<vmem>>, vector<128x128xbf16>
    %cst_78 = arith.constant dense<0.000000e+00> : vector<512x128xf32>
    %91 = tpu.matmul %89, %90, %cst_78 {dimension_numbers = #tpu.dot_dimension_numbers<[1], [0], [0], [1], [0, 0, 1, 1], [], []>} : vector<512x128xbf16>, vector<128x128xbf16>, vector<512x128xf32> -> vector<512x128xf32>
    %c0_79 = arith.constant 0 : index
    %c0_80 = arith.constant 0 : index
    %92 = vector.load %arg7[%c0_79, %c0_80] : memref<1x128xf32, #tpu.memory_space<vmem>>, vector<1x128xf32>
    %93 = vector.broadcast %92 : vector<1x128xf32> to vector<512x128xf32>
    %94 = arith.addf %91, %93 : vector<512x128xf32>
    %95 = arith.addf %94, %11 : vector<512x128xf32>
    %cst_81 = arith.constant 0.000000e+00 : f32
    %96 = vector.broadcast %cst_81 : f32 to vector<512x128xf32>
    %97 = arith.maximumf %95, %96 : vector<512x128xf32>
    %98 = vector.shape_cast %97 : vector<512x128xf32> to vector<2x16x16x128xf32>
    %c0_82 = arith.constant 0 : index
    %c0_83 = arith.constant 0 : index
    %c0_84 = arith.constant 0 : index
    %c0_85 = arith.constant 0 : index
    %99 = vector.load %arg8[%c0_82, %c0_83, %c0_84, %c0_85] : memref<2x16x16x128xf32, #tpu.memory_space<vmem>>, vector<2x16x16x128xf32>
    tpu.vector_store %arg8[%c0_82, %c0_83, %c0_84, %c0_85], %98 {strides = array<i32>} : memref<2x16x16x128xf32, #tpu.memory_space<vmem>>, vector<2x16x16x128xf32>,
    return
  }
  func.func @transform_0(%arg0: i32) -> (i32, i32, i32, i32) {
    %c0_i32 = arith.constant 0 : i32
    %c0_i32_0 = arith.constant 0 : i32
    %c0_i32_1 = arith.constant 0 : i32
    %c0_i32_2 = arith.constant 0 : i32
    return %arg0, %c0_i32, %c0_i32_0, %c0_i32_1 : i32, i32, i32, i32
  }
  func.func @transform_1(%arg0: i32) -> (i32, i32) {
    %c0_i32 = arith.constant 0 : i32
    %c0_i32_0 = arith.constant 0 : i32
    %c0_i32_1 = arith.constant 0 : i32
    return %c0_i32, %c0_i32_0 : i32, i32
  }
  func.func @transform_2(%arg0: i32) -> (i32, i32) {
    %c0_i32 = arith.constant 0 : i32
    %c0_i32_0 = arith.constant 0 : i32
    %c0_i32_1 = arith.constant 0 : i32
    return %c0_i32, %c0_i32_0 : i32, i32
  }
  func.func @transform_3(%arg0: i32) -> (i32, i32) {
    %c0_i32 = arith.constant 0 : i32
    %c0_i32_0 = arith.constant 0 : i32
    %c0_i32_1 = arith.constant 0 : i32
    return %c0_i32, %c0_i32_0 : i32, i32
  }
  func.func @transform_4(%arg0: i32) -> (i32, i32) {
    %c0_i32 = arith.constant 0 : i32
    %c0_i32_0 = arith.constant 0 : i32
    %c0_i32_1 = arith.constant 0 : i32
    return %c0_i32, %c0_i32_0 : i32, i32
  }
  func.func @transform_5(%arg0: i32) -> (i32, i32) {
    %c0_i32 = arith.constant 0 : i32
    %c0_i32_0 = arith.constant 0 : i32
    %c0_i32_1 = arith.constant 0 : i32
    return %c0_i32, %c0_i32_0 : i32, i32
  }
  func.func @transform_6(%arg0: i32) -> (i32, i32) {
    %c0_i32 = arith.constant 0 : i32
    %c0_i32_0 = arith.constant 0 : i32
    %c0_i32_1 = arith.constant 0 : i32
    return %c0_i32, %c0_i32_0 : i32, i32
  }
  func.func @transform_7(%arg0: i32) -> (i32, i32, i32, i32) {
    %c0_i32 = arith.constant 0 : i32
    %c0_i32_0 = arith.constant 0 : i32
    %c0_i32_1 = arith.constant 0 : i32
    %c0_i32_2 = arith.constant 0 : i32
    return %arg0, %c0_i32, %c0_i32_0, %c0_i32_1 : i32, i32, i32, i32
  }
}

</mosaic_0001>

<llo_original>
// kernel: tpu_custom_call.1
$region0: #{tpu_custom_call.1}
  #allocation0 [shape = 'u32[]', space=smem, size = 0x4, offset = 0x4, fixed_abs, tag = 'smem constant byte address 0x4 - core index']
  #allocation1 [shape = 'u32[144,128]{1,0:T(1,128)}', space=vmem, size = 0x12000, scoped, tag = 'internal scratch']
  #allocation2 [shape = 'f32[2,18,32,128]{3,2,1,0:T(8,128)}', space=vmem, size = 0x90000, scoped, tag = 'scratch operand']
  %s0 = inlined_call_operand.hbm [shape: f32[4,16,16,64], index: 0, kind: input, shape index: {}]
  %s1 = inlined_call_operand.hbm [shape: bf16[64,256], index: 1, kind: input, shape index: {}]
  %s2 = inlined_call_operand.vmem [shape: f32[1,256], index: 2, kind: input, shape index: {}]
  %s3 = inlined_call_operand.hbm [shape: f32[9,128], index: 3, kind: input, shape index: {}]
  %s4 = inlined_call_operand.vmem [shape: f32[1,128], index: 4, kind: input, shape index: {}]
  %s5 = inlined_call_operand.hbm [shape: bf16[128,128], index: 5, kind: input, shape index: {}]
  %s6 = inlined_call_operand.vmem [shape: f32[1,128], index: 6, kind: input, shape index: {}]
  %s7 = inlined_call_operand.hbm [shape: f32[4,16,16,128], index: 7, kind: output, shape index: {}]
  %s8 = sld [smem:[#allocation0]]
  $region77: #{tpu_custom_call.1} parent=0
    _
  %s10 = ssub.s32 1, %s8
  %s11 = scalar_select 0, %s10, %s8
  $region1: #{tpu_custom_call.1} parent=0
    #allocation3 [shape = 'u8[524288]{0}', space=vmem, size = 0x80000, scoped, tag = 'input window, operand 0']
    #allocation4 [shape = 's32[2]{0}', space=sflag, size = 0x8, scoped, tag = 'scoped memory for tpu_custom_call.1']
    #allocation5 [shape = 's32[2]{0}', space=sflag, size = 0x8, scoped, tag = 'scoped memory for tpu_custom_call.1']
    #allocation6 [shape = 'u8[32768]{0}', space=vmem, size = 0x8000, scoped, tag = 'input window, operand 1, single buffered']
    #allocation7 [shape = 's32[1]{0}', space=sflag, size = 0x4, scoped, tag = 'scoped memory for tpu_custom_call.1']
    #allocation8 [shape = 'u8[8192]{0}', space=vmem, size = 0x2000, scoped, tag = 'input window, operand 3, single buffered']
    #allocation9 [shape = 'u8[32768]{0}', space=vmem, size = 0x8000, scoped, tag = 'input window, operand 5, single buffered']
    #allocation10 [shape = 's32[1]{0}', space=sflag, size = 0x4, scoped, tag = 'scoped memory for tpu_custom_call.1']
    #allocation11 [shape = 'u8[524288]{0}', space=vmem, size = 0x80000, scoped, tag = 'output window, operand 0']
    %12 = vsyncpa [#allocation4], 0
    %s13 = scalar_lea.sflag [#allocation4], 1
    %14 = vsyncpa %s13, 0
    %15 = vsyncpa [#allocation7], 0
    %16 = vsyncpa [#allocation10], 0
    %17 = vsyncpa [#allocation5], 0
    %s18 = scalar_lea.sflag [#allocation5], 1
    %19 = vsyncpa %s18, 0
    loop: start=0, step=1, limit=4
    $region2: #{tpu_custom_call.1} parent=1 // loop_pre_header
      _
    $region3: #{tpu_custom_call.1} parent=1 // loop_header
      %s21 = sphi 0, %s25
      %p22 = scmp.ge.s32.totalorder %s21, 4
      %s31 = sphi 0, %s33
      %s34 = sphi 0, %s31
      %s35 = sphi 0, %s34
      %s51 = sphi 0, %s35
      %s55 = sphi 0, %s55
      %s57 = sphi 0, %s55
      %s58 = sphi 0, %s57
      %s72 = sphi 0, %s58
      %s76 = sphi 0, %s76
      %s78 = sphi 0, %s76
      %s79 = sphi 0, %s78
      %s93 = sphi 0, %s79
      %s97 = sphi 0, %s97
      %s99 = sphi 0, %s97
      %s100 = sphi 0, %s99
      %s114 = sphi 0, %s100
      %s118 = sphi 0, %s118
      %s120 = sphi 0, %s118
      %s121 = sphi 0, %s120
      %s135 = sphi 0, %s121
      %s139 = sphi 0, %s139
      %s141 = sphi 0, %s139
      %s142 = sphi 0, %s141
      %s156 = sphi 0, %s142
      %s160 = sphi 0, %s160
      %s162 = sphi 0, %s160
      %s163 = sphi 0, %s162
      %s177 = sphi 0, %s163
      %s183 = sphi 0, %s185
      %s186 = sphi 0, %s183
      %s187 = sphi 0, %s186
      %s203 = sphi 0, %s187
    $region4: #{tpu_custom_call.1} parent=1 // loop_header_branch
      %24 = sbr.rel (%p22) target = $region8
    $region5: #{tpu_custom_call.1} parent=1 // loop_body
      %s26 = ssub.s32 %s21, 1
      %s27 = ssub.s32 %s21, 2
      %s28 = sadd.s32 %s21, 1
      %s29 = ssub.s32 %s21, %s28
      %p30 = scmp.eq.s32.totalorder %s29, 0
      %s32 = sadd.s32 %s31, 1
      %s33 = scalar_select %p30, %s31, %s32
      %p36 = pneg %p30
      %p37 = scmp.eq.s32.totalorder %s21, 1
      %p38 = por %p36, %p37
      %p39 = scmp.ne.s32.totalorder %s31, %s34
      %p40 = scmp.eq.s32.totalorder %s21, 0
      %p41 = por %p39, %p40
      %p42 = scmp.ne.s32.totalorder %s31, %s34
      %p43 = scmp.eq.s32.totalorder %s26, 1
      %p44 = por %p42, %p43
      %p45 = scmp.ne.s32.totalorder %s34, %s35
      %p46 = scmp.eq.s32.totalorder %s26, 0
      %p47 = por %p45, %p46
      %p48 = scmp.ne.s32.totalorder %s34, %s35
      %p49 = scmp.eq.s32.totalorder %s27, 1
      %p50 = por %p48, %p49
      %p52 = scmp.ne.s32.totalorder %s35, %s51
      %p53 = scmp.eq.s32.totalorder %s27, 0
      %p54 = por %p52, %p53
      %s56 = sadd.s32 %s55, 1
      %p59 = scmp.eq.s32.totalorder %s21, 1
      %p60 = scmp.ne.s32.totalorder %s55, %s57
      %p61 = scmp.eq.s32.totalorder %s21, 0
      %p62 = por %p60, %p61
      %p63 = scmp.ne.s32.totalorder %s55, %s57
      %p64 = scmp.eq.s32.totalorder %s26, 1
      %p65 = por %p63, %p64
      %p66 = scmp.ne.s32.totalorder %s57, %s58
      %p67 = scmp.eq.s32.totalorder %s26, 0
      %p68 = por %p66, %p67
      %p69 = scmp.ne.s32.totalorder %s57, %s58
      %p70 = scmp.eq.s32.totalorder %s27, 1
      %p71 = por %p69, %p70
      %p73 = scmp.ne.s32.totalorder %s58, %s72
      %p74 = scmp.eq.s32.totalorder %s27, 0
      %p75 = por %p73, %p74
      %s77 = sadd.s32 %s76, 1
      %p80 = scmp.eq.s32.totalorder %s21, 1
      %p81 = scmp.ne.s32.totalorder %s76, %s78
      %p82 = scmp.eq.s32.totalorder %s21, 0
      %p83 = por %p81, %p82
      %p84 = scmp.ne.s32.totalorder %s76, %s78
      %p85 = scmp.eq.s32.totalorder %s26, 1
      %p86 = por %p84, %p85
      %p87 = scmp.ne.s32.totalorder %s78, %s79
      %p88 = scmp.eq.s32.totalorder %s26, 0
      %p89 = por %p87, %p88
      %p90 = scmp.ne.s32.totalorder %s78, %s79
      %p91 = scmp.eq.s32.totalorder %s27, 1
      %p92 = por %p90, %p91
      %p94 = scmp.ne.s32.totalorder %s79, %s93
      %p95 = scmp.eq.s32.totalorder %s27, 0
      %p96 = por %p94, %p95
      %s98 = sadd.s32 %s97, 1
      %p101 = scmp.eq.s32.totalorder %s21, 1
      %p102 = scmp.ne.s32.totalorder %s97, %s99
      %p103 = scmp.eq.s32.totalorder %s21, 0
      %p104 = por %p102, %p103
      %p105 = scmp.ne.s32.totalorder %s97, %s99
      %p106 = scmp.eq.s32.totalorder %s26, 1
      %p107 = por %p105, %p106
      %p108 = scmp.ne.s32.totalorder %s99, %s100
      %p109 = scmp.eq.s32.totalorder %s26, 0
      %p110 = por %p108, %p109
      %p111 = scmp.ne.s32.totalorder %s99, %s100
      %p112 = scmp.eq.s32.totalorder %s27, 1
      %p113 = por %p111, %p112
      %p115 = scmp.ne.s32.totalorder %s100, %s114
      %p116 = scmp.eq.s32.totalorder %s27, 0
      %p117 = por %p115, %p116
      %s119 = sadd.s32 %s118, 1
      %p122 = scmp.eq.s32.totalorder %s21, 1
      %p123 = scmp.ne.s32.totalorder %s118, %s120
      %p124 = scmp.eq.s32.totalorder %s21, 0
      %p125 = por %p123, %p124
      %p126 = scmp.ne.s32.totalorder %s118, %s120
      %p127 = scmp.eq.s32.totalorder %s26, 1
      %p128 = por %p126, %p127
      %p129 = scmp.ne.s32.totalorder %s120, %s121
      %p130 = scmp.eq.s32.totalorder %s26, 0
      %p131 = por %p129, %p130
      %p132 = scmp.ne.s32.totalorder %s120, %s121
      %p133 = scmp.eq.s32.totalorder %s27, 1
      %p134 = por %p132, %p133
      %p136 = scmp.ne.s32.totalorder %s121, %s135
      %p137 = scmp.eq.s32.totalorder %s27, 0
      %p138 = por %p136, %p137
      %s140 = sadd.s32 %s139, 1
      %p143 = scmp.eq.s32.totalorder %s21, 1
      %p144 = scmp.ne.s32.totalorder %s139, %s141
      %p145 = scmp.eq.s32.totalorder %s21, 0
      %p146 = por %p144, %p145
      %p147 = scmp.ne.s32.totalorder %s139, %s141
      %p148 = scmp.eq.s32.totalorder %s26, 1
      %p149 = por %p147, %p148
      %p150 = scmp.ne.s32.totalorder %s141, %s142
      %p151 = scmp.eq.s32.totalorder %s26, 0
      %p152 = por %p150, %p151
      %p153 = scmp.ne.s32.totalorder %s141, %s142
      %p154 = scmp.eq.s32.totalorder %s27, 1
      %p155 = por %p153, %p154
      %p157 = scmp.ne.s32.totalorder %s142, %s156
      %p158 = scmp.eq.s32.totalorder %s27, 0
      %p159 = por %p157, %p158
      %s161 = sadd.s32 %s160, 1
      %p164 = scmp.eq.s32.totalorder %s21, 1
      %p165 = scmp.ne.s32.totalorder %s160, %s162
      %p166 = scmp.eq.s32.totalorder %s21, 0
      %p167 = por %p165, %p166
      %p168 = scmp.ne.s32.totalorder %s160, %s162
      %p169 = scmp.eq.s32.totalorder %s26, 1
      %p170 = por %p168, %p169
      %p171 = scmp.ne.s32.totalorder %s162, %s163
      %p172 = scmp.eq.s32.totalorder %s26, 0
      %p173 = por %p171, %p172
      %p174 = scmp.ne.s32.totalorder %s162, %s163
      %p175 = scmp.eq.s32.totalorder %s27, 1
      %p176 = por %p174, %p175
      %p178 = scmp.ne.s32.totalorder %s163, %s177
      %p179 = scmp.eq.s32.totalorder %s27, 0
      %p180 = por %p178, %p179
      %s181 = ssub.s32 %s21, %s28
      %p182 = scmp.eq.s32.totalorder %s181, 0
      %s184 = sadd.s32 %s183, 1
      %s185 = scalar_select %p182, %s183, %s184
      %p188 = pneg %p182
      %p189 = scmp.eq.s32.totalorder %s21, 1
      %p190 = por %p188, %p189
      %p191 = scmp.ne.s32.totalorder %s183, %s186
      %p192 = scmp.eq.s32.totalorder %s21, 0
      %p193 = por %p191, %p192
      %p194 = scmp.ne.s32.totalorder %s183, %s186
      %p195 = scmp.eq.s32.totalorder %s26, 1
      %p196 = por %p194, %p195
      %p197 = scmp.ne.s32.totalorder %s186, %s187
      %p198 = scmp.eq.s32.totalorder %s26, 0
      %p199 = por %p197, %p198
      %p200 = scmp.ne.s32.totalorder %s186, %s187
      %p201 = scmp.eq.s32.totalorder %s27, 1
      %p202 = por %p200, %p201
      %p204 = scmp.ne.s32.totalorder %s187, %s203
      %p205 = scmp.eq.s32.totalorder %s27, 0
      %p206 = por %p204, %p205
      %p207 = scmp.le.s32.totalorder 1, %s21
      %p208 = scmp.lt.s32.totalorder %s21, 3
      %p209 = pnand %p207, %p208
      %p210 = pneg %p209
      // Predicated region
      $region9: #{tpu_custom_call.1} parent=5 // pred_check
        _
      $region10: #{tpu_custom_call.1} parent=5 // pred_check_branch
        %212 = sbr.rel (%p209) target = $region12
      $region11: #{tpu_custom_call.1} parent=5 // pred_region
        %s213 = ssub.s32 %s21, 1
        // Predicated region
        $region13: #{tpu_custom_call.1} parent=11 // pred_check
          %p214 = pneg %p68
        $region14: #{tpu_custom_call.1} parent=11 // pred_check_branch
          %216 = sbr.rel (%p214) target = $region16
        $region15: #{tpu_custom_call.1} parent=11 // pred_region
          %s218 = ssub.s32 1024, 1024
          %219 = vsyncadd [#allocation7], %s218
          %s220 = sshll.u32 [#allocation6], 4
          %s221 = int_to_ptr.vmem [resolvable:$true] %s220
          %226 = dma.hbm_to_vmem [thread:$0]  %s1, 1024, %s221, [#allocation7], 128, 128, 8
        $region16: #{tpu_custom_call.1} parent=11 // pred_fallthru
          _
        // Predicated region
        $region17: #{tpu_custom_call.1} parent=11 // pred_check
          %p227 = pneg %p89
        $region18: #{tpu_custom_call.1} parent=11 // pred_check_branch
          %229 = sbr.rel (%p227) target = $region20
        $region19: #{tpu_custom_call.1} parent=11 // pred_region
          _
        $region20: #{tpu_custom_call.1} parent=11 // pred_fallthru
          _
        // Predicated region
        $region21: #{tpu_custom_call.1} parent=11 // pred_check
          %p230 = pneg %p110
        $region22: #{tpu_custom_call.1} parent=11 // pred_check_branch
          %232 = sbr.rel (%p230) target = $region24
        $region23: #{tpu_custom_call.1} parent=11 // pred_region
          %s234 = ssub.s32 256, 256
          %235 = vsyncadd [#allocation7], %s234
          %s236 = sshll.u32 [#allocation8], 4
          %s237 = int_to_ptr.vmem [resolvable:$true] %s236
          %242 = dma.hbm_to_vmem [thread:$0]  %s3, 256, %s237, [#allocation7], 128, 128, 8
        $region24: #{tpu_custom_call.1} parent=11 // pred_fallthru
          _
        // Predicated region
        $region25: #{tpu_custom_call.1} parent=11 // pred_check
          %p243 = pneg %p131
        $region26: #{tpu_custom_call.1} parent=11 // pred_check_branch
          %245 = sbr.rel (%p243) target = $region28
        $region27: #{tpu_custom_call.1} parent=11 // pred_region
          _
        $region28: #{tpu_custom_call.1} parent=11 // pred_fallthru
          _
        // Predicated region
        $region29: #{tpu_custom_call.1} parent=11 // pred_check
          %p246 = pneg %p152
        $region30: #{tpu_custom_call.1} parent=11 // pred_check_branch
          %248 = sbr.rel (%p246) target = $region32
        $region31: #{tpu_custom_call.1} parent=11 // pred_region
          %s250 = ssub.s32 1024, 1024
          %251 = vsyncadd [#allocation10], %s250
          %s252 = sshll.u32 [#allocation9], 4
          %s253 = int_to_ptr.vmem [resolvable:$true] %s252
          %258 = dma.hbm_to_vmem [thread:$0]  %s5, 1024, %s253, [#allocation10], 64, 64, 4
        $region32: #{tpu_custom_call.1} parent=11 // pred_fallthru
          _
        // Predicated region
        $region33: #{tpu_custom_call.1} parent=11 // pred_check
          %p259 = pneg %p173
        $region34: #{tpu_custom_call.1} parent=11 // pred_check_branch
          %261 = sbr.rel (%p259) target = $region36
        $region35: #{tpu_custom_call.1} parent=11 // pred_region
          _
        $region36: #{tpu_custom_call.1} parent=11 // pred_fallthru
          _
      $region12: #{tpu_custom_call.1} parent=5 // pred_fallthru
        _
      %p262 = scmp.lt.s32.totalorder %s21, 2
      // Predicated region
      $region37: #{tpu_custom_call.1} parent=5 // pred_check
        %p263 = pneg %p262
      $region38: #{tpu_custom_call.1} parent=5 // pred_check_branch
        %265 = sbr.rel (%p263) target = $region40
      $region39: #{tpu_custom_call.1} parent=5 // pred_region
        // Predicated region
        $region41: #{tpu_custom_call.1} parent=39 // pred_check
          %p266 = pneg %p41
        $region42: #{tpu_custom_call.1} parent=39 // pred_check_branch
          %268 = sbr.rel (%p266) target = $region44
        $region43: #{tpu_custom_call.1} parent=39 // pred_region
          %s269 = sand.u32 %s31, 1
          %s270 = scalar_lea.sflag [#allocation4], %s269
          %s271 = sand.u32 %s31, 1
          %s272 = smul.addr %s271, 512
          %s273 = scalar_lea.vmem [#allocation3], %s272
          %s274 = smul.u32 2, %s21
          %s276 = ssub.s32 8192, 8192
          %277 = vsyncadd %s270, %s276
          %s278 = smul.addr %s274, 32
          %s279 = smul.addr %s278, 128
          %s280 = scalar_lea.hbm %s0, %s279
          %s281 = sshll.u32 %s273, 4
          %s282 = int_to_ptr.vmem [resolvable:$true] %s281
          %287 = dma.hbm_to_vmem [thread:$0]  %s280, 8192, %s282, %s270, 128, 128, 8
        $region44: #{tpu_custom_call.1} parent=39 // pred_fallthru
          _
      $region40: #{tpu_custom_call.1} parent=5 // pred_fallthru
        _
      %p288 = scmp.le.s32.totalorder 1, %s21
      %p289 = scmp.lt.s32.totalorder %s21, 3
      %p290 = pnand %p288, %p289
      %p291 = pneg %p290
      // Predicated region
      $region45: #{tpu_custom_call.1} parent=5 // pred_check
        _
      $region46: #{tpu_custom_call.1} parent=5 // pred_check_branch
        %293 = sbr.rel (%p290) target = $region48
      $region47: #{tpu_custom_call.1} parent=5 // pred_region
        %s294 = ssub.s32 %s21, 1
        %s295 = sand.u32 %s34, 1
        %s296 = scalar_lea.sflag [#allocation4], %s295
        %s297 = sand.u32 %s34, 1
        %s298 = smul.addr %s297, 512
        %s299 = scalar_lea.vmem [#allocation3], %s298
        // Predicated region
        $region49: #{tpu_custom_call.1} parent=47 // pred_check
          %p300 = pneg %p47
        $region50: #{tpu_custom_call.1} parent=47 // pred_check_branch
          %302 = sbr.rel (%p300) target = $region52
        $region51: #{tpu_custom_call.1} parent=47 // pred_region
          %303 = dma.done %s296, 8192
        $region52: #{tpu_custom_call.1} parent=47 // pred_fallthru
          _
        // Predicated region
        $region53: #{tpu_custom_call.1} parent=47 // pred_check
          %p304 = pneg %p68
        $region54: #{tpu_custom_call.1} parent=47 // pred_check_branch
          %306 = sbr.rel (%p304) target = $region56
        $region55: #{tpu_custom_call.1} parent=47 // pred_region
          %307 = dma.done [#allocation7], 1024
        $region56: #{tpu_custom_call.1} parent=47 // pred_fallthru
          _
        // Predicated region
        $region57: #{tpu_custom_call.1} parent=47 // pred_check
          %p308 = pneg %p110
        $region58: #{tpu_custom_call.1} parent=47 // pred_check_branch
          %310 = sbr.rel (%p308) target = $region60
        $region59: #{tpu_custom_call.1} parent=47 // pred_region
          %311 = dma.done [#allocation7], 256
        $region60: #{tpu_custom_call.1} parent=47 // pred_fallthru
          _
        // Predicated region
        $region61: #{tpu_custom_call.1} parent=47 // pred_check
          %p312 = pneg %p152
        $region62: #{tpu_custom_call.1} parent=47 // pred_check_branch
          %314 = sbr.rel (%p312) target = $region64
        $region63: #{tpu_custom_call.1} parent=47 // pred_region
          %315 = dma.done [#allocation10], 1024
        $region64: #{tpu_custom_call.1} parent=47 // pred_fallthru
          _
        %s316 = sand.u32 %s34, 1
        %s317 = scalar_lea.sflag [#allocation4], %s316
        %s318 = sand.u32 %s34, 1
        %s319 = smul.addr %s318, 512
        %s320 = scalar_lea.vmem [#allocation3], %s319
        %p321 = pneg %p47
        %p322 = pneg %p44
        %p323 = pneg %p68
        %p324 = pneg %p65
        %p325 = pneg %p89
        %p326 = pneg %p86
        %p327 = pneg %p110
        %p328 = pneg %p107
        %p329 = pneg %p131
        %p330 = pneg %p128
        %p331 = pneg %p152
        %p332 = pneg %p149
        %p333 = pneg %p173
        %p334 = pneg %p170
        %p335 = pneg %p199
        %p336 = pneg %p196
        %s337 = sand.u32 %s186, 1
        %s338 = scalar_lea.sflag [#allocation5], %s337
        %s339 = sand.u32 %s186, 1
        %s340 = smul.addr %s339, 512
        %s341 = scalar_lea.vmem [#allocation11], %s340
        %s342 = smul.u32 2, %s26
        %s343 = smul.u32 2, %s26
        %v345 = vld [vmem:[%s299] sm:$0xff]
        %v346 = vld [vmem:[%s299 + $0x8] sm:$0xff]
        %v347 = vld [vmem:[%s299 + $0x10] sm:$0xff]
        %v348 = vld [vmem:[%s299 + $0x18] sm:$0xff]
        %v349 = vld [vmem:[%s299 + $0x20] sm:$0xff]
        %v350 = vld [vmem:[%s299 + $0x28] sm:$0xff]
        %v351 = vld [vmem:[%s299 + $0x30] sm:$0xff]
        %v352 = vld [vmem:[%s299 + $0x38] sm:$0xff]
        %v353 = vld [vmem:[%s299 + $0x40] sm:$0xff]
        %v354 = vld [vmem:[%s299 + $0x48] sm:$0xff]
        %v355 = vld [vmem:[%s299 + $0x50] sm:$0xff]
        %v356 = vld [vmem:[%s299 + $0x58] sm:$0xff]
        %v357 = vld [vmem:[%s299 + $0x60] sm:$0xff]
        %v358 = vld [vmem:[%s299 + $0x68] sm:$0xff]
        %v359 = vld [vmem:[%s299 + $0x70] sm:$0xff]
        %v360 = vld [vmem:[%s299 + $0x78] sm:$0xff]
        %v361 = vld [vmem:[%s299 + $0x80] sm:$0xff]
        %v362 = vld [vmem:[%s299 + $0x88] sm:$0xff]
        %v363 = vld [vmem:[%s299 + $0x90] sm:$0xff]
        %v364 = vld [vmem:[%s299 + $0x98] sm:$0xff]
        %v365 = vld [vmem:[%s299 + $0xa0] sm:$0xff]
        %v366 = vld [vmem:[%s299 + $0xa8] sm:$0xff]
        %v367 = vld [vmem:[%s299 + $0xb0] sm:$0xff]
        %v368 = vld [vmem:[%s299 + $0xb8] sm:$0xff]
        %v369 = vld [vmem:[%s299 + $0xc0] sm:$0xff]
        %v370 = vld [vmem:[%s299 + $0xc8] sm:$0xff]
        %v371 = vld [vmem:[%s299 + $0xd0] sm:$0xff]
        %v372 = vld [vmem:[%s299 + $0xd8] sm:$0xff]
        %v373 = vld [vmem:[%s299 + $0xe0] sm:$0xff]
        %v374 = vld [vmem:[%s299 + $0xe8] sm:$0xff]
        %v375 = vld [vmem:[%s299 + $0xf0] sm:$0xff]
        %v376 = vld [vmem:[%s299 + $0xf8] sm:$0xff]
        %v377 = vld [vmem:[%s299 + $0x100] sm:$0xff]
        %v378 = vld [vmem:[%s299 + $0x108] sm:$0xff]
        %v379 = vld [vmem:[%s299 + $0x110] sm:$0xff]
        %v380 = vld [vmem:[%s299 + $0x118] sm:$0xff]
        %v381 = vld [vmem:[%s299 + $0x120] sm:$0xff]
        %v382 = vld [vmem:[%s299 + $0x128] sm:$0xff]
        %v383 = vld [vmem:[%s299 + $0x130] sm:$0xff]
        %v384 = vld [vmem:[%s299 + $0x138] sm:$0xff]
        %v385 = vld [vmem:[%s299 + $0x140] sm:$0xff]
        %v386 = vld [vmem:[%s299 + $0x148] sm:$0xff]
        %v387 = vld [vmem:[%s299 + $0x150] sm:$0xff]
        %v388 = vld [vmem:[%s299 + $0x158] sm:$0xff]
        %v389 = vld [vmem:[%s299 + $0x160] sm:$0xff]
        %v390 = vld [vmem:[%s299 + $0x168] sm:$0xff]
        %v391 = vld [vmem:[%s299 + $0x170] sm:$0xff]
        %v392 = vld [vmem:[%s299 + $0x178] sm:$0xff]
        %v393 = vld [vmem:[%s299 + $0x180] sm:$0xff]
        %v394 = vld [vmem:[%s299 + $0x188] sm:$0xff]
        %v395 = vld [vmem:[%s299 + $0x190] sm:$0xff]
        %v396 = vld [vmem:[%s299 + $0x198] sm:$0xff]
        %v397 = vld [vmem:[%s299 + $0x1a0] sm:$0xff]
        %v398 = vld [vmem:[%s299 + $0x1a8] sm:$0xff]
        %v399 = vld [vmem:[%s299 + $0x1b0] sm:$0xff]
        %v400 = vld [vmem:[%s299 + $0x1b8] sm:$0xff]
        %v401 = vld [vmem:[%s299 + $0x1c0] sm:$0xff]
        %v402 = vld [vmem:[%s299 + $0x1c8] sm:$0xff]
        %v403 = vld [vmem:[%s299 + $0x1d0] sm:$0xff]
        %v404 = vld [vmem:[%s299 + $0x1d8] sm:$0xff]
        %v405 = vld [vmem:[%s299 + $0x1e0] sm:$0xff]
        %v406 = vld [vmem:[%s299 + $0x1e8] sm:$0xff]
        %v407 = vld [vmem:[%s299 + $0x1f0] sm:$0xff]
        %v408 = vld [vmem:[%s299 + $0x1f8] sm:$0xff]
        %v409 = vpack.c.bf16 %v346, %v345
        %v410 = vpack.c.bf16 %v348, %v347
        %v411 = vpack.c.bf16 %v350, %v349
        %v412 = vpack.c.bf16 %v352, %v351
        %v413 = vpack.c.bf16 %v354, %v353
        %v414 = vpack.c.bf16 %v356, %v355
        %v415 = vpack.c.bf16 %v358, %v357
        %v416 = vpack.c.bf16 %v360, %v359
        %v417 = vpack.c.bf16 %v362, %v361
        %v418 = vpack.c.bf16 %v364, %v363
        %v419 = vpack.c.bf16 %v366, %v365
        %v420 = vpack.c.bf16 %v368, %v367
        %v421 = vpack.c.bf16 %v370, %v369
        %v422 = vpack.c.bf16 %v372, %v371
        %v423 = vpack.c.bf16 %v374, %v373
        %v424 = vpack.c.bf16 %v376, %v375
        %v425 = vpack.c.bf16 %v378, %v377
        %v426 = vpack.c.bf16 %v380, %v379
        %v427 = vpack.c.bf16 %v382, %v381
        %v428 = vpack.c.bf16 %v384, %v383
        %v429 = vpack.c.bf16 %v386, %v385
        %v430 = vpack.c.bf16 %v388, %v387
        %v431 = vpack.c.bf16 %v390, %v389
        %v432 = vpack.c.bf16 %v392, %v391
        %v433 = vpack.c.bf16 %v394, %v393
        %v434 = vpack.c.bf16 %v396, %v395
        %v435 = vpack.c.bf16 %v398, %v397
        %v436 = vpack.c.bf16 %v400, %v399
        %v437 = vpack.c.bf16 %v402, %v401
        %v438 = vpack.c.bf16 %v404, %v403
        %v439 = vpack.c.bf16 %v406, %v405
        %v440 = vpack.c.bf16 %v408, %v407
        %v441 = vld [vmem:[#allocation6] sm:$0xff]
        %v442 = vld [vmem:[#allocation6 + $0x8] sm:$0xff]
        %v443 = vld [vmem:[#allocation6 + $0x10] sm:$0xff]
        %v444 = vld [vmem:[#allocation6 + $0x18] sm:$0xff]
        %v445 = vld [vmem:[#allocation6 + $0x20] sm:$0xff]
        %v446 = vld [vmem:[#allocation6 + $0x28] sm:$0xff]
        %v447 = vld [vmem:[#allocation6 + $0x30] sm:$0xff]
        %v448 = vld [vmem:[#allocation6 + $0x38] sm:$0xff]
        %v449 = vld [vmem:[%s2] sm:$0x3]
        %v451 = vlaneseq
        %v452 = vshrl.u32 %v451, 7
        %v453 = vsub.s32 0, %v452
        %v454 = vrot.slane %v449, %v453
        %v455 = vlaneseq
        %v456 = vshrl.u32 %v455, 7
        %v457 = vsub.s32 1, %v456
        %v458 = vrot.slane %v449, %v457
        %v469 = vunpack.c.l.b16 %v441
        %v470 = vunpack.c.h.b16 %v441
        %v471 = vunpack.c.l.b16 %v442
        %v472 = vunpack.c.h.b16 %v442
        %v473 = vunpack.c.l.b16 %v443
        %v474 = vunpack.c.h.b16 %v443
        %v475 = vunpack.c.l.b16 %v444
        %v476 = vunpack.c.h.b16 %v444
        %v477 = vunpack.c.l.b16 %v445
        %v478 = vunpack.c.h.b16 %v445
        %v479 = vunpack.c.l.b16 %v446
        %v480 = vunpack.c.h.b16 %v446
        %v481 = vunpack.c.l.b16 %v447
        %v482 = vunpack.c.h.b16 %v447
        %v483 = vunpack.c.l.b16 %v448
        %v484 = vunpack.c.h.b16 %v448
        %v485 = vpack.c.b16 %v471, %v469
        %v486 = vpack.c.b16 %v472, %v470
        %v487 = vpack.c.b16 %v475, %v473
        %v488 = vpack.c.b16 %v476, %v474
        %v489 = vpack.c.b16 %v479, %v477
        %v490 = vpack.c.b16 %v480, %v478
        %v491 = vpack.c.b16 %v483, %v481
        %v492 = vpack.c.b16 %v484, %v482
        %vm501 = vcmask 523264
        %v503 = vsel %vm501, %v409, 0
        %v506 = vsel %vm501, %v410, 0
        %v509 = vsel %vm501, %v411, 0
        %v512 = vsel %vm501, %v412, 0
        %v515 = vsel %vm501, %v413, 0
        %v518 = vsel %vm501, %v414, 0
        %v521 = vsel %vm501, %v415, 0
        %v524 = vsel %vm501, %v416, 0
        %v527 = vsel %vm501, %v417, 0
        %v530 = vsel %vm501, %v418, 0
        %v533 = vsel %vm501, %v419, 0
        %v536 = vsel %vm501, %v420, 0
        %v539 = vsel %vm501, %v421, 0
        %v542 = vsel %vm501, %v422, 0
        %v545 = vsel %vm501, %v423, 0
        %v548 = vsel %vm501, %v424, 0
        %v551 = vsel %vm501, %v425, 0
        %v554 = vsel %vm501, %v426, 0
        %v557 = vsel %vm501, %v427, 0
        %v560 = vsel %vm501, %v428, 0
        %v563 = vsel %vm501, %v429, 0
        %v566 = vsel %vm501, %v430, 0
        %v569 = vsel %vm501, %v431, 0
        %v572 = vsel %vm501, %v432, 0
        %v575 = vsel %vm501, %v433, 0
        %v578 = vsel %vm501, %v434, 0
        %v581 = vsel %vm501, %v435, 0
        %v584 = vsel %vm501, %v436, 0
        %v587 = vsel %vm501, %v437, 0
        %v590 = vsel %vm501, %v438, 0
        %v593 = vsel %vm501, %v439, 0
        %v596 = vsel %vm501, %v440, 0
        %598 = vmatprep.subr.bf16.mxu0 %v486
        %599 = vmatpush1.bf16.msra.mxu0 %v485
        %600 = vmatprep.subr.bf16.mxu0 %v488
        %601 = vmatpush1.bf16.msra.mxu0 %v487
        %602 = vmatprep.subr.bf16.mxu0 %v490
        %603 = vmatpush1.bf16.msra.mxu0 %v489
        %604 = vmatprep.subr.bf16.mxu0 %v492
        %605 = vmatpush1.bf16.msra.mxu0 %v491
        %606 = vmatprep.subr.bf16.mxu0 0
        %607 = vmatpush1.bf16.msra.mxu0 0
        %608 = vmatprep.subr.bf16.mxu0 0
        %609 = vmatpush1.bf16.msra.mxu0 0
        %610 = vmatprep.subr.bf16.mxu0 0
        %611 = vmatpush1.bf16.msra.mxu0 0
        %612 = vmatprep.subr.bf16.mxu0 0
        %613 = vmatpush1.bf16.msra.mxu0 0
        %614 = vmatprep.subr.bf16.mxu0 0
        %615 = vmatpush1.bf16.msra.mxu0 0
        %616 = vmatprep.subr.bf16.mxu0 0
        %617 = vmatpush1.bf16.msra.mxu0 0
        %618 = vmatprep.subr.bf16.mxu0 0
        %619 = vmatpush1.bf16.msra.mxu0 0
        %620 = vmatprep.subr.bf16.mxu0 0
        %621 = vmatpush1.bf16.msra.mxu0 0
        %622 = vmatprep.subr.bf16.mxu0 0
        %623 = vmatpush1.bf16.msra.mxu0 0
        %624 = vmatprep.subr.bf16.mxu0 0
        %625 = vmatpush1.bf16.msra.mxu0 0
        %626 = vmatprep.subr.bf16.mxu0 0
        %627 = vmatpush1.bf16.msra.mxu0 0
        %628 = vmatprep.subr.bf16.mxu0 0
        %629 = vmatpush1.bf16.msra.mxu0 0
        %630 = vmatprep.mubr.bf16.mxu0 0
        %631 = vmatmul.mubr.bf16.gmra.mrb[0].mxu0 %v503
        %v632 = vpop.f32.mrb[0].mxu0
        %v633 = vadd.f32 %v454, %v632
        %v634 = vpop.f32.mrb[0].mxu0
        %v635 = vadd.f32 %v458, %v634
        %v636 = vpop.f32.mrb[0].mxu0
        %v637 = vadd.f32 %v454, %v636
        %v638 = vpop.f32.mrb[0].mxu0
        %v639 = vadd.f32 %v458, %v638
        %640 = vmatprep.mubr.bf16.mxu0 0
        %641 = vmatmul.mubr.bf16.gmra.mrb[0].mxu0 %v506
        %v642 = vpop.f32.mrb[0].mxu0
        %v643 = vadd.f32 %v454, %v642
        %v644 = vpop.f32.mrb[0].mxu0
        %v645 = vadd.f32 %v458, %v644
        %v646 = vpop.f32.mrb[0].mxu0
        %v647 = vadd.f32 %v454, %v646
        %v648 = vpop.f32.mrb[0].mxu0
        %v649 = vadd.f32 %v458, %v648
        %650 = vmatprep.mubr.bf16.mxu0 0
        %651 = vmatmul.mubr.bf16.gmra.mrb[0].mxu0 %v509
        %v652 = vpop.f32.mrb[0].mxu0
        %v653 = vadd.f32 %v454, %v652
        %v654 = vpop.f32.mrb[0].mxu0
        %v655 = vadd.f32 %v458, %v654
        %v656 = vpop.f32.mrb[0].mxu0
        %v657 = vadd.f32 %v454, %v656
        %v658 = vpop.f32.mrb[0].mxu0
        %v659 = vadd.f32 %v458, %v658
        %660 = vmatprep.mubr.bf16.mxu0 0
        %661 = vmatmul.mubr.bf16.gmra.mrb[0].mxu0 %v512
        %v662 = vpop.f32.mrb[0].mxu0
        %v663 = vadd.f32 %v454, %v662
        %v664 = vpop.f32.mrb[0].mxu0
        %v665 = vadd.f32 %v458, %v664
        %v666 = vpop.f32.mrb[0].mxu0
        %v667 = vadd.f32 %v454, %v666
        %v668 = vpop.f32.mrb[0].mxu0
        %v669 = vadd.f32 %v458, %v668
        %670 = vmatprep.mubr.bf16.mxu0 0
        %671 = vmatmul.mubr.bf16.gmra.mrb[0].mxu0 %v515
        %v672 = vpop.f32.mrb[0].mxu0
        %v673 = vadd.f32 %v454, %v672
        %v674 = vpop.f32.mrb[0].mxu0
        %v675 = vadd.f32 %v458, %v674
        %v676 = vpop.f32.mrb[0].mxu0
        %v677 = vadd.f32 %v454, %v676
        %v678 = vpop.f32.mrb[0].mxu0
        %v679 = vadd.f32 %v458, %v678
        %680 = vmatprep.mubr.bf16.mxu0 0
        %681 = vmatmul.mubr.bf16.gmra.mrb[0].mxu0 %v518
        %v682 = vpop.f32.mrb[0].mxu0
        %v683 = vadd.f32 %v454, %v682
        %v684 = vpop.f32.mrb[0].mxu0
        %v685 = vadd.f32 %v458, %v684
        %v686 = vpop.f32.mrb[0].mxu0
        %v687 = vadd.f32 %v454, %v686
        %v688 = vpop.f32.mrb[0].mxu0
        %v689 = vadd.f32 %v458, %v688
        %690 = vmatprep.mubr.bf16.mxu0 0
        %691 = vmatmul.mubr.bf16.gmra.mrb[0].mxu0 %v521
        %v692 = vpop.f32.mrb[0].mxu0
        %v693 = vadd.f32 %v454, %v692
        %v694 = vpop.f32.mrb[0].mxu0
        %v695 = vadd.f32 %v458, %v694
        %v696 = vpop.f32.mrb[0].mxu0
        %v697 = vadd.f32 %v454, %v696
        %v698 = vpop.f32.mrb[0].mxu0
        %v699 = vadd.f32 %v458, %v698
        %700 = vmatprep.mubr.bf16.mxu0 0
        %701 = vmatmul.mubr.bf16.gmra.mrb[0].mxu0 %v524
        %v702 = vpop.f32.mrb[0].mxu0
        %v703 = vadd.f32 %v454, %v702
        %v704 = vpop.f32.mrb[0].mxu0
        %v705 = vadd.f32 %v458, %v704
        %v706 = vpop.f32.mrb[0].mxu0
        %v707 = vadd.f32 %v454, %v706
        %v708 = vpop.f32.mrb[0].mxu0
        %v709 = vadd.f32 %v458, %v708
        %710 = vmatprep.mubr.bf16.mxu0 0
        %711 = vmatmul.mubr.bf16.gmra.mrb[0].mxu0 %v527
        %v712 = vpop.f32.mrb[0].mxu0
        %v713 = vadd.f32 %v454, %v712
        %v714 = vpop.f32.mrb[0].mxu0
        %v715 = vadd.f32 %v458, %v714
        %v716 = vpop.f32.mrb[0].mxu0
        %v717 = vadd.f32 %v454, %v716
        %v718 = vpop.f32.mrb[0].mxu0
        %v719 = vadd.f32 %v458, %v718
        %720 = vmatprep.mubr.bf16.mxu0 0
        %721 = vmatmul.mubr.bf16.gmra.mrb[0].mxu0 %v530
        %v722 = vpop.f32.mrb[0].mxu0
        %v723 = vadd.f32 %v454, %v722
        %v724 = vpop.f32.mrb[0].mxu0
        %v725 = vadd.f32 %v458, %v724
        %v726 = vpop.f32.mrb[0].mxu0
        %v727 = vadd.f32 %v454, %v726
        %v728 = vpop.f32.mrb[0].mxu0
        %v729 = vadd.f32 %v458, %v728
        %730 = vmatprep.mubr.bf16.mxu0 0
        %731 = vmatmul.mubr.bf16.gmra.mrb[0].mxu0 %v533
        %v732 = vpop.f32.mrb[0].mxu0
        %v733 = vadd.f32 %v454, %v732
        %v734 = vpop.f32.mrb[0].mxu0
        %v735 = vadd.f32 %v458, %v734
        %v736 = vpop.f32.mrb[0].mxu0
        %v737 = vadd.f32 %v454, %v736
        %v738 = vpop.f32.mrb[0].mxu0
        %v739 = vadd.f32 %v458, %v738
        %740 = vmatprep.mubr.bf16.mxu0 0
        %741 = vmatmul.mubr.bf16.gmra.mrb[0].mxu0 %v536
        %v742 = vpop.f32.mrb[0].mxu0
        %v743 = vadd.f32 %v454, %v742
        %v744 = vpop.f32.mrb[0].mxu0
        %v745 = vadd.f32 %v458, %v744
        %v746 = vpop.f32.mrb[0].mxu0
        %v747 = vadd.f32 %v454, %v746
        %v748 = vpop.f32.mrb[0].mxu0
        %v749 = vadd.f32 %v458, %v748
        %750 = vmatprep.mubr.bf16.mxu0 0
        %751 = vmatmul.mubr.bf16.gmra.mrb[0].mxu0 %v539
        %v752 = vpop.f32.mrb[0].mxu0
        %v753 = vadd.f32 %v454, %v752
        %v754 = vpop.f32.mrb[0].mxu0
        %v755 = vadd.f32 %v458, %v754
        %v756 = vpop.f32.mrb[0].mxu0
        %v757 = vadd.f32 %v454, %v756
        %v758 = vpop.f32.mrb[0].mxu0
        %v759 = vadd.f32 %v458, %v758
        %760 = vmatprep.mubr.bf16.mxu0 0
        %761 = vmatmul.mubr.bf16.gmra.mrb[0].mxu0 %v542
        %v762 = vpop.f32.mrb[0].mxu0
        %v763 = vadd.f32 %v454, %v762
        %v764 = vpop.f32.mrb[0].mxu0
        %v765 = vadd.f32 %v458, %v764
        %v766 = vpop.f32.mrb[0].mxu0
        %v767 = vadd.f32 %v454, %v766
        %v768 = vpop.f32.mrb[0].mxu0
        %v769 = vadd.f32 %v458, %v768
        %770 = vmatprep.mubr.bf16.mxu0 0
        %771 = vmatmul.mubr.bf16.gmra.mrb[0].mxu0 %v545
        %v772 = vpop.f32.mrb[0].mxu0
        %v773 = vadd.f32 %v454, %v772
        %v774 = vpop.f32.mrb[0].mxu0
        %v775 = vadd.f32 %v458, %v774
        %v776 = vpop.f32.mrb[0].mxu0
        %v777 = vadd.f32 %v454, %v776
        %v778 = vpop.f32.mrb[0].mxu0
        %v779 = vadd.f32 %v458, %v778
        %780 = vmatprep.mubr.bf16.mxu0 0
        %781 = vmatmul.mubr.bf16.gmra.mrb[0].mxu0 %v548
        %v782 = vpop.f32.mrb[0].mxu0
        %v783 = vadd.f32 %v454, %v782
        %v784 = vpop.f32.mrb[0].mxu0
        %v785 = vadd.f32 %v458, %v784
        %v786 = vpop.f32.mrb[0].mxu0
        %v787 = vadd.f32 %v454, %v786
        %v788 = vpop.f32.mrb[0].mxu0
        %v789 = vadd.f32 %v458, %v788
        %790 = vmatprep.mubr.bf16.mxu0 0
        %791 = vmatmul.mubr.bf16.gmra.mrb[0].mxu0 %v551
        %v792 = vpop.f32.mrb[0].mxu0
        %v793 = vadd.f32 %v454, %v792
        %v794 = vpop.f32.mrb[0].mxu0
        %v795 = vadd.f32 %v458, %v794
        %v796 = vpop.f32.mrb[0].mxu0
        %v797 = vadd.f32 %v454, %v796
        %v798 = vpop.f32.mrb[0].mxu0
        %v799 = vadd.f32 %v458, %v798
        %800 = vmatprep.mubr.bf16.mxu0 0
        %801 = vmatmul.mubr.bf16.gmra.mrb[0].mxu0 %v554
        %v802 = vpop.f32.mrb[0].mxu0
        %v803 = vadd.f32 %v454, %v802
        %v804 = vpop.f32.mrb[0].mxu0
        %v805 = vadd.f32 %v458, %v804
        %v806 = vpop.f32.mrb[0].mxu0
        %v807 = vadd.f32 %v454, %v806
        %v808 = vpop.f32.mrb[0].mxu0
        %v809 = vadd.f32 %v458, %v808
        %810 = vmatprep.mubr.bf16.mxu0 0
        %811 = vmatmul.mubr.bf16.gmra.mrb[0].mxu0 %v557
        %v812 = vpop.f32.mrb[0].mxu0
        %v813 = vadd.f32 %v454, %v812
        %v814 = vpop.f32.mrb[0].mxu0
        %v815 = vadd.f32 %v458, %v814
        %v816 = vpop.f32.mrb[0].mxu0
        %v817 = vadd.f32 %v454, %v816
        %v818 = vpop.f32.mrb[0].mxu0
        %v819 = vadd.f32 %v458, %v818
        %820 = vmatprep.mubr.bf16.mxu0 0
        %821 = vmatmul.mubr.bf16.gmra.mrb[0].mxu0 %v560
        %v822 = vpop.f32.mrb[0].mxu0
        %v823 = vadd.f32 %v454, %v822
        %v824 = vpop.f32.mrb[0].mxu0
        %v825 = vadd.f32 %v458, %v824
        %v826 = vpop.f32.mrb[0].mxu0
        %v827 = vadd.f32 %v454, %v826
        %v828 = vpop.f32.mrb[0].mxu0
        %v829 = vadd.f32 %v458, %v828
        %830 = vmatprep.mubr.bf16.mxu0 0
        %831 = vmatmul.mubr.bf16.gmra.mrb[0].mxu0 %v563
        %v832 = vpop.f32.mrb[0].mxu0
        %v833 = vadd.f32 %v454, %v832
        %v834 = vpop.f32.mrb[0].mxu0
        %v835 = vadd.f32 %v458, %v834
        %v836 = vpop.f32.mrb[0].mxu0
        %v837 = vadd.f32 %v454, %v836
        %v838 = vpop.f32.mrb[0].mxu0
        %v839 = vadd.f32 %v458, %v838
        %840 = vmatprep.mubr.bf16.mxu0 0
        %841 = vmatmul.mubr.bf16.gmra.mrb[0].mxu0 %v566
        %v842 = vpop.f32.mrb[0].mxu0
        %v843 = vadd.f32 %v454, %v842
        %v844 = vpop.f32.mrb[0].mxu0
        %v845 = vadd.f32 %v458, %v844
        %v846 = vpop.f32.mrb[0].mxu0
        %v847 = vadd.f32 %v454, %v846
        %v848 = vpop.f32.mrb[0].mxu0
        %v849 = vadd.f32 %v458, %v848
        %850 = vmatprep.mubr.bf16.mxu0 0
        %851 = vmatmul.mubr.bf16.gmra.mrb[0].mxu0 %v569
        %v852 = vpop.f32.mrb[0].mxu0
        %v853 = vadd.f32 %v454, %v852
        %v854 = vpop.f32.mrb[0].mxu0
        %v855 = vadd.f32 %v458, %v854
        %v856 = vpop.f32.mrb[0].mxu0
        %v857 = vadd.f32 %v454, %v856
        %v858 = vpop.f32.mrb[0].mxu0
        %v859 = vadd.f32 %v458, %v858
        %860 = vmatprep.mubr.bf16.mxu0 0
        %861 = vmatmul.mubr.bf16.gmra.mrb[0].mxu0 %v572
        %v862 = vpop.f32.mrb[0].mxu0
        %v863 = vadd.f32 %v454, %v862
        %v864 = vpop.f32.mrb[0].mxu0
        %v865 = vadd.f32 %v458, %v864
        %v866 = vpop.f32.mrb[0].mxu0
        %v867 = vadd.f32 %v454, %v866
        %v868 = vpop.f32.mrb[0].mxu0
        %v869 = vadd.f32 %v458, %v868
        %870 = vmatprep.mubr.bf16.mxu0 0
        %871 = vmatmul.mubr.bf16.gmra.mrb[0].mxu0 %v575
        %v872 = vpop.f32.mrb[0].mxu0
        %v873 = vadd.f32 %v454, %v872
        %v874 = vpop.f32.mrb[0].mxu0
        %v875 = vadd.f32 %v458, %v874
        %v876 = vpop.f32.mrb[0].mxu0
        %v877 = vadd.f32 %v454, %v876
        %v878 = vpop.f32.mrb[0].mxu0
        %v879 = vadd.f32 %v458, %v878
        %880 = vmatprep.mubr.bf16.mxu0 0
        %881 = vmatmul.mubr.bf16.gmra.mrb[0].mxu0 %v578
        %v882 = vpop.f32.mrb[0].mxu0
        %v883 = vadd.f32 %v454, %v882
        %v884 = vpop.f32.mrb[0].mxu0
        %v885 = vadd.f32 %v458, %v884
        %v886 = vpop.f32.mrb[0].mxu0
        %v887 = vadd.f32 %v454, %v886
        %v888 = vpop.f32.mrb[0].mxu0
        %v889 = vadd.f32 %v458, %v888
        %890 = vmatprep.mubr.bf16.mxu0 0
        %891 = vmatmul.mubr.bf16.gmra.mrb[0].mxu0 %v581
        %v892 = vpop.f32.mrb[0].mxu0
        %v893 = vadd.f32 %v454, %v892
        %v894 = vpop.f32.mrb[0].mxu0
        %v895 = vadd.f32 %v458, %v894
        %v896 = vpop.f32.mrb[0].mxu0
        %v897 = vadd.f32 %v454, %v896
        %v898 = vpop.f32.mrb[0].mxu0
        %v899 = vadd.f32 %v458, %v898
        %900 = vmatprep.mubr.bf16.mxu0 0
        %901 = vmatmul.mubr.bf16.gmra.mrb[0].mxu0 %v584
        %v902 = vpop.f32.mrb[0].mxu0
        %v903 = vadd.f32 %v454, %v902
        %v904 = vpop.f32.mrb[0].mxu0
        %v905 = vadd.f32 %v458, %v904
        %v906 = vpop.f32.mrb[0].mxu0
        %v907 = vadd.f32 %v454, %v906
        %v908 = vpop.f32.mrb[0].mxu0
        %v909 = vadd.f32 %v458, %v908
        %910 = vmatprep.mubr.bf16.mxu0 0
        %911 = vmatmul.mubr.bf16.gmra.mrb[0].mxu0 %v587
        %v912 = vpop.f32.mrb[0].mxu0
        %v913 = vadd.f32 %v454, %v912
        %v914 = vpop.f32.mrb[0].mxu0
        %v915 = vadd.f32 %v458, %v914
        %v916 = vpop.f32.mrb[0].mxu0
        %v917 = vadd.f32 %v454, %v916
        %v918 = vpop.f32.mrb[0].mxu0
        %v919 = vadd.f32 %v458, %v918
        %920 = vmatprep.mubr.bf16.mxu0 0
        %921 = vmatmul.mubr.bf16.gmra.mrb[0].mxu0 %v590
        %v922 = vpop.f32.mrb[0].mxu0
        %v923 = vadd.f32 %v454, %v922
        %v924 = vpop.f32.mrb[0].mxu0
        %v925 = vadd.f32 %v458, %v924
        %v926 = vpop.f32.mrb[0].mxu0
        %v927 = vadd.f32 %v454, %v926
        %v928 = vpop.f32.mrb[0].mxu0
        %v929 = vadd.f32 %v458, %v928
        %930 = vmatprep.mubr.bf16.mxu0 0
        %931 = vmatmul.mubr.bf16.gmra.mrb[0].mxu0 %v593
        %v932 = vpop.f32.mrb[0].mxu0
        %v933 = vadd.f32 %v454, %v932
        %v934 = vpop.f32.mrb[0].mxu0
        %v935 = vadd.f32 %v458, %v934
        %v936 = vpop.f32.mrb[0].mxu0
        %v937 = vadd.f32 %v454, %v936
        %v938 = vpop.f32.mrb[0].mxu0
        %v939 = vadd.f32 %v458, %v938
        %940 = vmatprep.mubr.bf16.mxu0 0
        %941 = vmatmul.mubr.bf16.gmra.mrb[0].mxu0 %v596
        %v942 = vpop.f32.mrb[0].mxu0
        %v943 = vadd.f32 %v454, %v942
        %v944 = vpop.f32.mrb[0].mxu0
        %v945 = vadd.f32 %v458, %v944
        %v946 = vpop.f32.mrb[0].mxu0
        %v947 = vadd.f32 %v454, %v946
        %v948 = vpop.f32.mrb[0].mxu0
        %v949 = vadd.f32 %v458, %v948
        %950 = vdwg.mxu0
        %v951 = vmax.f32 %v633, 0.0
        %v952 = vmax.f32 %v637, 0.0
        %v953 = vmax.f32 %v643, 0.0
        %v954 = vmax.f32 %v647, 0.0
        %v955 = vmax.f32 %v653, 0.0
        %v956 = vmax.f32 %v657, 0.0
        %v957 = vmax.f32 %v663, 0.0
        %v958 = vmax.f32 %v667, 0.0
        %v959 = vmax.f32 %v673, 0.0
        %v960 = vmax.f32 %v677, 0.0
        %v961 = vmax.f32 %v683, 0.0
        %v962 = vmax.f32 %v687, 0.0
        %v963 = vmax.f32 %v693, 0.0
        %v964 = vmax.f32 %v697, 0.0
        %v965 = vmax.f32 %v703, 0.0
        %v966 = vmax.f32 %v707, 0.0
        %v967 = vmax.f32 %v713, 0.0
        %v968 = vmax.f32 %v717, 0.0
        %v969 = vmax.f32 %v723, 0.0
        %v970 = vmax.f32 %v727, 0.0
        %v971 = vmax.f32 %v733, 0.0
        %v972 = vmax.f32 %v737, 0.0
        %v973 = vmax.f32 %v743, 0.0
        %v974 = vmax.f32 %v747, 0.0
        %v975 = vmax.f32 %v753, 0.0
        %v976 = vmax.f32 %v757, 0.0
        %v977 = vmax.f32 %v763, 0.0
        %v978 = vmax.f32 %v767, 0.0
        %v979 = vmax.f32 %v773, 0.0
        %v980 = vmax.f32 %v777, 0.0
        %v981 = vmax.f32 %v783, 0.0
        %v982 = vmax.f32 %v787, 0.0
        %v983 = vmax.f32 %v793, 0.0
        %v984 = vmax.f32 %v797, 0.0
        %v985 = vmax.f32 %v803, 0.0
        %v986 = vmax.f32 %v807, 0.0
        %v987 = vmax.f32 %v813, 0.0
        %v988 = vmax.f32 %v817, 0.0
        %v989 = vmax.f32 %v823, 0.0
        %v990 = vmax.f32 %v827, 0.0
        %v991 = vmax.f32 %v833, 0.0
        %v992 = vmax.f32 %v837, 0.0
        %v993 = vmax.f32 %v843, 0.0
        %v994 = vmax.f32 %v847, 0.0
        %v995 = vmax.f32 %v853, 0.0
        %v996 = vmax.f32 %v857, 0.0
        %v997 = vmax.f32 %v863, 0.0
        %v998 = vmax.f32 %v867, 0.0
        %v999 = vmax.f32 %v873, 0.0
        %v1000 = vmax.f32 %v877, 0.0
        %v1001 = vmax.f32 %v883, 0.0
        %v1002 = vmax.f32 %v887, 0.0
        %v1003 = vmax.f32 %v893, 0.0
        %v1004 = vmax.f32 %v897, 0.0
        %v1005 = vmax.f32 %v903, 0.0
        %v1006 = vmax.f32 %v907, 0.0
        %v1007 = vmax.f32 %v913, 0.0
        %v1008 = vmax.f32 %v917, 0.0
        %v1009 = vmax.f32 %v923, 0.0
        %v1010 = vmax.f32 %v927, 0.0
        %v1011 = vmax.f32 %v933, 0.0
        %v1012 = vmax.f32 %v937, 0.0
        %v1013 = vmax.f32 %v943, 0.0
        %v1014 = vmax.f32 %v947, 0.0
        %s1015 = scalar_lea.vmem [#allocation2], 32
        %1016 = vst [vmem:[%s1015 + $0x8] sm:$0xff] %v951
        %1017 = vst [vmem:[%s1015 + $0x10] sm:$0xff] %v952
        %1018 = vst [vmem:[%s1015 + $0x28] sm:$0xff] %v953
        %1019 = vst [vmem:[%s1015 + $0x30] sm:$0xff] %v954
        %1020 = vst [vmem:[%s1015 + $0x48] sm:$0xff] %v955
        %1021 = vst [vmem:[%s1015 + $0x50] sm:$0xff] %v956
        %1022 = vst [vmem:[%s1015 + $0x68] sm:$0xff] %v957
        %1023 = vst [vmem:[%s1015 + $0x70] sm:$0xff] %v958
        %1024 = vst [vmem:[%s1015 + $0x88] sm:$0xff] %v959
        %1025 = vst [vmem:[%s1015 + $0x90] sm:$0xff] %v960
        %1026 = vst [vmem:[%s1015 + $0xa8] sm:$0xff] %v961
        %1027 = vst [vmem:[%s1015 + $0xb0] sm:$0xff] %v962
        %1028 = vst [vmem:[%s1015 + $0xc8] sm:$0xff] %v963
        %1029 = vst [vmem:[%s1015 + $0xd0] sm:$0xff] %v964
        %1030 = vst [vmem:[%s1015 + $0xe8] sm:$0xff] %v965
        %1031 = vst [vmem:[%s1015 + $0xf0] sm:$0xff] %v966
        %1032 = vst [vmem:[%s1015 + $0x108] sm:$0xff] %v967
        %1033 = vst [vmem:[%s1015 + $0x110] sm:$0xff] %v968
        %1034 = vst [vmem:[%s1015 + $0x128] sm:$0xff] %v969
        %1035 = vst [vmem:[%s1015 + $0x130] sm:$0xff] %v970
        %1036 = vst [vmem:[%s1015 + $0x148] sm:$0xff] %v971
        %1037 = vst [vmem:[%s1015 + $0x150] sm:$0xff] %v972
        %1038 = vst [vmem:[%s1015 + $0x168] sm:$0xff] %v973
        %1039 = vst [vmem:[%s1015 + $0x170] sm:$0xff] %v974
        %1040 = vst [vmem:[%s1015 + $0x188] sm:$0xff] %v975
        %1041 = vst [vmem:[%s1015 + $0x190] sm:$0xff] %v976
        %1042 = vst [vmem:[%s1015 + $0x1a8] sm:$0xff] %v977
        %1043 = vst [vmem:[%s1015 + $0x1b0] sm:$0xff] %v978
        %1044 = vst [vmem:[%s1015 + $0x1c8] sm:$0xff] %v979
        %1045 = vst [vmem:[%s1015 + $0x1d0] sm:$0xff] %v980
        %1046 = vst [vmem:[%s1015 + $0x1e8] sm:$0xff] %v981
        %1047 = vst [vmem:[%s1015 + $0x1f0] sm:$0xff] %v982
        %1048 = vst [vmem:[%s1015 + $0x248] sm:$0xff] %v983
        %1049 = vst [vmem:[%s1015 + $0x250] sm:$0xff] %v984
        %1050 = vst [vmem:[%s1015 + $0x268] sm:$0xff] %v985
        %1051 = vst [vmem:[%s1015 + $0x270] sm:$0xff] %v986
        %1052 = vst [vmem:[%s1015 + $0x288] sm:$0xff] %v987
        %1053 = vst [vmem:[%s1015 + $0x290] sm:$0xff] %v988
        %1054 = vst [vmem:[%s1015 + $0x2a8] sm:$0xff] %v989
        %1055 = vst [vmem:[%s1015 + $0x2b0] sm:$0xff] %v990
        %1056 = vst [vmem:[%s1015 + $0x2c8] sm:$0xff] %v991
        %1057 = vst [vmem:[%s1015 + $0x2d0] sm:$0xff] %v992
        %1058 = vst [vmem:[%s1015 + $0x2e8] sm:$0xff] %v993
        %1059 = vst [vmem:[%s1015 + $0x2f0] sm:$0xff] %v994
        %1060 = vst [vmem:[%s1015 + $0x308] sm:$0xff] %v995
        %1061 = vst [vmem:[%s1015 + $0x310] sm:$0xff] %v996
        %1062 = vst [vmem:[%s1015 + $0x328] sm:$0xff] %v997
        %1063 = vst [vmem:[%s1015 + $0x330] sm:$0xff] %v998
        %1064 = vst [vmem:[%s1015 + $0x348] sm:$0xff] %v999
        %1065 = vst [vmem:[%s1015 + $0x350] sm:$0xff] %v1000
        %1066 = vst [vmem:[%s1015 + $0x368] sm:$0xff] %v1001
        %1067 = vst [vmem:[%s1015 + $0x370] sm:$0xff] %v1002
        %1068 = vst [vmem:[%s1015 + $0x388] sm:$0xff] %v1003
        %1069 = vst [vmem:[%s1015 + $0x390] sm:$0xff] %v1004
        %1070 = vst [vmem:[%s1015 + $0x3a8] sm:$0xff] %v1005
        %1071 = vst [vmem:[%s1015 + $0x3b0] sm:$0xff] %v1006
        %1072 = vst [vmem:[%s1015 + $0x3c8] sm:$0xff] %v1007
        %1073 = vst [vmem:[%s1015 + $0x3d0] sm:$0xff] %v1008
        %1074 = vst [vmem:[%s1015 + $0x3e8] sm:$0xff] %v1009
        %1075 = vst [vmem:[%s1015 + $0x3f0] sm:$0xff] %v1010
        %1076 = vst [vmem:[%s1015 + $0x408] sm:$0xff] %v1011
        %1077 = vst [vmem:[%s1015 + $0x410] sm:$0xff] %v1012
        %1078 = vst [vmem:[%s1015 + $0x428] sm:$0xff] %v1013
        %1079 = vst [vmem:[%s1015 + $0x430] sm:$0xff] %v1014
        %1080 = vst [vmem:[#allocation2] sm:$0xff] 0.0
        %1081 = vst [vmem:[#allocation2 + $0x8] sm:$0xff] 0.0
        %1082 = vst [vmem:[#allocation2 + $0x10] sm:$0xff] 0.0
        %1083 = vst [vmem:[#allocation2 + $0x18] sm:$0xff] 0.0
        %1084 = vst [vmem:[#allocation2 + $0x240] sm:$0xff] 0.0
        %1085 = vst [vmem:[#allocation2 + $0x248] sm:$0xff] 0.0
        %1086 = vst [vmem:[#allocation2 + $0x250] sm:$0xff] 0.0
        %1087 = vst [vmem:[#allocation2 + $0x258] sm:$0xff] 0.0
        %s1088 = scalar_lea.vmem [#allocation2], 544
        %1089 = vst [vmem:[%s1088] sm:$0xff] 0.0
        %1090 = vst [vmem:[%s1088 + $0x8] sm:$0xff] 0.0
        %1091 = vst [vmem:[%s1088 + $0x10] sm:$0xff] 0.0
        %1092 = vst [vmem:[%s1088 + $0x18] sm:$0xff] 0.0
        %1093 = vst [vmem:[%s1088 + $0x240] sm:$0xff] 0.0
        %1094 = vst [vmem:[%s1088 + $0x248] sm:$0xff] 0.0
        %1095 = vst [vmem:[%s1088 + $0x250] sm:$0xff] 0.0
        %1096 = vst [vmem:[%s1088 + $0x258] sm:$0xff] 0.0
        %1097 = vst [vmem:[%s1015 + $0x7] sm:$0x1] 0.0
        %1098 = vst [vmem:[%s1015 + $0x27] sm:$0x1] 0.0
        %1099 = vst [vmem:[%s1015 + $0x47] sm:$0x1] 0.0
        %1100 = vst [vmem:[%s1015 + $0x67] sm:$0x1] 0.0
        %1101 = vst [vmem:[%s1015 + $0x87] sm:$0x1] 0.0
        %1102 = vst [vmem:[%s1015 + $0xa7] sm:$0x1] 0.0
        %1103 = vst [vmem:[%s1015 + $0xc7] sm:$0x1] 0.0
        %1104 = vst [vmem:[%s1015 + $0xe7] sm:$0x1] 0.0
        %1105 = vst [vmem:[%s1015 + $0x107] sm:$0x1] 0.0
        %1106 = vst [vmem:[%s1015 + $0x127] sm:$0x1] 0.0
        %1107 = vst [vmem:[%s1015 + $0x147] sm:$0x1] 0.0
        %1108 = vst [vmem:[%s1015 + $0x167] sm:$0x1] 0.0
        %1109 = vst [vmem:[%s1015 + $0x187] sm:$0x1] 0.0
        %1110 = vst [vmem:[%s1015 + $0x1a7] sm:$0x1] 0.0
        %1111 = vst [vmem:[%s1015 + $0x1c7] sm:$0x1] 0.0
        %1112 = vst [vmem:[%s1015 + $0x1e7] sm:$0x1] 0.0
        %1113 = vst [vmem:[%s1015 + $0x247] sm:$0x1] 0.0
        %1114 = vst [vmem:[%s1015 + $0x267] sm:$0x1] 0.0
        %1115 = vst [vmem:[%s1015 + $0x287] sm:$0x1] 0.0
        %1116 = vst [vmem:[%s1015 + $0x2a7] sm:$0x1] 0.0
        %1117 = vst [vmem:[%s1015 + $0x2c7] sm:$0x1] 0.0
        %1118 = vst [vmem:[%s1015 + $0x2e7] sm:$0x1] 0.0
        %1119 = vst [vmem:[%s1015 + $0x307] sm:$0x1] 0.0
        %1120 = vst [vmem:[%s1015 + $0x327] sm:$0x1] 0.0
        %1121 = vst [vmem:[%s1015 + $0x347] sm:$0x1] 0.0
        %1122 = vst [vmem:[%s1015 + $0x367] sm:$0x1] 0.0
        %1123 = vst [vmem:[%s1015 + $0x387] sm:$0x1] 0.0
        %1124 = vst [vmem:[%s1015 + $0x3a7] sm:$0x1] 0.0
        %1125 = vst [vmem:[%s1015 + $0x3c7] sm:$0x1] 0.0
        %1126 = vst [vmem:[%s1015 + $0x3e7] sm:$0x1] 0.0
        %1127 = vst [vmem:[%s1015 + $0x407] sm:$0x1] 0.0
        %1128 = vst [vmem:[%s1015 + $0x427] sm:$0x1] 0.0
        %1129 = vst [vmem:[%s1015 + $0x18] sm:$0x1] 0.0
        %1130 = vst [vmem:[%s1015 + $0x38] sm:$0x1] 0.0
        %1131 = vst [vmem:[%s1015 + $0x58] sm:$0x1] 0.0
        %1132 = vst [vmem:[%s1015 + $0x78] sm:$0x1] 0.0
        %1133 = vst [vmem:[%s1015 + $0x98] sm:$0x1] 0.0
        %1134 = vst [vmem:[%s1015 + $0xb8] sm:$0x1] 0.0
        %1135 = vst [vmem:[%s1015 + $0xd8] sm:$0x1] 0.0
        %1136 = vst [vmem:[%s1015 + $0xf8] sm:$0x1] 0.0
        %1137 = vst [vmem:[%s1015 + $0x118] sm:$0x1] 0.0
        %1138 = vst [vmem:[%s1015 + $0x138] sm:$0x1] 0.0
        %1139 = vst [vmem:[%s1015 + $0x158] sm:$0x1] 0.0
        %1140 = vst [vmem:[%s1015 + $0x178] sm:$0x1] 0.0
        %1141 = vst [vmem:[%s1015 + $0x198] sm:$0x1] 0.0
        %1142 = vst [vmem:[%s1015 + $0x1b8] sm:$0x1] 0.0
        %1143 = vst [vmem:[%s1015 + $0x1d8] sm:$0x1] 0.0
        %1144 = vst [vmem:[%s1015 + $0x1f8] sm:$0x1] 0.0
        %1145 = vst [vmem:[%s1015 + $0x258] sm:$0x1] 0.0
        %1146 = vst [vmem:[%s1015 + $0x278] sm:$0x1] 0.0
        %1147 = vst [vmem:[%s1015 + $0x298] sm:$0x1] 0.0
        %1148 = vst [vmem:[%s1015 + $0x2b8] sm:$0x1] 0.0
        %1149 = vst [vmem:[%s1015 + $0x2d8] sm:$0x1] 0.0
        %1150 = vst [vmem:[%s1015 + $0x2f8] sm:$0x1] 0.0
        %1151 = vst [vmem:[%s1015 + $0x318] sm:$0x1] 0.0
        %1152 = vst [vmem:[%s1015 + $0x338] sm:$0x1] 0.0
        %1153 = vst [vmem:[%s1015 + $0x358] sm:$0x1] 0.0
        %1154 = vst [vmem:[%s1015 + $0x378] sm:$0x1] 0.0
        %1155 = vst [vmem:[%s1015 + $0x398] sm:$0x1] 0.0
        %1156 = vst [vmem:[%s1015 + $0x3b8] sm:$0x1] 0.0
        %1157 = vst [vmem:[%s1015 + $0x3d8] sm:$0x1] 0.0
        %1158 = vst [vmem:[%s1015 + $0x3f8] sm:$0x1] 0.0
        %1159 = vst [vmem:[%s1015 + $0x418] sm:$0x1] 0.0
        %1160 = vst [vmem:[%s1015 + $0x438] sm:$0x1] 0.0
        %v1161 = vld [vmem:[#allocation2 + $0x7] sm:$0xff]
        %v1162 = vld [vmem:[#allocation2 + $0xf] sm:$0xff]
        %v1163 = vld [vmem:[#allocation2 + $0x27] sm:$0xff]
        %v1164 = vld [vmem:[#allocation2 + $0x2f] sm:$0xff]
        %v1165 = vld [vmem:[#allocation2 + $0x47] sm:$0xff]
        %v1166 = vld [vmem:[#allocation2 + $0x4f] sm:$0xff]
        %v1167 = vld [vmem:[#allocation2 + $0x67] sm:$0xff]
        %v1168 = vld [vmem:[#allocation2 + $0x6f] sm:$0xff]
        %v1169 = vld [vmem:[#allocation2 + $0x87] sm:$0xff]
        %v1170 = vld [vmem:[#allocation2 + $0x8f] sm:$0xff]
        %v1171 = vld [vmem:[#allocation2 + $0xa7] sm:$0xff]
        %v1172 = vld [vmem:[#allocation2 + $0xaf] sm:$0xff]
        %v1173 = vld [vmem:[#allocation2 + $0xc7] sm:$0xff]
        %v1174 = vld [vmem:[#allocation2 + $0xcf] sm:$0xff]
        %v1175 = vld [vmem:[#allocation2 + $0xe7] sm:$0xff]
        %v1176 = vld [vmem:[#allocation2 + $0xef] sm:$0xff]
        %v1177 = vld [vmem:[#allocation2 + $0x107] sm:$0xff]
        %v1178 = vld [vmem:[#allocation2 + $0x10f] sm:$0xff]
        %v1179 = vld [vmem:[#allocation2 + $0x127] sm:$0xff]
        %v1180 = vld [vmem:[#allocation2 + $0x12f] sm:$0xff]
        %v1181 = vld [vmem:[#allocation2 + $0x147] sm:$0xff]
        %v1182 = vld [vmem:[#allocation2 + $0x14f] sm:$0xff]
        %v1183 = vld [vmem:[#allocation2 + $0x167] sm:$0xff]
        %v1184 = vld [vmem:[#allocation2 + $0x16f] sm:$0xff]
        %v1185 = vld [vmem:[#allocation2 + $0x187] sm:$0xff]
        %v1186 = vld [vmem:[#allocation2 + $0x18f] sm:$0xff]
        %v1187 = vld [vmem:[#allocation2 + $0x1a7] sm:$0xff]
        %v1188 = vld [vmem:[#allocation2 + $0x1af] sm:$0xff]
        %v1189 = vld [vmem:[#allocation2 + $0x1c7] sm:$0xff]
        %v1190 = vld [vmem:[#allocation2 + $0x1cf] sm:$0xff]
        %v1191 = vld [vmem:[#allocation2 + $0x1e7] sm:$0xff]
        %v1192 = vld [vmem:[#allocation2 + $0x1ef] sm:$0xff]
        %v1193 = vld [vmem:[#allocation2 + $0x247] sm:$0xff]
        %v1194 = vld [vmem:[#allocation2 + $0x24f] sm:$0xff]
        %v1195 = vld [vmem:[#allocation2 + $0x267] sm:$0xff]
        %v1196 = vld [vmem:[#allocation2 + $0x26f] sm:$0xff]
        %v1197 = vld [vmem:[#allocation2 + $0x287] sm:$0xff]
        %v1198 = vld [vmem:[#allocation2 + $0x28f] sm:$0xff]
        %v1199 = vld [vmem:[#allocation2 + $0x2a7] sm:$0xff]
        %v1200 = vld [vmem:[#allocation2 + $0x2af] sm:$0xff]
        %v1201 = vld [vmem:[#allocation2 + $0x2c7] sm:$0xff]
        %v1202 = vld [vmem:[#allocation2 + $0x2cf] sm:$0xff]
        %v1203 = vld [vmem:[#allocation2 + $0x2e7] sm:$0xff]
        %v1204 = vld [vmem:[#allocation2 + $0x2ef] sm:$0xff]
        %v1205 = vld [vmem:[#allocation2 + $0x307] sm:$0xff]
        %v1206 = vld [vmem:[#allocation2 + $0x30f] sm:$0xff]
        %v1207 = vld [vmem:[#allocation2 + $0x327] sm:$0xff]
        %v1208 = vld [vmem:[#allocation2 + $0x32f] sm:$0xff]
        %v1209 = vld [vmem:[#allocation2 + $0x347] sm:$0xff]
        %v1210 = vld [vmem:[#allocation2 + $0x34f] sm:$0xff]
        %v1211 = vld [vmem:[#allocation2 + $0x367] sm:$0xff]
        %v1212 = vld [vmem:[#allocation2 + $0x36f] sm:$0xff]
        %v1213 = vld [vmem:[#allocation2 + $0x387] sm:$0xff]
        %v1214 = vld [vmem:[#allocation2 + $0x38f] sm:$0xff]
        %v1215 = vld [vmem:[#allocation2 + $0x3a7] sm:$0xff]
        %v1216 = vld [vmem:[#allocation2 + $0x3af] sm:$0xff]
        %v1217 = vld [vmem:[#allocation2 + $0x3c7] sm:$0xff]
        %v1218 = vld [vmem:[#allocation2 + $0x3cf] sm:$0xff]
        %v1219 = vld [vmem:[#allocation2 + $0x3e7] sm:$0xff]
        %v1220 = vld [vmem:[#allocation2 + $0x3ef] sm:$0xff]
        %v1221 = vld [vmem:[#allocation2 + $0x407] sm:$0xff]
        %v1222 = vld [vmem:[#allocation2 + $0x40f] sm:$0xff]
        %v1223 = vld [vmem:[#allocation2 + $0x427] sm:$0xff]
        %v1224 = vld [vmem:[#allocation2 + $0x42f] sm:$0xff]
        %v1225 = vld [vmem:[#allocation8] sm:$0x1]
        %v1226 = vlaneseq
        %v1227 = vshrl.u32 %v1226, 7
        %v1228 = vsub.s32 0, %v1227
        %v1229 = vrot.slane %v1225, %v1228
        %v1230 = vmul.f32 %v1161, %v1229
        %v1231 = vmul.f32 %v1162, %v1229
        %v1232 = vmul.f32 %v1163, %v1229
        %v1233 = vmul.f32 %v1164, %v1229
        %v1234 = vmul.f32 %v1165, %v1229
        %v1235 = vmul.f32 %v1166, %v1229
        %v1236 = vmul.f32 %v1167, %v1229
        %v1237 = vmul.f32 %v1168, %v1229
        %v1238 = vmul.f32 %v1169, %v1229
        %v1239 = vmul.f32 %v1170, %v1229
        %v1240 = vmul.f32 %v1171, %v1229
        %v1241 = vmul.f32 %v1172, %v1229
        %v1242 = vmul.f32 %v1173, %v1229
        %v1243 = vmul.f32 %v1174, %v1229
        %v1244 = vmul.f32 %v1175, %v1229
        %v1245 = vmul.f32 %v1176, %v1229
        %v1246 = vmul.f32 %v1177, %v1229
        %v1247 = vmul.f32 %v1178, %v1229
        %v1248 = vmul.f32 %v1179, %v1229
        %v1249 = vmul.f32 %v1180, %v1229
        %v1250 = vmul.f32 %v1181, %v1229
        %v1251 = vmul.f32 %v1182, %v1229
        %v1252 = vmul.f32 %v1183, %v1229
        %v1253 = vmul.f32 %v1184, %v1229
        %v1254 = vmul.f32 %v1185, %v1229
        %v1255 = vmul.f32 %v1186, %v1229
        %v1256 = vmul.f32 %v1187, %v1229
        %v1257 = vmul.f32 %v1188, %v1229
        %v1258 = vmul.f32 %v1189, %v1229
        %v1259 = vmul.f32 %v1190, %v1229
        %v1260 = vmul.f32 %v1191, %v1229
        %v1261 = vmul.f32 %v1192, %v1229
        %v1262 = vmul.f32 %v1193, %v1229
        %v1263 = vmul.f32 %v1194, %v1229
        %v1264 = vmul.f32 %v1195, %v1229
        %v1265 = vmul.f32 %v1196, %v1229
        %v1266 = vmul.f32 %v1197, %v1229
        %v1267 = vmul.f32 %v1198, %v1229
        %v1268 = vmul.f32 %v1199, %v1229
        %v1269 = vmul.f32 %v1200, %v1229
        %v1270 = vmul.f32 %v1201, %v1229
        %v1271 = vmul.f32 %v1202, %v1229
        %v1272 = vmul.f32 %v1203, %v1229
        %v1273 = vmul.f32 %v1204, %v1229
        %v1274 = vmul.f32 %v1205, %v1229
        %v1275 = vmul.f32 %v1206, %v1229
        %v1276 = vmul.f32 %v1207, %v1229
        %v1277 = vmul.f32 %v1208, %v1229
        %v1278 = vmul.f32 %v1209, %v1229
        %v1279 = vmul.f32 %v1210, %v1229
        %v1280 = vmul.f32 %v1211, %v1229
        %v1281 = vmul.f32 %v1212, %v1229
        %v1282 = vmul.f32 %v1213, %v1229
        %v1283 = vmul.f32 %v1214, %v1229
        %v1284 = vmul.f32 %v1215, %v1229
        %v1285 = vmul.f32 %v1216, %v1229
        %v1286 = vmul.f32 %v1217, %v1229
        %v1287 = vmul.f32 %v1218, %v1229
        %v1288 = vmul.f32 %v1219, %v1229
        %v1289 = vmul.f32 %v1220, %v1229
        %v1290 = vmul.f32 %v1221, %v1229
        %v1291 = vmul.f32 %v1222, %v1229
        %v1292 = vmul.f32 %v1223, %v1229
        %v1293 = vmul.f32 %v1224, %v1229
        %v1294 = vld [vmem:[#allocation2 + $0x8] sm:$0xff]
        %v1295 = vld [vmem:[#allocation2 + $0x10] sm:$0xff]
        %v1296 = vld [vmem:[#allocation2 + $0x28] sm:$0xff]
        %v1297 = vld [vmem:[#allocation2 + $0x30] sm:$0xff]
        %v1298 = vld [vmem:[#allocation2 + $0x48] sm:$0xff]
        %v1299 = vld [vmem:[#allocation2 + $0x50] sm:$0xff]
        %v1300 = vld [vmem:[#allocation2 + $0x68] sm:$0xff]
        %v1301 = vld [vmem:[#allocation2 + $0x70] sm:$0xff]
        %v1302 = vld [vmem:[#allocation2 + $0x88] sm:$0xff]
        %v1303 = vld [vmem:[#allocation2 + $0x90] sm:$0xff]
        %v1304 = vld [vmem:[#allocation2 + $0xa8] sm:$0xff]
        %v1305 = vld [vmem:[#allocation2 + $0xb0] sm:$0xff]
        %v1306 = vld [vmem:[#allocation2 + $0xc8] sm:$0xff]
        %v1307 = vld [vmem:[#allocation2 + $0xd0] sm:$0xff]
        %v1308 = vld [vmem:[#allocation2 + $0xe8] sm:$0xff]
        %v1309 = vld [vmem:[#allocation2 + $0xf0] sm:$0xff]
        %v1310 = vld [vmem:[#allocation2 + $0x108] sm:$0xff]
        %v1311 = vld [vmem:[#allocation2 + $0x110] sm:$0xff]
        %v1312 = vld [vmem:[#allocation2 + $0x128] sm:$0xff]
        %v1313 = vld [vmem:[#allocation2 + $0x130] sm:$0xff]
        %v1314 = vld [vmem:[#allocation2 + $0x148] sm:$0xff]
        %v1315 = vld [vmem:[#allocation2 + $0x150] sm:$0xff]
        %v1316 = vld [vmem:[#allocation2 + $0x168] sm:$0xff]
        %v1317 = vld [vmem:[#allocation2 + $0x170] sm:$0xff]
        %v1318 = vld [vmem:[#allocation2 + $0x188] sm:$0xff]
        %v1319 = vld [vmem:[#allocation2 + $0x190] sm:$0xff]
        %v1320 = vld [vmem:[#allocation2 + $0x1a8] sm:$0xff]
        %v1321 = vld [vmem:[#allocation2 + $0x1b0] sm:$0xff]
        %v1322 = vld [vmem:[#allocation2 + $0x1c8] sm:$0xff]
        %v1323 = vld [vmem:[#allocation2 + $0x1d0] sm:$0xff]
        %v1324 = vld [vmem:[#allocation2 + $0x1e8] sm:$0xff]
        %v1325 = vld [vmem:[#allocation2 + $0x1f0] sm:$0xff]
        %v1326 = vld [vmem:[#allocation2 + $0x248] sm:$0xff]
        %v1327 = vld [vmem:[#allocation2 + $0x250] sm:$0xff]
        %v1328 = vld [vmem:[#allocation2 + $0x268] sm:$0xff]
        %v1329 = vld [vmem:[#allocation2 + $0x270] sm:$0xff]
        %v1330 = vld [vmem:[#allocation2 + $0x288] sm:$0xff]
        %v1331 = vld [vmem:[#allocation2 + $0x290] sm:$0xff]
        %v1332 = vld [vmem:[#allocation2 + $0x2a8] sm:$0xff]
        %v1333 = vld [vmem:[#allocation2 + $0x2b0] sm:$0xff]
        %v1334 = vld [vmem:[#allocation2 + $0x2c8] sm:$0xff]
        %v1335 = vld [vmem:[#allocation2 + $0x2d0] sm:$0xff]
        %v1336 = vld [vmem:[#allocation2 + $0x2e8] sm:$0xff]
        %v1337 = vld [vmem:[#allocation2 + $0x2f0] sm:$0xff]
        %v1338 = vld [vmem:[#allocation2 + $0x308] sm:$0xff]
        %v1339 = vld [vmem:[#allocation2 + $0x310] sm:$0xff]
        %v1340 = vld [vmem:[#allocation2 + $0x328] sm:$0xff]
        %v1341 = vld [vmem:[#allocation2 + $0x330] sm:$0xff]
        %v1342 = vld [vmem:[#allocation2 + $0x348] sm:$0xff]
        %v1343 = vld [vmem:[#allocation2 + $0x350] sm:$0xff]
        %v1344 = vld [vmem:[#allocation2 + $0x368] sm:$0xff]
        %v1345 = vld [vmem:[#allocation2 + $0x370] sm:$0xff]
        %v1346 = vld [vmem:[#allocation2 + $0x388] sm:$0xff]
        %v1347 = vld [vmem:[#allocation2 + $0x390] sm:$0xff]
        %v1348 = vld [vmem:[#allocation2 + $0x3a8] sm:$0xff]
        %v1349 = vld [vmem:[#allocation2 + $0x3b0] sm:$0xff]
        %v1350 = vld [vmem:[#allocation2 + $0x3c8] sm:$0xff]
        %v1351 = vld [vmem:[#allocation2 + $0x3d0] sm:$0xff]
        %v1352 = vld [vmem:[#allocation2 + $0x3e8] sm:$0xff]
        %v1353 = vld [vmem:[#allocation2 + $0x3f0] sm:$0xff]
        %v1354 = vld [vmem:[#allocation2 + $0x408] sm:$0xff]
        %v1355 = vld [vmem:[#allocation2 + $0x410] sm:$0xff]
        %v1356 = vld [vmem:[#allocation2 + $0x428] sm:$0xff]
        %v1357 = vld [vmem:[#allocation2 + $0x430] sm:$0xff]
        %v1358 = vld [vmem:[#allocation8 + $0x1] sm:$0x1]
        %v1359 = vlaneseq
        %v1360 = vshrl.u32 %v1359, 7
        %v1361 = vsub.s32 0, %v1360
        %v1362 = vrot.slane %v1358, %v1361
        %v1363 = vmul.f32 %v1294, %v1362
        %v1364 = vmul.f32 %v1295, %v1362
        %v1365 = vmul.f32 %v1296, %v1362
        %v1366 = vmul.f32 %v1297, %v1362
        %v1367 = vmul.f32 %v1298, %v1362
        %v1368 = vmul.f32 %v1299, %v1362
        %v1369 = vmul.f32 %v1300, %v1362
        %v1370 = vmul.f32 %v1301, %v1362
        %v1371 = vmul.f32 %v1302, %v1362
        %v1372 = vmul.f32 %v1303, %v1362
        %v1373 = vmul.f32 %v1304, %v1362
        %v1374 = vmul.f32 %v1305, %v1362
        %v1375 = vmul.f32 %v1306, %v1362
        %v1376 = vmul.f32 %v1307, %v1362
        %v1377 = vmul.f32 %v1308, %v1362
        %v1378 = vmul.f32 %v1309, %v1362
        %v1379 = vmul.f32 %v1310, %v1362
        %v1380 = vmul.f32 %v1311, %v1362
        %v1381 = vmul.f32 %v1312, %v1362
        %v1382 = vmul.f32 %v1313, %v1362
        %v1383 = vmul.f32 %v1314, %v1362
        %v1384 = vmul.f32 %v1315, %v1362
        %v1385 = vmul.f32 %v1316, %v1362
        %v1386 = vmul.f32 %v1317, %v1362
        %v1387 = vmul.f32 %v1318, %v1362
        %v1388 = vmul.f32 %v1319, %v1362
        %v1389 = vmul.f32 %v1320, %v1362
        %v1390 = vmul.f32 %v1321, %v1362
        %v1391 = vmul.f32 %v1322, %v1362
        %v1392 = vmul.f32 %v1323, %v1362
        %v1393 = vmul.f32 %v1324, %v1362
        %v1394 = vmul.f32 %v1325, %v1362
        %v1395 = vmul.f32 %v1326, %v1362
        %v1396 = vmul.f32 %v1327, %v1362
        %v1397 = vmul.f32 %v1328, %v1362
        %v1398 = vmul.f32 %v1329, %v1362
        %v1399 = vmul.f32 %v1330, %v1362
        %v1400 = vmul.f32 %v1331, %v1362
        %v1401 = vmul.f32 %v1332, %v1362
        %v1402 = vmul.f32 %v1333, %v1362
        %v1403 = vmul.f32 %v1334, %v1362
        %v1404 = vmul.f32 %v1335, %v1362
        %v1405 = vmul.f32 %v1336, %v1362
        %v1406 = vmul.f32 %v1337, %v1362
        %v1407 = vmul.f32 %v1338, %v1362
        %v1408 = vmul.f32 %v1339, %v1362
        %v1409 = vmul.f32 %v1340, %v1362
        %v1410 = vmul.f32 %v1341, %v1362
        %v1411 = vmul.f32 %v1342, %v1362
        %v1412 = vmul.f32 %v1343, %v1362
        %v1413 = vmul.f32 %v1344, %v1362
        %v1414 = vmul.f32 %v1345, %v1362
        %v1415 = vmul.f32 %v1346, %v1362
        %v1416 = vmul.f32 %v1347, %v1362
        %v1417 = vmul.f32 %v1348, %v1362
        %v1418 = vmul.f32 %v1349, %v1362
        %v1419 = vmul.f32 %v1350, %v1362
        %v1420 = vmul.f32 %v1351, %v1362
        %v1421 = vmul.f32 %v1352, %v1362
        %v1422 = vmul.f32 %v1353, %v1362
        %v1423 = vmul.f32 %v1354, %v1362
        %v1424 = vmul.f32 %v1355, %v1362
        %v1425 = vmul.f32 %v1356, %v1362
        %v1426 = vmul.f32 %v1357, %v1362
        %v1427 = vadd.f32 %v1230, %v1363
        %v1428 = vadd.f32 %v1231, %v1364
        %v1429 = vadd.f32 %v1232, %v1365
        %v1430 = vadd.f32 %v1233, %v1366
        %v1431 = vadd.f32 %v1234, %v1367
        %v1432 = vadd.f32 %v1235, %v1368
        %v1433 = vadd.f32 %v1236, %v1369
        %v1434 = vadd.f32 %v1237, %v1370
        %v1435 = vadd.f32 %v1238, %v1371
        %v1436 = vadd.f32 %v1239, %v1372
        %v1437 = vadd.f32 %v1240, %v1373
        %v1438 = vadd.f32 %v1241, %v1374
        %v1439 = vadd.f32 %v1242, %v1375
        %v1440 = vadd.f32 %v1243, %v1376
        %v1441 = vadd.f32 %v1244, %v1377
        %v1442 = vadd.f32 %v1245, %v1378
        %v1443 = vadd.f32 %v1246, %v1379
        %v1444 = vadd.f32 %v1247, %v1380
        %v1445 = vadd.f32 %v1248, %v1381
        %v1446 = vadd.f32 %v1249, %v1382
        %v1447 = vadd.f32 %v1250, %v1383
        %v1448 = vadd.f32 %v1251, %v1384
        %v1449 = vadd.f32 %v1252, %v1385
        %v1450 = vadd.f32 %v1253, %v1386
        %v1451 = vadd.f32 %v1254, %v1387
        %v1452 = vadd.f32 %v1255, %v1388
        %v1453 = vadd.f32 %v1256, %v1389
        %v1454 = vadd.f32 %v1257, %v1390
        %v1455 = vadd.f32 %v1258, %v1391
        %v1456 = vadd.f32 %v1259, %v1392
        %v1457 = vadd.f32 %v1260, %v1393
        %v1458 = vadd.f32 %v1261, %v1394
        %v1459 = vadd.f32 %v1262, %v1395
        %v1460 = vadd.f32 %v1263, %v1396
        %v1461 = vadd.f32 %v1264, %v1397
        %v1462 = vadd.f32 %v1265, %v1398
        %v1463 = vadd.f32 %v1266, %v1399
        %v1464 = vadd.f32 %v1267, %v1400
        %v1465 = vadd.f32 %v1268, %v1401
        %v1466 = vadd.f32 %v1269, %v1402
        %v1467 = vadd.f32 %v1270, %v1403
        %v1468 = vadd.f32 %v1271, %v1404
        %v1469 = vadd.f32 %v1272, %v1405
        %v1470 = vadd.f32 %v1273, %v1406
        %v1471 = vadd.f32 %v1274, %v1407
        %v1472 = vadd.f32 %v1275, %v1408
        %v1473 = vadd.f32 %v1276, %v1409
        %v1474 = vadd.f32 %v1277, %v1410
        %v1475 = vadd.f32 %v1278, %v1411
        %v1476 = vadd.f32 %v1279, %v1412
        %v1477 = vadd.f32 %v1280, %v1413
        %v1478 = vadd.f32 %v1281, %v1414
        %v1479 = vadd.f32 %v1282, %v1415
        %v1480 = vadd.f32 %v1283, %v1416
        %v1481 = vadd.f32 %v1284, %v1417
        %v1482 = vadd.f32 %v1285, %v1418
        %v1483 = vadd.f32 %v1286, %v1419
        %v1484 = vadd.f32 %v1287, %v1420
        %v1485 = vadd.f32 %v1288, %v1421
        %v1486 = vadd.f32 %v1289, %v1422
        %v1487 = vadd.f32 %v1290, %v1423
        %v1488 = vadd.f32 %v1291, %v1424
        %v1489 = vadd.f32 %v1292, %v1425
        %v1490 = vadd.f32 %v1293, %v1426
        %v1491 = vld [vmem:[#allocation2 + $0x9] sm:$0xff]
        %v1492 = vld [vmem:[#allocation2 + $0x11] sm:$0xff]
        %v1493 = vld [vmem:[#allocation2 + $0x29] sm:$0xff]
        %v1494 = vld [vmem:[#allocation2 + $0x31] sm:$0xff]
        %v1495 = vld [vmem:[#allocation2 + $0x49] sm:$0xff]
        %v1496 = vld [vmem:[#allocation2 + $0x51] sm:$0xff]
        %v1497 = vld [vmem:[#allocation2 + $0x69] sm:$0xff]
        %v1498 = vld [vmem:[#allocation2 + $0x71] sm:$0xff]
        %v1499 = vld [vmem:[#allocation2 + $0x89] sm:$0xff]
        %v1500 = vld [vmem:[#allocation2 + $0x91] sm:$0xff]
        %v1501 = vld [vmem:[#allocation2 + $0xa9] sm:$0xff]
        %v1502 = vld [vmem:[#allocation2 + $0xb1] sm:$0xff]
        %v1503 = vld [vmem:[#allocation2 + $0xc9] sm:$0xff]
        %v1504 = vld [vmem:[#allocation2 + $0xd1] sm:$0xff]
        %v1505 = vld [vmem:[#allocation2 + $0xe9] sm:$0xff]
        %v1506 = vld [vmem:[#allocation2 + $0xf1] sm:$0xff]
        %v1507 = vld [vmem:[#allocation2 + $0x109] sm:$0xff]
        %v1508 = vld [vmem:[#allocation2 + $0x111] sm:$0xff]
        %v1509 = vld [vmem:[#allocation2 + $0x129] sm:$0xff]
        %v1510 = vld [vmem:[#allocation2 + $0x131] sm:$0xff]
        %v1511 = vld [vmem:[#allocation2 + $0x149] sm:$0xff]
        %v1512 = vld [vmem:[#allocation2 + $0x151] sm:$0xff]
        %v1513 = vld [vmem:[#allocation2 + $0x169] sm:$0xff]
        %v1514 = vld [vmem:[#allocation2 + $0x171] sm:$0xff]
        %v1515 = vld [vmem:[#allocation2 + $0x189] sm:$0xff]
        %v1516 = vld [vmem:[#allocation2 + $0x191] sm:$0xff]
        %v1517 = vld [vmem:[#allocation2 + $0x1a9] sm:$0xff]
        %v1518 = vld [vmem:[#allocation2 + $0x1b1] sm:$0xff]
        %v1519 = vld [vmem:[#allocation2 + $0x1c9] sm:$0xff]
        %v1520 = vld [vmem:[#allocation2 + $0x1d1] sm:$0xff]
        %v1521 = vld [vmem:[#allocation2 + $0x1e9] sm:$0xff]
        %v1522 = vld [vmem:[#allocation2 + $0x1f1] sm:$0xff]
        %v1523 = vld [vmem:[#allocation2 + $0x249] sm:$0xff]
        %v1524 = vld [vmem:[#allocation2 + $0x251] sm:$0xff]
        %v1525 = vld [vmem:[#allocation2 + $0x269] sm:$0xff]
        %v1526 = vld [vmem:[#allocation2 + $0x271] sm:$0xff]
        %v1527 = vld [vmem:[#allocation2 + $0x289] sm:$0xff]
        %v1528 = vld [vmem:[#allocation2 + $0x291] sm:$0xff]
        %v1529 = vld [vmem:[#allocation2 + $0x2a9] sm:$0xff]
        %v1530 = vld [vmem:[#allocation2 + $0x2b1] sm:$0xff]
        %v1531 = vld [vmem:[#allocation2 + $0x2c9] sm:$0xff]
        %v1532 = vld [vmem:[#allocation2 + $0x2d1] sm:$0xff]
        %v1533 = vld [vmem:[#allocation2 + $0x2e9] sm:$0xff]
        %v1534 = vld [vmem:[#allocation2 + $0x2f1] sm:$0xff]
        %v1535 = vld [vmem:[#allocation2 + $0x309] sm:$0xff]
        %v1536 = vld [vmem:[#allocation2 + $0x311] sm:$0xff]
        %v1537 = vld [vmem:[#allocation2 + $0x329] sm:$0xff]
        %v1538 = vld [vmem:[#allocation2 + $0x331] sm:$0xff]
        %v1539 = vld [vmem:[#allocation2 + $0x349] sm:$0xff]
        %v1540 = vld [vmem:[#allocation2 + $0x351] sm:$0xff]
        %v1541 = vld [vmem:[#allocation2 + $0x369] sm:$0xff]
        %v1542 = vld [vmem:[#allocation2 + $0x371] sm:$0xff]
        %v1543 = vld [vmem:[#allocation2 + $0x389] sm:$0xff]
        %v1544 = vld [vmem:[#allocation2 + $0x391] sm:$0xff]
        %v1545 = vld [vmem:[#allocation2 + $0x3a9] sm:$0xff]
        %v1546 = vld [vmem:[#allocation2 + $0x3b1] sm:$0xff]
        %v1547 = vld [vmem:[#allocation2 + $0x3c9] sm:$0xff]
        %v1548 = vld [vmem:[#allocation2 + $0x3d1] sm:$0xff]
        %v1549 = vld [vmem:[#allocation2 + $0x3e9] sm:$0xff]
        %v1550 = vld [vmem:[#allocation2 + $0x3f1] sm:$0xff]
        %v1551 = vld [vmem:[#allocation2 + $0x409] sm:$0xff]
        %v1552 = vld [vmem:[#allocation2 + $0x411] sm:$0xff]
        %v1553 = vld [vmem:[#allocation2 + $0x429] sm:$0xff]
        %v1554 = vld [vmem:[#allocation2 + $0x431] sm:$0xff]
        %v1555 = vld [vmem:[#allocation8 + $0x2] sm:$0x1]
        %v1556 = vlaneseq
        %v1557 = vshrl.u32 %v1556, 7
        %v1558 = vsub.s32 0, %v1557
        %v1559 = vrot.slane %v1555, %v1558
        %v1560 = vmul.f32 %v1491, %v1559
        %v1561 = vmul.f32 %v1492, %v1559
        %v1562 = vmul.f32 %v1493, %v1559
        %v1563 = vmul.f32 %v1494, %v1559
        %v1564 = vmul.f32 %v1495, %v1559
        %v1565 = vmul.f32 %v1496, %v1559
        %v1566 = vmul.f32 %v1497, %v1559
        %v1567 = vmul.f32 %v1498, %v1559
        %v1568 = vmul.f32 %v1499, %v1559
        %v1569 = vmul.f32 %v1500, %v1559
        %v1570 = vmul.f32 %v1501, %v1559
        %v1571 = vmul.f32 %v1502, %v1559
        %v1572 = vmul.f32 %v1503, %v1559
        %v1573 = vmul.f32 %v1504, %v1559
        %v1574 = vmul.f32 %v1505, %v1559
        %v1575 = vmul.f32 %v1506, %v1559
        %v1576 = vmul.f32 %v1507, %v1559
        %v1577 = vmul.f32 %v1508, %v1559
        %v1578 = vmul.f32 %v1509, %v1559
        %v1579 = vmul.f32 %v1510, %v1559
        %v1580 = vmul.f32 %v1511, %v1559
        %v1581 = vmul.f32 %v1512, %v1559
        %v1582 = vmul.f32 %v1513, %v1559
        %v1583 = vmul.f32 %v1514, %v1559
        %v1584 = vmul.f32 %v1515, %v1559
        %v1585 = vmul.f32 %v1516, %v1559
        %v1586 = vmul.f32 %v1517, %v1559
        %v1587 = vmul.f32 %v1518, %v1559
        %v1588 = vmul.f32 %v1519, %v1559
        %v1589 = vmul.f32 %v1520, %v1559
        %v1590 = vmul.f32 %v1521, %v1559
        %v1591 = vmul.f32 %v1522, %v1559
        %v1592 = vmul.f32 %v1523, %v1559
        %v1593 = vmul.f32 %v1524, %v1559
        %v1594 = vmul.f32 %v1525, %v1559
        %v1595 = vmul.f32 %v1526, %v1559
        %v1596 = vmul.f32 %v1527, %v1559
        %v1597 = vmul.f32 %v1528, %v1559
        %v1598 = vmul.f32 %v1529, %v1559
        %v1599 = vmul.f32 %v1530, %v1559
        %v1600 = vmul.f32 %v1531, %v1559
        %v1601 = vmul.f32 %v1532, %v1559
        %v1602 = vmul.f32 %v1533, %v1559
        %v1603 = vmul.f32 %v1534, %v1559
        %v1604 = vmul.f32 %v1535, %v1559
        %v1605 = vmul.f32 %v1536, %v1559
        %v1606 = vmul.f32 %v1537, %v1559
        %v1607 = vmul.f32 %v1538, %v1559
        %v1608 = vmul.f32 %v1539, %v1559
        %v1609 = vmul.f32 %v1540, %v1559
        %v1610 = vmul.f32 %v1541, %v1559
        %v1611 = vmul.f32 %v1542, %v1559
        %v1612 = vmul.f32 %v1543, %v1559
        %v1613 = vmul.f32 %v1544, %v1559
        %v1614 = vmul.f32 %v1545, %v1559
        %v1615 = vmul.f32 %v1546, %v1559
        %v1616 = vmul.f32 %v1547, %v1559
        %v1617 = vmul.f32 %v1548, %v1559
        %v1618 = vmul.f32 %v1549, %v1559
        %v1619 = vmul.f32 %v1550, %v1559
        %v1620 = vmul.f32 %v1551, %v1559
        %v1621 = vmul.f32 %v1552, %v1559
        %v1622 = vmul.f32 %v1553, %v1559
        %v1623 = vmul.f32 %v1554, %v1559
        %v1624 = vadd.f32 %v1427, %v1560
        %v1625 = vadd.f32 %v1428, %v1561
        %v1626 = vadd.f32 %v1429, %v1562
        %v1627 = vadd.f32 %v1430, %v1563
        %v1628 = vadd.f32 %v1431, %v1564
        %v1629 = vadd.f32 %v1432, %v1565
        %v1630 = vadd.f32 %v1433, %v1566
        %v1631 = vadd.f32 %v1434, %v1567
        %v1632 = vadd.f32 %v1435, %v1568
        %v1633 = vadd.f32 %v1436, %v1569
        %v1634 = vadd.f32 %v1437, %v1570
        %v1635 = vadd.f32 %v1438, %v1571
        %v1636 = vadd.f32 %v1439, %v1572
        %v1637 = vadd.f32 %v1440, %v1573
        %v1638 = vadd.f32 %v1441, %v1574
        %v1639 = vadd.f32 %v1442, %v1575
        %v1640 = vadd.f32 %v1443, %v1576
        %v1641 = vadd.f32 %v1444, %v1577
        %v1642 = vadd.f32 %v1445, %v1578
        %v1643 = vadd.f32 %v1446, %v1579
        %v1644 = vadd.f32 %v1447, %v1580
        %v1645 = vadd.f32 %v1448, %v1581
        %v1646 = vadd.f32 %v1449, %v1582
        %v1647 = vadd.f32 %v1450, %v1583
        %v1648 = vadd.f32 %v1451, %v1584
        %v1649 = vadd.f32 %v1452, %v1585
        %v1650 = vadd.f32 %v1453, %v1586
        %v1651 = vadd.f32 %v1454, %v1587
        %v1652 = vadd.f32 %v1455, %v1588
        %v1653 = vadd.f32 %v1456, %v1589
        %v1654 = vadd.f32 %v1457, %v1590
        %v1655 = vadd.f32 %v1458, %v1591
        %v1656 = vadd.f32 %v1459, %v1592
        %v1657 = vadd.f32 %v1460, %v1593
        %v1658 = vadd.f32 %v1461, %v1594
        %v1659 = vadd.f32 %v1462, %v1595
        %v1660 = vadd.f32 %v1463, %v1596
        %v1661 = vadd.f32 %v1464, %v1597
        %v1662 = vadd.f32 %v1465, %v1598
        %v1663 = vadd.f32 %v1466, %v1599
        %v1664 = vadd.f32 %v1467, %v1600
        %v1665 = vadd.f32 %v1468, %v1601
        %v1666 = vadd.f32 %v1469, %v1602
        %v1667 = vadd.f32 %v1470, %v1603
        %v1668 = vadd.f32 %v1471, %v1604
        %v1669 = vadd.f32 %v1472, %v1605
        %v1670 = vadd.f32 %v1473, %v1606
        %v1671 = vadd.f32 %v1474, %v1607
        %v1672 = vadd.f32 %v1475, %v1608
        %v1673 = vadd.f32 %v1476, %v1609
        %v1674 = vadd.f32 %v1477, %v1610
        %v1675 = vadd.f32 %v1478, %v1611
        %v1676 = vadd.f32 %v1479, %v1612
        %v1677 = vadd.f32 %v1480, %v1613
        %v1678 = vadd.f32 %v1481, %v1614
        %v1679 = vadd.f32 %v1482, %v1615
        %v1680 = vadd.f32 %v1483, %v1616
        %v1681 = vadd.f32 %v1484, %v1617
        %v1682 = vadd.f32 %v1485, %v1618
        %v1683 = vadd.f32 %v1486, %v1619
        %v1684 = vadd.f32 %v1487, %v1620
        %v1685 = vadd.f32 %v1488, %v1621
        %v1686 = vadd.f32 %v1489, %v1622
        %v1687 = vadd.f32 %v1490, %v1623
        %v1688 = vld [vmem:[%s1015 + $0x7] sm:$0xff]
        %v1689 = vld [vmem:[%s1015 + $0xf] sm:$0xff]
        %v1690 = vld [vmem:[%s1015 + $0x27] sm:$0xff]
        %v1691 = vld [vmem:[%s1015 + $0x2f] sm:$0xff]
        %v1692 = vld [vmem:[%s1015 + $0x47] sm:$0xff]
        %v1693 = vld [vmem:[%s1015 + $0x4f] sm:$0xff]
        %v1694 = vld [vmem:[%s1015 + $0x67] sm:$0xff]
        %v1695 = vld [vmem:[%s1015 + $0x6f] sm:$0xff]
        %v1696 = vld [vmem:[%s1015 + $0x87] sm:$0xff]
        %v1697 = vld [vmem:[%s1015 + $0x8f] sm:$0xff]
        %v1698 = vld [vmem:[%s1015 + $0xa7] sm:$0xff]
        %v1699 = vld [vmem:[%s1015 + $0xaf] sm:$0xff]
        %v1700 = vld [vmem:[%s1015 + $0xc7] sm:$0xff]
        %v1701 = vld [vmem:[%s1015 + $0xcf] sm:$0xff]
        %v1702 = vld [vmem:[%s1015 + $0xe7] sm:$0xff]
        %v1703 = vld [vmem:[%s1015 + $0xef] sm:$0xff]
        %v1704 = vld [vmem:[%s1015 + $0x107] sm:$0xff]
        %v1705 = vld [vmem:[%s1015 + $0x10f] sm:$0xff]
        %v1706 = vld [vmem:[%s1015 + $0x127] sm:$0xff]
        %v1707 = vld [vmem:[%s1015 + $0x12f] sm:$0xff]
        %v1708 = vld [vmem:[%s1015 + $0x147] sm:$0xff]
        %v1709 = vld [vmem:[%s1015 + $0x14f] sm:$0xff]
        %v1710 = vld [vmem:[%s1015 + $0x167] sm:$0xff]
        %v1711 = vld [vmem:[%s1015 + $0x16f] sm:$0xff]
        %v1712 = vld [vmem:[%s1015 + $0x187] sm:$0xff]
        %v1713 = vld [vmem:[%s1015 + $0x18f] sm:$0xff]
        %v1714 = vld [vmem:[%s1015 + $0x1a7] sm:$0xff]
        %v1715 = vld [vmem:[%s1015 + $0x1af] sm:$0xff]
        %v1716 = vld [vmem:[%s1015 + $0x1c7] sm:$0xff]
        %v1717 = vld [vmem:[%s1015 + $0x1cf] sm:$0xff]
        %v1718 = vld [vmem:[%s1015 + $0x1e7] sm:$0xff]
        %v1719 = vld [vmem:[%s1015 + $0x1ef] sm:$0xff]
        %v1720 = vld [vmem:[%s1015 + $0x247] sm:$0xff]
        %v1721 = vld [vmem:[%s1015 + $0x24f] sm:$0xff]
        %v1722 = vld [vmem:[%s1015 + $0x267] sm:$0xff]
        %v1723 = vld [vmem:[%s1015 + $0x26f] sm:$0xff]
        %v1724 = vld [vmem:[%s1015 + $0x287] sm:$0xff]
        %v1725 = vld [vmem:[%s1015 + $0x28f] sm:$0xff]
        %v1726 = vld [vmem:[%s1015 + $0x2a7] sm:$0xff]
        %v1727 = vld [vmem:[%s1015 + $0x2af] sm:$0xff]
        %v1728 = vld [vmem:[%s1015 + $0x2c7] sm:$0xff]
        %v1729 = vld [vmem:[%s1015 + $0x2cf] sm:$0xff]
        %v1730 = vld [vmem:[%s1015 + $0x2e7] sm:$0xff]
        %v1731 = vld [vmem:[%s1015 + $0x2ef] sm:$0xff]
        %v1732 = vld [vmem:[%s1015 + $0x307] sm:$0xff]
        %v1733 = vld [vmem:[%s1015 + $0x30f] sm:$0xff]
        %v1734 = vld [vmem:[%s1015 + $0x327] sm:$0xff]
        %v1735 = vld [vmem:[%s1015 + $0x32f] sm:$0xff]
        %v1736 = vld [vmem:[%s1015 + $0x347] sm:$0xff]
        %v1737 = vld [vmem:[%s1015 + $0x34f] sm:$0xff]
        %v1738 = vld [vmem:[%s1015 + $0x367] sm:$0xff]
        %v1739 = vld [vmem:[%s1015 + $0x36f] sm:$0xff]
        %v1740 = vld [vmem:[%s1015 + $0x387] sm:$0xff]
        %v1741 = vld [vmem:[%s1015 + $0x38f] sm:$0xff]
        %v1742 = vld [vmem:[%s1015 + $0x3a7] sm:$0xff]
        %v1743 = vld [vmem:[%s1015 + $0x3af] sm:$0xff]
        %v1744 = vld [vmem:[%s1015 + $0x3c7] sm:$0xff]
        %v1745 = vld [vmem:[%s1015 + $0x3cf] sm:$0xff]
        %v1746 = vld [vmem:[%s1015 + $0x3e7] sm:$0xff]
        %v1747 = vld [vmem:[%s1015 + $0x3ef] sm:$0xff]
        %v1748 = vld [vmem:[%s1015 + $0x407] sm:$0xff]
        %v1749 = vld [vmem:[%s1015 + $0x40f] sm:$0xff]
        %v1750 = vld [vmem:[%s1015 + $0x427] sm:$0xff]
        %v1751 = vld [vmem:[%s1015 + $0x42f] sm:$0xff]
        %v1752 = vld [vmem:[#allocation8 + $0x3] sm:$0x1]
        %v1753 = vlaneseq
        %v1754 = vshrl.u32 %v1753, 7
        %v1755 = vsub.s32 0, %v1754
        %v1756 = vrot.slane %v1752, %v1755
        %v1757 = vmul.f32 %v1688, %v1756
        %v1758 = vmul.f32 %v1689, %v1756
        %v1759 = vmul.f32 %v1690, %v1756
        %v1760 = vmul.f32 %v1691, %v1756
        %v1761 = vmul.f32 %v1692, %v1756
        %v1762 = vmul.f32 %v1693, %v1756
        %v1763 = vmul.f32 %v1694, %v1756
        %v1764 = vmul.f32 %v1695, %v1756
        %v1765 = vmul.f32 %v1696, %v1756
        %v1766 = vmul.f32 %v1697, %v1756
        %v1767 = vmul.f32 %v1698, %v1756
        %v1768 = vmul.f32 %v1699, %v1756
        %v1769 = vmul.f32 %v1700, %v1756
        %v1770 = vmul.f32 %v1701, %v1756
        %v1771 = vmul.f32 %v1702, %v1756
        %v1772 = vmul.f32 %v1703, %v1756
        %v1773 = vmul.f32 %v1704, %v1756
        %v1774 = vmul.f32 %v1705, %v1756
        %v1775 = vmul.f32 %v1706, %v1756
        %v1776 = vmul.f32 %v1707, %v1756
        %v1777 = vmul.f32 %v1708, %v1756
        %v1778 = vmul.f32 %v1709, %v1756
        %v1779 = vmul.f32 %v1710, %v1756
        %v1780 = vmul.f32 %v1711, %v1756
        %v1781 = vmul.f32 %v1712, %v1756
        %v1782 = vmul.f32 %v1713, %v1756
        %v1783 = vmul.f32 %v1714, %v1756
        %v1784 = vmul.f32 %v1715, %v1756
        %v1785 = vmul.f32 %v1716, %v1756
        %v1786 = vmul.f32 %v1717, %v1756
        %v1787 = vmul.f32 %v1718, %v1756
        %v1788 = vmul.f32 %v1719, %v1756
        %v1789 = vmul.f32 %v1720, %v1756
        %v1790 = vmul.f32 %v1721, %v1756
        %v1791 = vmul.f32 %v1722, %v1756
        %v1792 = vmul.f32 %v1723, %v1756
        %v1793 = vmul.f32 %v1724, %v1756
        %v1794 = vmul.f32 %v1725, %v1756
        %v1795 = vmul.f32 %v1726, %v1756
        %v1796 = vmul.f32 %v1727, %v1756
        %v1797 = vmul.f32 %v1728, %v1756
        %v1798 = vmul.f32 %v1729, %v1756
        %v1799 = vmul.f32 %v1730, %v1756
        %v1800 = vmul.f32 %v1731, %v1756
        %v1801 = vmul.f32 %v1732, %v1756
        %v1802 = vmul.f32 %v1733, %v1756
        %v1803 = vmul.f32 %v1734, %v1756
        %v1804 = vmul.f32 %v1735, %v1756
        %v1805 = vmul.f32 %v1736, %v1756
        %v1806 = vmul.f32 %v1737, %v1756
        %v1807 = vmul.f32 %v1738, %v1756
        %v1808 = vmul.f32 %v1739, %v1756
        %v1809 = vmul.f32 %v1740, %v1756
        %v1810 = vmul.f32 %v1741, %v1756
        %v1811 = vmul.f32 %v1742, %v1756
        %v1812 = vmul.f32 %v1743, %v1756
        %v1813 = vmul.f32 %v1744, %v1756
        %v1814 = vmul.f32 %v1745, %v1756
        %v1815 = vmul.f32 %v1746, %v1756
        %v1816 = vmul.f32 %v1747, %v1756
        %v1817 = vmul.f32 %v1748, %v1756
        %v1818 = vmul.f32 %v1749, %v1756
        %v1819 = vmul.f32 %v1750, %v1756
        %v1820 = vmul.f32 %v1751, %v1756
        %v1821 = vadd.f32 %v1624, %v1757
        %v1822 = vadd.f32 %v1625, %v1758
        %v1823 = vadd.f32 %v1626, %v1759
        %v1824 = vadd.f32 %v1627, %v1760
        %v1825 = vadd.f32 %v1628, %v1761
        %v1826 = vadd.f32 %v1629, %v1762
        %v1827 = vadd.f32 %v1630, %v1763
        %v1828 = vadd.f32 %v1631, %v1764
        %v1829 = vadd.f32 %v1632, %v1765
        %v1830 = vadd.f32 %v1633, %v1766
        %v1831 = vadd.f32 %v1634, %v1767
        %v1832 = vadd.f32 %v1635, %v1768
        %v1833 = vadd.f32 %v1636, %v1769
        %v1834 = vadd.f32 %v1637, %v1770
        %v1835 = vadd.f32 %v1638, %v1771
        %v1836 = vadd.f32 %v1639, %v1772
        %v1837 = vadd.f32 %v1640, %v1773
        %v1838 = vadd.f32 %v1641, %v1774
        %v1839 = vadd.f32 %v1642, %v1775
        %v1840 = vadd.f32 %v1643, %v1776
        %v1841 = vadd.f32 %v1644, %v1777
        %v1842 = vadd.f32 %v1645, %v1778
        %v1843 = vadd.f32 %v1646, %v1779
        %v1844 = vadd.f32 %v1647, %v1780
        %v1845 = vadd.f32 %v1648, %v1781
        %v1846 = vadd.f32 %v1649, %v1782
        %v1847 = vadd.f32 %v1650, %v1783
        %v1848 = vadd.f32 %v1651, %v1784
        %v1849 = vadd.f32 %v1652, %v1785
        %v1850 = vadd.f32 %v1653, %v1786
        %v1851 = vadd.f32 %v1654, %v1787
        %v1852 = vadd.f32 %v1655, %v1788
        %v1853 = vadd.f32 %v1656, %v1789
        %v1854 = vadd.f32 %v1657, %v1790
        %v1855 = vadd.f32 %v1658, %v1791
        %v1856 = vadd.f32 %v1659, %v1792
        %v1857 = vadd.f32 %v1660, %v1793
        %v1858 = vadd.f32 %v1661, %v1794
        %v1859 = vadd.f32 %v1662, %v1795
        %v1860 = vadd.f32 %v1663, %v1796
        %v1861 = vadd.f32 %v1664, %v1797
        %v1862 = vadd.f32 %v1665, %v1798
        %v1863 = vadd.f32 %v1666, %v1799
        %v1864 = vadd.f32 %v1667, %v1800
        %v1865 = vadd.f32 %v1668, %v1801
        %v1866 = vadd.f32 %v1669, %v1802
        %v1867 = vadd.f32 %v1670, %v1803
        %v1868 = vadd.f32 %v1671, %v1804
        %v1869 = vadd.f32 %v1672, %v1805
        %v1870 = vadd.f32 %v1673, %v1806
        %v1871 = vadd.f32 %v1674, %v1807
        %v1872 = vadd.f32 %v1675, %v1808
        %v1873 = vadd.f32 %v1676, %v1809
        %v1874 = vadd.f32 %v1677, %v1810
        %v1875 = vadd.f32 %v1678, %v1811
        %v1876 = vadd.f32 %v1679, %v1812
        %v1877 = vadd.f32 %v1680, %v1813
        %v1878 = vadd.f32 %v1681, %v1814
        %v1879 = vadd.f32 %v1682, %v1815
        %v1880 = vadd.f32 %v1683, %v1816
        %v1881 = vadd.f32 %v1684, %v1817
        %v1882 = vadd.f32 %v1685, %v1818
        %v1883 = vadd.f32 %v1686, %v1819
        %v1884 = vadd.f32 %v1687, %v1820
        %v1885 = vld [vmem:[%s1015 + $0x8] sm:$0xff]
        %v1886 = vld [vmem:[%s1015 + $0x10] sm:$0xff]
        %v1887 = vld [vmem:[%s1015 + $0x28] sm:$0xff]
        %v1888 = vld [vmem:[%s1015 + $0x30] sm:$0xff]
        %v1889 = vld [vmem:[%s1015 + $0x48] sm:$0xff]
        %v1890 = vld [vmem:[%s1015 + $0x50] sm:$0xff]
        %v1891 = vld [vmem:[%s1015 + $0x68] sm:$0xff]
        %v1892 = vld [vmem:[%s1015 + $0x70] sm:$0xff]
        %v1893 = vld [vmem:[%s1015 + $0x88] sm:$0xff]
        %v1894 = vld [vmem:[%s1015 + $0x90] sm:$0xff]
        %v1895 = vld [vmem:[%s1015 + $0xa8] sm:$0xff]
        %v1896 = vld [vmem:[%s1015 + $0xb0] sm:$0xff]
        %v1897 = vld [vmem:[%s1015 + $0xc8] sm:$0xff]
        %v1898 = vld [vmem:[%s1015 + $0xd0] sm:$0xff]
        %v1899 = vld [vmem:[%s1015 + $0xe8] sm:$0xff]
        %v1900 = vld [vmem:[%s1015 + $0xf0] sm:$0xff]
        %v1901 = vld [vmem:[%s1015 + $0x108] sm:$0xff]
        %v1902 = vld [vmem:[%s1015 + $0x110] sm:$0xff]
        %v1903 = vld [vmem:[%s1015 + $0x128] sm:$0xff]
        %v1904 = vld [vmem:[%s1015 + $0x130] sm:$0xff]
        %v1905 = vld [vmem:[%s1015 + $0x148] sm:$0xff]
        %v1906 = vld [vmem:[%s1015 + $0x150] sm:$0xff]
        %v1907 = vld [vmem:[%s1015 + $0x168] sm:$0xff]
        %v1908 = vld [vmem:[%s1015 + $0x170] sm:$0xff]
        %v1909 = vld [vmem:[%s1015 + $0x188] sm:$0xff]
        %v1910 = vld [vmem:[%s1015 + $0x190] sm:$0xff]
        %v1911 = vld [vmem:[%s1015 + $0x1a8] sm:$0xff]
        %v1912 = vld [vmem:[%s1015 + $0x1b0] sm:$0xff]
        %v1913 = vld [vmem:[%s1015 + $0x1c8] sm:$0xff]
        %v1914 = vld [vmem:[%s1015 + $0x1d0] sm:$0xff]
        %v1915 = vld [vmem:[%s1015 + $0x1e8] sm:$0xff]
        %v1916 = vld [vmem:[%s1015 + $0x1f0] sm:$0xff]
        %v1917 = vld [vmem:[%s1015 + $0x248] sm:$0xff]
        %v1918 = vld [vmem:[%s1015 + $0x250] sm:$0xff]
        %v1919 = vld [vmem:[%s1015 + $0x268] sm:$0xff]
        %v1920 = vld [vmem:[%s1015 + $0x270] sm:$0xff]
        %v1921 = vld [vmem:[%s1015 + $0x288] sm:$0xff]
        %v1922 = vld [vmem:[%s1015 + $0x290] sm:$0xff]
        %v1923 = vld [vmem:[%s1015 + $0x2a8] sm:$0xff]
        %v1924 = vld [vmem:[%s1015 + $0x2b0] sm:$0xff]
        %v1925 = vld [vmem:[%s1015 + $0x2c8] sm:$0xff]
        %v1926 = vld [vmem:[%s1015 + $0x2d0] sm:$0xff]
        %v1927 = vld [vmem:[%s1015 + $0x2e8] sm:$0xff]
        %v1928 = vld [vmem:[%s1015 + $0x2f0] sm:$0xff]
        %v1929 = vld [vmem:[%s1015 + $0x308] sm:$0xff]
        %v1930 = vld [vmem:[%s1015 + $0x310] sm:$0xff]
        %v1931 = vld [vmem:[%s1015 + $0x328] sm:$0xff]
        %v1932 = vld [vmem:[%s1015 + $0x330] sm:$0xff]
        %v1933 = vld [vmem:[%s1015 + $0x348] sm:$0xff]
        %v1934 = vld [vmem:[%s1015 + $0x350] sm:$0xff]
        %v1935 = vld [vmem:[%s1015 + $0x368] sm:$0xff]
        %v1936 = vld [vmem:[%s1015 + $0x370] sm:$0xff]
        %v1937 = vld [vmem:[%s1015 + $0x388] sm:$0xff]
        %v1938 = vld [vmem:[%s1015 + $0x390] sm:$0xff]
        %v1939 = vld [vmem:[%s1015 + $0x3a8] sm:$0xff]
        %v1940 = vld [vmem:[%s1015 + $0x3b0] sm:$0xff]
        %v1941 = vld [vmem:[%s1015 + $0x3c8] sm:$0xff]
        %v1942 = vld [vmem:[%s1015 + $0x3d0] sm:$0xff]
        %v1943 = vld [vmem:[%s1015 + $0x3e8] sm:$0xff]
        %v1944 = vld [vmem:[%s1015 + $0x3f0] sm:$0xff]
        %v1945 = vld [vmem:[%s1015 + $0x408] sm:$0xff]
        %v1946 = vld [vmem:[%s1015 + $0x410] sm:$0xff]
        %v1947 = vld [vmem:[%s1015 + $0x428] sm:$0xff]
        %v1948 = vld [vmem:[%s1015 + $0x430] sm:$0xff]
        %v1949 = vld [vmem:[#allocation8 + $0x4] sm:$0x1]
        %v1950 = vlaneseq
        %v1951 = vshrl.u32 %v1950, 7
        %v1952 = vsub.s32 0, %v1951
        %v1953 = vrot.slane %v1949, %v1952
        %v1954 = vmul.f32 %v1885, %v1953
        %v1955 = vmul.f32 %v1886, %v1953
        %v1956 = vmul.f32 %v1887, %v1953
        %v1957 = vmul.f32 %v1888, %v1953
        %v1958 = vmul.f32 %v1889, %v1953
        %v1959 = vmul.f32 %v1890, %v1953
        %v1960 = vmul.f32 %v1891, %v1953
        %v1961 = vmul.f32 %v1892, %v1953
        %v1962 = vmul.f32 %v1893, %v1953
        %v1963 = vmul.f32 %v1894, %v1953
        %v1964 = vmul.f32 %v1895, %v1953
        %v1965 = vmul.f32 %v1896, %v1953
        %v1966 = vmul.f32 %v1897, %v1953
        %v1967 = vmul.f32 %v1898, %v1953
        %v1968 = vmul.f32 %v1899, %v1953
        %v1969 = vmul.f32 %v1900, %v1953
        %v1970 = vmul.f32 %v1901, %v1953
        %v1971 = vmul.f32 %v1902, %v1953
        %v1972 = vmul.f32 %v1903, %v1953
        %v1973 = vmul.f32 %v1904, %v1953
        %v1974 = vmul.f32 %v1905, %v1953
        %v1975 = vmul.f32 %v1906, %v1953
        %v1976 = vmul.f32 %v1907, %v1953
        %v1977 = vmul.f32 %v1908, %v1953
        %v1978 = vmul.f32 %v1909, %v1953
        %v1979 = vmul.f32 %v1910, %v1953
        %v1980 = vmul.f32 %v1911, %v1953
        %v1981 = vmul.f32 %v1912, %v1953
        %v1982 = vmul.f32 %v1913, %v1953
        %v1983 = vmul.f32 %v1914, %v1953
        %v1984 = vmul.f32 %v1915, %v1953
        %v1985 = vmul.f32 %v1916, %v1953
        %v1986 = vmul.f32 %v1917, %v1953
        %v1987 = vmul.f32 %v1918, %v1953
        %v1988 = vmul.f32 %v1919, %v1953
        %v1989 = vmul.f32 %v1920, %v1953
        %v1990 = vmul.f32 %v1921, %v1953
        %v1991 = vmul.f32 %v1922, %v1953
        %v1992 = vmul.f32 %v1923, %v1953
        %v1993 = vmul.f32 %v1924, %v1953
        %v1994 = vmul.f32 %v1925, %v1953
        %v1995 = vmul.f32 %v1926, %v1953
        %v1996 = vmul.f32 %v1927, %v1953
        %v1997 = vmul.f32 %v1928, %v1953
        %v1998 = vmul.f32 %v1929, %v1953
        %v1999 = vmul.f32 %v1930, %v1953
        %v2000 = vmul.f32 %v1931, %v1953
        %v2001 = vmul.f32 %v1932, %v1953
        %v2002 = vmul.f32 %v1933, %v1953
        %v2003 = vmul.f32 %v1934, %v1953
        %v2004 = vmul.f32 %v1935, %v1953
        %v2005 = vmul.f32 %v1936, %v1953
        %v2006 = vmul.f32 %v1937, %v1953
        %v2007 = vmul.f32 %v1938, %v1953
        %v2008 = vmul.f32 %v1939, %v1953
        %v2009 = vmul.f32 %v1940, %v1953
        %v2010 = vmul.f32 %v1941, %v1953
        %v2011 = vmul.f32 %v1942, %v1953
        %v2012 = vmul.f32 %v1943, %v1953
        %v2013 = vmul.f32 %v1944, %v1953
        %v2014 = vmul.f32 %v1945, %v1953
        %v2015 = vmul.f32 %v1946, %v1953
        %v2016 = vmul.f32 %v1947, %v1953
        %v2017 = vmul.f32 %v1948, %v1953
        %v2018 = vadd.f32 %v1821, %v1954
        %v2019 = vadd.f32 %v1822, %v1955
        %v2020 = vadd.f32 %v1823, %v1956
        %v2021 = vadd.f32 %v1824, %v1957
        %v2022 = vadd.f32 %v1825, %v1958
        %v2023 = vadd.f32 %v1826, %v1959
        %v2024 = vadd.f32 %v1827, %v1960
        %v2025 = vadd.f32 %v1828, %v1961
        %v2026 = vadd.f32 %v1829, %v1962
        %v2027 = vadd.f32 %v1830, %v1963
        %v2028 = vadd.f32 %v1831, %v1964
        %v2029 = vadd.f32 %v1832, %v1965
        %v2030 = vadd.f32 %v1833, %v1966
        %v2031 = vadd.f32 %v1834, %v1967
        %v2032 = vadd.f32 %v1835, %v1968
        %v2033 = vadd.f32 %v1836, %v1969
        %v2034 = vadd.f32 %v1837, %v1970
        %v2035 = vadd.f32 %v1838, %v1971
        %v2036 = vadd.f32 %v1839, %v1972
        %v2037 = vadd.f32 %v1840, %v1973
        %v2038 = vadd.f32 %v1841, %v1974
        %v2039 = vadd.f32 %v1842, %v1975
        %v2040 = vadd.f32 %v1843, %v1976
        %v2041 = vadd.f32 %v1844, %v1977
        %v2042 = vadd.f32 %v1845, %v1978
        %v2043 = vadd.f32 %v1846, %v1979
        %v2044 = vadd.f32 %v1847, %v1980
        %v2045 = vadd.f32 %v1848, %v1981
        %v2046 = vadd.f32 %v1849, %v1982
        %v2047 = vadd.f32 %v1850, %v1983
        %v2048 = vadd.f32 %v1851, %v1984
        %v2049 = vadd.f32 %v1852, %v1985
        %v2050 = vadd.f32 %v1853, %v1986
        %v2051 = vadd.f32 %v1854, %v1987
        %v2052 = vadd.f32 %v1855, %v1988
        %v2053 = vadd.f32 %v1856, %v1989
        %v2054 = vadd.f32 %v1857, %v1990
        %v2055 = vadd.f32 %v1858, %v1991
        %v2056 = vadd.f32 %v1859, %v1992
        %v2057 = vadd.f32 %v1860, %v1993
        %v2058 = vadd.f32 %v1861, %v1994
        %v2059 = vadd.f32 %v1862, %v1995
        %v2060 = vadd.f32 %v1863, %v1996
        %v2061 = vadd.f32 %v1864, %v1997
        %v2062 = vadd.f32 %v1865, %v1998
        %v2063 = vadd.f32 %v1866, %v1999
        %v2064 = vadd.f32 %v1867, %v2000
        %v2065 = vadd.f32 %v1868, %v2001
        %v2066 = vadd.f32 %v1869, %v2002
        %v2067 = vadd.f32 %v1870, %v2003
        %v2068 = vadd.f32 %v1871, %v2004
        %v2069 = vadd.f32 %v1872, %v2005
        %v2070 = vadd.f32 %v1873, %v2006
        %v2071 = vadd.f32 %v1874, %v2007
        %v2072 = vadd.f32 %v1875, %v2008
        %v2073 = vadd.f32 %v1876, %v2009
        %v2074 = vadd.f32 %v1877, %v2010
        %v2075 = vadd.f32 %v1878, %v2011
        %v2076 = vadd.f32 %v1879, %v2012
        %v2077 = vadd.f32 %v1880, %v2013
        %v2078 = vadd.f32 %v1881, %v2014
        %v2079 = vadd.f32 %v1882, %v2015
        %v2080 = vadd.f32 %v1883, %v2016
        %v2081 = vadd.f32 %v1884, %v2017
        %v2082 = vld [vmem:[%s1015 + $0x9] sm:$0xff]
        %v2083 = vld [vmem:[%s1015 + $0x11] sm:$0xff]
        %v2084 = vld [vmem:[%s1015 + $0x29] sm:$0xff]
        %v2085 = vld [vmem:[%s1015 + $0x31] sm:$0xff]
        %v2086 = vld [vmem:[%s1015 + $0x49] sm:$0xff]
        %v2087 = vld [vmem:[%s1015 + $0x51] sm:$0xff]
        %v2088 = vld [vmem:[%s1015 + $0x69] sm:$0xff]
        %v2089 = vld [vmem:[%s1015 + $0x71] sm:$0xff]
        %v2090 = vld [vmem:[%s1015 + $0x89] sm:$0xff]
        %v2091 = vld [vmem:[%s1015 + $0x91] sm:$0xff]
        %v2092 = vld [vmem:[%s1015 + $0xa9] sm:$0xff]
        %v2093 = vld [vmem:[%s1015 + $0xb1] sm:$0xff]
        %v2094 = vld [vmem:[%s1015 + $0xc9] sm:$0xff]
        %v2095 = vld [vmem:[%s1015 + $0xd1] sm:$0xff]
        %v2096 = vld [vmem:[%s1015 + $0xe9] sm:$0xff]
        %v2097 = vld [vmem:[%s1015 + $0xf1] sm:$0xff]
        %v2098 = vld [vmem:[%s1015 + $0x109] sm:$0xff]
        %v2099 = vld [vmem:[%s1015 + $0x111] sm:$0xff]
        %v2100 = vld [vmem:[%s1015 + $0x129] sm:$0xff]
        %v2101 = vld [vmem:[%s1015 + $0x131] sm:$0xff]
        %v2102 = vld [vmem:[%s1015 + $0x149] sm:$0xff]
        %v2103 = vld [vmem:[%s1015 + $0x151] sm:$0xff]
        %v2104 = vld [vmem:[%s1015 + $0x169] sm:$0xff]
        %v2105 = vld [vmem:[%s1015 + $0x171] sm:$0xff]
        %v2106 = vld [vmem:[%s1015 + $0x189] sm:$0xff]
        %v2107 = vld [vmem:[%s1015 + $0x191] sm:$0xff]
        %v2108 = vld [vmem:[%s1015 + $0x1a9] sm:$0xff]
        %v2109 = vld [vmem:[%s1015 + $0x1b1] sm:$0xff]
        %v2110 = vld [vmem:[%s1015 + $0x1c9] sm:$0xff]
        %v2111 = vld [vmem:[%s1015 + $0x1d1] sm:$0xff]
        %v2112 = vld [vmem:[%s1015 + $0x1e9] sm:$0xff]
        %v2113 = vld [vmem:[%s1015 + $0x1f1] sm:$0xff]
        %v2114 = vld [vmem:[%s1015 + $0x249] sm:$0xff]
        %v2115 = vld [vmem:[%s1015 + $0x251] sm:$0xff]
        %v2116 = vld [vmem:[%s1015 + $0x269] sm:$0xff]
        %v2117 = vld [vmem:[%s1015 + $0x271] sm:$0xff]
        %v2118 = vld [vmem:[%s1015 + $0x289] sm:$0xff]
        %v2119 = vld [vmem:[%s1015 + $0x291] sm:$0xff]
        %v2120 = vld [vmem:[%s1015 + $0x2a9] sm:$0xff]
        %v2121 = vld [vmem:[%s1015 + $0x2b1] sm:$0xff]
        %v2122 = vld [vmem:[%s1015 + $0x2c9] sm:$0xff]
        %v2123 = vld [vmem:[%s1015 + $0x2d1] sm:$0xff]
        %v2124 = vld [vmem:[%s1015 + $0x2e9] sm:$0xff]
        %v2125 = vld [vmem:[%s1015 + $0x2f1] sm:$0xff]
        %v2126 = vld [vmem:[%s1015 + $0x309] sm:$0xff]
        %v2127 = vld [vmem:[%s1015 + $0x311] sm:$0xff]
        %v2128 = vld [vmem:[%s1015 + $0x329] sm:$0xff]
        %v2129 = vld [vmem:[%s1015 + $0x331] sm:$0xff]
        %v2130 = vld [vmem:[%s1015 + $0x349] sm:$0xff]
        %v2131 = vld [vmem:[%s1015 + $0x351] sm:$0xff]
        %v2132 = vld [vmem:[%s1015 + $0x369] sm:$0xff]
        %v2133 = vld [vmem:[%s1015 + $0x371] sm:$0xff]
        %v2134 = vld [vmem:[%s1015 + $0x389] sm:$0xff]
        %v2135 = vld [vmem:[%s1015 + $0x391] sm:$0xff]
        %v2136 = vld [vmem:[%s1015 + $0x3a9] sm:$0xff]
        %v2137 = vld [vmem:[%s1015 + $0x3b1] sm:$0xff]
        %v2138 = vld [vmem:[%s1015 + $0x3c9] sm:$0xff]
        %v2139 = vld [vmem:[%s1015 + $0x3d1] sm:$0xff]
        %v2140 = vld [vmem:[%s1015 + $0x3e9] sm:$0xff]
        %v2141 = vld [vmem:[%s1015 + $0x3f1] sm:$0xff]
        %v2142 = vld [vmem:[%s1015 + $0x409] sm:$0xff]
        %v2143 = vld [vmem:[%s1015 + $0x411] sm:$0xff]
        %v2144 = vld [vmem:[%s1015 + $0x429] sm:$0xff]
        %v2145 = vld [vmem:[%s1015 + $0x431] sm:$0xff]
        %v2146 = vld [vmem:[#allocation8 + $0x5] sm:$0x1]
        %v2147 = vlaneseq
        %v2148 = vshrl.u32 %v2147, 7
        %v2149 = vsub.s32 0, %v2148
        %v2150 = vrot.slane %v2146, %v2149
        %v2151 = vmul.f32 %v2082, %v2150
        %v2152 = vmul.f32 %v2083, %v2150
        %v2153 = vmul.f32 %v2084, %v2150
        %v2154 = vmul.f32 %v2085, %v2150
        %v2155 = vmul.f32 %v2086, %v2150
        %v2156 = vmul.f32 %v2087, %v2150
        %v2157 = vmul.f32 %v2088, %v2150
        %v2158 = vmul.f32 %v2089, %v2150
        %v2159 = vmul.f32 %v2090, %v2150
        %v2160 = vmul.f32 %v2091, %v2150
        %v2161 = vmul.f32 %v2092, %v2150
        %v2162 = vmul.f32 %v2093, %v2150
        %v2163 = vmul.f32 %v2094, %v2150
        %v2164 = vmul.f32 %v2095, %v2150
        %v2165 = vmul.f32 %v2096, %v2150
        %v2166 = vmul.f32 %v2097, %v2150
        %v2167 = vmul.f32 %v2098, %v2150
        %v2168 = vmul.f32 %v2099, %v2150
        %v2169 = vmul.f32 %v2100, %v2150
        %v2170 = vmul.f32 %v2101, %v2150
        %v2171 = vmul.f32 %v2102, %v2150
        %v2172 = vmul.f32 %v2103, %v2150
        %v2173 = vmul.f32 %v2104, %v2150
        %v2174 = vmul.f32 %v2105, %v2150
        %v2175 = vmul.f32 %v2106, %v2150
        %v2176 = vmul.f32 %v2107, %v2150
        %v2177 = vmul.f32 %v2108, %v2150
        %v2178 = vmul.f32 %v2109, %v2150
        %v2179 = vmul.f32 %v2110, %v2150
        %v2180 = vmul.f32 %v2111, %v2150
        %v2181 = vmul.f32 %v2112, %v2150
        %v2182 = vmul.f32 %v2113, %v2150
        %v2183 = vmul.f32 %v2114, %v2150
        %v2184 = vmul.f32 %v2115, %v2150
        %v2185 = vmul.f32 %v2116, %v2150
        %v2186 = vmul.f32 %v2117, %v2150
        %v2187 = vmul.f32 %v2118, %v2150
        %v2188 = vmul.f32 %v2119, %v2150
        %v2189 = vmul.f32 %v2120, %v2150
        %v2190 = vmul.f32 %v2121, %v2150
        %v2191 = vmul.f32 %v2122, %v2150
        %v2192 = vmul.f32 %v2123, %v2150
        %v2193 = vmul.f32 %v2124, %v2150
        %v2194 = vmul.f32 %v2125, %v2150
        %v2195 = vmul.f32 %v2126, %v2150
        %v2196 = vmul.f32 %v2127, %v2150
        %v2197 = vmul.f32 %v2128, %v2150
        %v2198 = vmul.f32 %v2129, %v2150
        %v2199 = vmul.f32 %v2130, %v2150
        %v2200 = vmul.f32 %v2131, %v2150
        %v2201 = vmul.f32 %v2132, %v2150
        %v2202 = vmul.f32 %v2133, %v2150
        %v2203 = vmul.f32 %v2134, %v2150
        %v2204 = vmul.f32 %v2135, %v2150
        %v2205 = vmul.f32 %v2136, %v2150
        %v2206 = vmul.f32 %v2137, %v2150
        %v2207 = vmul.f32 %v2138, %v2150
        %v2208 = vmul.f32 %v2139, %v2150
        %v2209 = vmul.f32 %v2140, %v2150
        %v2210 = vmul.f32 %v2141, %v2150
        %v2211 = vmul.f32 %v2142, %v2150
        %v2212 = vmul.f32 %v2143, %v2150
        %v2213 = vmul.f32 %v2144, %v2150
        %v2214 = vmul.f32 %v2145, %v2150
        %v2215 = vadd.f32 %v2018, %v2151
        %v2216 = vadd.f32 %v2019, %v2152
        %v2217 = vadd.f32 %v2020, %v2153
        %v2218 = vadd.f32 %v2021, %v2154
        %v2219 = vadd.f32 %v2022, %v2155
        %v2220 = vadd.f32 %v2023, %v2156
        %v2221 = vadd.f32 %v2024, %v2157
        %v2222 = vadd.f32 %v2025, %v2158
        %v2223 = vadd.f32 %v2026, %v2159
        %v2224 = vadd.f32 %v2027, %v2160
        %v2225 = vadd.f32 %v2028, %v2161
        %v2226 = vadd.f32 %v2029, %v2162
        %v2227 = vadd.f32 %v2030, %v2163
        %v2228 = vadd.f32 %v2031, %v2164
        %v2229 = vadd.f32 %v2032, %v2165
        %v2230 = vadd.f32 %v2033, %v2166
        %v2231 = vadd.f32 %v2034, %v2167
        %v2232 = vadd.f32 %v2035, %v2168
        %v2233 = vadd.f32 %v2036, %v2169
        %v2234 = vadd.f32 %v2037, %v2170
        %v2235 = vadd.f32 %v2038, %v2171
        %v2236 = vadd.f32 %v2039, %v2172
        %v2237 = vadd.f32 %v2040, %v2173
        %v2238 = vadd.f32 %v2041, %v2174
        %v2239 = vadd.f32 %v2042, %v2175
        %v2240 = vadd.f32 %v2043, %v2176
        %v2241 = vadd.f32 %v2044, %v2177
        %v2242 = vadd.f32 %v2045, %v2178
        %v2243 = vadd.f32 %v2046, %v2179
        %v2244 = vadd.f32 %v2047, %v2180
        %v2245 = vadd.f32 %v2048, %v2181
        %v2246 = vadd.f32 %v2049, %v2182
        %v2247 = vadd.f32 %v2050, %v2183
        %v2248 = vadd.f32 %v2051, %v2184
        %v2249 = vadd.f32 %v2052, %v2185
        %v2250 = vadd.f32 %v2053, %v2186
        %v2251 = vadd.f32 %v2054, %v2187
        %v2252 = vadd.f32 %v2055, %v2188
        %v2253 = vadd.f32 %v2056, %v2189
        %v2254 = vadd.f32 %v2057, %v2190
        %v2255 = vadd.f32 %v2058, %v2191
        %v2256 = vadd.f32 %v2059, %v2192
        %v2257 = vadd.f32 %v2060, %v2193
        %v2258 = vadd.f32 %v2061, %v2194
        %v2259 = vadd.f32 %v2062, %v2195
        %v2260 = vadd.f32 %v2063, %v2196
        %v2261 = vadd.f32 %v2064, %v2197
        %v2262 = vadd.f32 %v2065, %v2198
        %v2263 = vadd.f32 %v2066, %v2199
        %v2264 = vadd.f32 %v2067, %v2200
        %v2265 = vadd.f32 %v2068, %v2201
        %v2266 = vadd.f32 %v2069, %v2202
        %v2267 = vadd.f32 %v2070, %v2203
        %v2268 = vadd.f32 %v2071, %v2204
        %v2269 = vadd.f32 %v2072, %v2205
        %v2270 = vadd.f32 %v2073, %v2206
        %v2271 = vadd.f32 %v2074, %v2207
        %v2272 = vadd.f32 %v2075, %v2208
        %v2273 = vadd.f32 %v2076, %v2209
        %v2274 = vadd.f32 %v2077, %v2210
        %v2275 = vadd.f32 %v2078, %v2211
        %v2276 = vadd.f32 %v2079, %v2212
        %v2277 = vadd.f32 %v2080, %v2213
        %v2278 = vadd.f32 %v2081, %v2214
        %s2279 = scalar_lea.vmem [#allocation2], 64
        %v2280 = vld [vmem:[%s2279 + $0x7] sm:$0xff]
        %v2281 = vld [vmem:[%s2279 + $0xf] sm:$0xff]
        %v2282 = vld [vmem:[%s2279 + $0x27] sm:$0xff]
        %v2283 = vld [vmem:[%s2279 + $0x2f] sm:$0xff]
        %v2284 = vld [vmem:[%s2279 + $0x47] sm:$0xff]
        %v2285 = vld [vmem:[%s2279 + $0x4f] sm:$0xff]
        %v2286 = vld [vmem:[%s2279 + $0x67] sm:$0xff]
        %v2287 = vld [vmem:[%s2279 + $0x6f] sm:$0xff]
        %v2288 = vld [vmem:[%s2279 + $0x87] sm:$0xff]
        %v2289 = vld [vmem:[%s2279 + $0x8f] sm:$0xff]
        %v2290 = vld [vmem:[%s2279 + $0xa7] sm:$0xff]
        %v2291 = vld [vmem:[%s2279 + $0xaf] sm:$0xff]
        %v2292 = vld [vmem:[%s2279 + $0xc7] sm:$0xff]
        %v2293 = vld [vmem:[%s2279 + $0xcf] sm:$0xff]
        %v2294 = vld [vmem:[%s2279 + $0xe7] sm:$0xff]
        %v2295 = vld [vmem:[%s2279 + $0xef] sm:$0xff]
        %v2296 = vld [vmem:[%s2279 + $0x107] sm:$0xff]
        %v2297 = vld [vmem:[%s2279 + $0x10f] sm:$0xff]
        %v2298 = vld [vmem:[%s2279 + $0x127] sm:$0xff]
        %v2299 = vld [vmem:[%s2279 + $0x12f] sm:$0xff]
        %v2300 = vld [vmem:[%s2279 + $0x147] sm:$0xff]
        %v2301 = vld [vmem:[%s2279 + $0x14f] sm:$0xff]
        %v2302 = vld [vmem:[%s2279 + $0x167] sm:$0xff]
        %v2303 = vld [vmem:[%s2279 + $0x16f] sm:$0xff]
        %v2304 = vld [vmem:[%s2279 + $0x187] sm:$0xff]
        %v2305 = vld [vmem:[%s2279 + $0x18f] sm:$0xff]
        %v2306 = vld [vmem:[%s2279 + $0x1a7] sm:$0xff]
        %v2307 = vld [vmem:[%s2279 + $0x1af] sm:$0xff]
        %v2308 = vld [vmem:[%s2279 + $0x1c7] sm:$0xff]
        %v2309 = vld [vmem:[%s2279 + $0x1cf] sm:$0xff]
        %v2310 = vld [vmem:[%s2279 + $0x1e7] sm:$0xff]
        %v2311 = vld [vmem:[%s2279 + $0x1ef] sm:$0xff]
        %v2312 = vld [vmem:[%s2279 + $0x247] sm:$0xff]
        %v2313 = vld [vmem:[%s2279 + $0x24f] sm:$0xff]
        %v2314 = vld [vmem:[%s2279 + $0x267] sm:$0xff]
        %v2315 = vld [vmem:[%s2279 + $0x26f] sm:$0xff]
        %v2316 = vld [vmem:[%s2279 + $0x287] sm:$0xff]
        %v2317 = vld [vmem:[%s2279 + $0x28f] sm:$0xff]
        %v2318 = vld [vmem:[%s2279 + $0x2a7] sm:$0xff]
        %v2319 = vld [vmem:[%s2279 + $0x2af] sm:$0xff]
        %v2320 = vld [vmem:[%s2279 + $0x2c7] sm:$0xff]
        %v2321 = vld [vmem:[%s2279 + $0x2cf] sm:$0xff]
        %v2322 = vld [vmem:[%s2279 + $0x2e7] sm:$0xff]
        %v2323 = vld [vmem:[%s2279 + $0x2ef] sm:$0xff]
        %v2324 = vld [vmem:[%s2279 + $0x307] sm:$0xff]
        %v2325 = vld [vmem:[%s2279 + $0x30f] sm:$0xff]
        %v2326 = vld [vmem:[%s2279 + $0x327] sm:$0xff]
        %v2327 = vld [vmem:[%s2279 + $0x32f] sm:$0xff]
        %v2328 = vld [vmem:[%s2279 + $0x347] sm:$0xff]
        %v2329 = vld [vmem:[%s2279 + $0x34f] sm:$0xff]
        %v2330 = vld [vmem:[%s2279 + $0x367] sm:$0xff]
        %v2331 = vld [vmem:[%s2279 + $0x36f] sm:$0xff]
        %v2332 = vld [vmem:[%s2279 + $0x387] sm:$0xff]
        %v2333 = vld [vmem:[%s2279 + $0x38f] sm:$0xff]
        %v2334 = vld [vmem:[%s2279 + $0x3a7] sm:$0xff]
        %v2335 = vld [vmem:[%s2279 + $0x3af] sm:$0xff]
        %v2336 = vld [vmem:[%s2279 + $0x3c7] sm:$0xff]
        %v2337 = vld [vmem:[%s2279 + $0x3cf] sm:$0xff]
        %v2338 = vld [vmem:[%s2279 + $0x3e7] sm:$0xff]
        %v2339 = vld [vmem:[%s2279 + $0x3ef] sm:$0xff]
        %v2340 = vld [vmem:[%s2279 + $0x407] sm:$0xff]
        %v2341 = vld [vmem:[%s2279 + $0x40f] sm:$0xff]
        %v2342 = vld [vmem:[%s2279 + $0x427] sm:$0xff]
        %v2343 = vld [vmem:[%s2279 + $0x42f] sm:$0xff]
        %v2344 = vld [vmem:[#allocation8 + $0x6] sm:$0x1]
        %v2345 = vlaneseq
        %v2346 = vshrl.u32 %v2345, 7
        %v2347 = vsub.s32 0, %v2346
        %v2348 = vrot.slane %v2344, %v2347
        %v2349 = vmul.f32 %v2280, %v2348
        %v2350 = vmul.f32 %v2281, %v2348
        %v2351 = vmul.f32 %v2282, %v2348
        %v2352 = vmul.f32 %v2283, %v2348
        %v2353 = vmul.f32 %v2284, %v2348
        %v2354 = vmul.f32 %v2285, %v2348
        %v2355 = vmul.f32 %v2286, %v2348
        %v2356 = vmul.f32 %v2287, %v2348
        %v2357 = vmul.f32 %v2288, %v2348
        %v2358 = vmul.f32 %v2289, %v2348
        %v2359 = vmul.f32 %v2290, %v2348
        %v2360 = vmul.f32 %v2291, %v2348
        %v2361 = vmul.f32 %v2292, %v2348
        %v2362 = vmul.f32 %v2293, %v2348
        %v2363 = vmul.f32 %v2294, %v2348
        %v2364 = vmul.f32 %v2295, %v2348
        %v2365 = vmul.f32 %v2296, %v2348
        %v2366 = vmul.f32 %v2297, %v2348
        %v2367 = vmul.f32 %v2298, %v2348
        %v2368 = vmul.f32 %v2299, %v2348
        %v2369 = vmul.f32 %v2300, %v2348
        %v2370 = vmul.f32 %v2301, %v2348
        %v2371 = vmul.f32 %v2302, %v2348
        %v2372 = vmul.f32 %v2303, %v2348
        %v2373 = vmul.f32 %v2304, %v2348
        %v2374 = vmul.f32 %v2305, %v2348
        %v2375 = vmul.f32 %v2306, %v2348
        %v2376 = vmul.f32 %v2307, %v2348
        %v2377 = vmul.f32 %v2308, %v2348
        %v2378 = vmul.f32 %v2309, %v2348
        %v2379 = vmul.f32 %v2310, %v2348
        %v2380 = vmul.f32 %v2311, %v2348
        %v2381 = vmul.f32 %v2312, %v2348
        %v2382 = vmul.f32 %v2313, %v2348
        %v2383 = vmul.f32 %v2314, %v2348
        %v2384 = vmul.f32 %v2315, %v2348
        %v2385 = vmul.f32 %v2316, %v2348
        %v2386 = vmul.f32 %v2317, %v2348
        %v2387 = vmul.f32 %v2318, %v2348
        %v2388 = vmul.f32 %v2319, %v2348
        %v2389 = vmul.f32 %v2320, %v2348
        %v2390 = vmul.f32 %v2321, %v2348
        %v2391 = vmul.f32 %v2322, %v2348
        %v2392 = vmul.f32 %v2323, %v2348
        %v2393 = vmul.f32 %v2324, %v2348
        %v2394 = vmul.f32 %v2325, %v2348
        %v2395 = vmul.f32 %v2326, %v2348
        %v2396 = vmul.f32 %v2327, %v2348
        %v2397 = vmul.f32 %v2328, %v2348
        %v2398 = vmul.f32 %v2329, %v2348
        %v2399 = vmul.f32 %v2330, %v2348
        %v2400 = vmul.f32 %v2331, %v2348
        %v2401 = vmul.f32 %v2332, %v2348
        %v2402 = vmul.f32 %v2333, %v2348
        %v2403 = vmul.f32 %v2334, %v2348
        %v2404 = vmul.f32 %v2335, %v2348
        %v2405 = vmul.f32 %v2336, %v2348
        %v2406 = vmul.f32 %v2337, %v2348
        %v2407 = vmul.f32 %v2338, %v2348
        %v2408 = vmul.f32 %v2339, %v2348
        %v2409 = vmul.f32 %v2340, %v2348
        %v2410 = vmul.f32 %v2341, %v2348
        %v2411 = vmul.f32 %v2342, %v2348
        %v2412 = vmul.f32 %v2343, %v2348
        %v2413 = vadd.f32 %v2215, %v2349
        %v2414 = vadd.f32 %v2216, %v2350
        %v2415 = vadd.f32 %v2217, %v2351
        %v2416 = vadd.f32 %v2218, %v2352
        %v2417 = vadd.f32 %v2219, %v2353
        %v2418 = vadd.f32 %v2220, %v2354
        %v2419 = vadd.f32 %v2221, %v2355
        %v2420 = vadd.f32 %v2222, %v2356
        %v2421 = vadd.f32 %v2223, %v2357
        %v2422 = vadd.f32 %v2224, %v2358
        %v2423 = vadd.f32 %v2225, %v2359
        %v2424 = vadd.f32 %v2226, %v2360
        %v2425 = vadd.f32 %v2227, %v2361
        %v2426 = vadd.f32 %v2228, %v2362
        %v2427 = vadd.f32 %v2229, %v2363
        %v2428 = vadd.f32 %v2230, %v2364
        %v2429 = vadd.f32 %v2231, %v2365
        %v2430 = vadd.f32 %v2232, %v2366
        %v2431 = vadd.f32 %v2233, %v2367
        %v2432 = vadd.f32 %v2234, %v2368
        %v2433 = vadd.f32 %v2235, %v2369
        %v2434 = vadd.f32 %v2236, %v2370
        %v2435 = vadd.f32 %v2237, %v2371
        %v2436 = vadd.f32 %v2238, %v2372
        %v2437 = vadd.f32 %v2239, %v2373
        %v2438 = vadd.f32 %v2240, %v2374
        %v2439 = vadd.f32 %v2241, %v2375
        %v2440 = vadd.f32 %v2242, %v2376
        %v2441 = vadd.f32 %v2243, %v2377
        %v2442 = vadd.f32 %v2244, %v2378
        %v2443 = vadd.f32 %v2245, %v2379
        %v2444 = vadd.f32 %v2246, %v2380
        %v2445 = vadd.f32 %v2247, %v2381
        %v2446 = vadd.f32 %v2248, %v2382
        %v2447 = vadd.f32 %v2249, %v2383
        %v2448 = vadd.f32 %v2250, %v2384
        %v2449 = vadd.f32 %v2251, %v2385
        %v2450 = vadd.f32 %v2252, %v2386
        %v2451 = vadd.f32 %v2253, %v2387
        %v2452 = vadd.f32 %v2254, %v2388
        %v2453 = vadd.f32 %v2255, %v2389
        %v2454 = vadd.f32 %v2256, %v2390
        %v2455 = vadd.f32 %v2257, %v2391
        %v2456 = vadd.f32 %v2258, %v2392
        %v2457 = vadd.f32 %v2259, %v2393
        %v2458 = vadd.f32 %v2260, %v2394
        %v2459 = vadd.f32 %v2261, %v2395
        %v2460 = vadd.f32 %v2262, %v2396
        %v2461 = vadd.f32 %v2263, %v2397
        %v2462 = vadd.f32 %v2264, %v2398
        %v2463 = vadd.f32 %v2265, %v2399
        %v2464 = vadd.f32 %v2266, %v2400
        %v2465 = vadd.f32 %v2267, %v2401
        %v2466 = vadd.f32 %v2268, %v2402
        %v2467 = vadd.f32 %v2269, %v2403
        %v2468 = vadd.f32 %v2270, %v2404
        %v2469 = vadd.f32 %v2271, %v2405
        %v2470 = vadd.f32 %v2272, %v2406
        %v2471 = vadd.f32 %v2273, %v2407
        %v2472 = vadd.f32 %v2274, %v2408
        %v2473 = vadd.f32 %v2275, %v2409
        %v2474 = vadd.f32 %v2276, %v2410
        %v2475 = vadd.f32 %v2277, %v2411
        %v2476 = vadd.f32 %v2278, %v2412
        %v2477 = vld [vmem:[%s2279 + $0x8] sm:$0xff]
        %v2478 = vld [vmem:[%s2279 + $0x10] sm:$0xff]
        %v2479 = vld [vmem:[%s2279 + $0x28] sm:$0xff]
        %v2480 = vld [vmem:[%s2279 + $0x30] sm:$0xff]
        %v2481 = vld [vmem:[%s2279 + $0x48] sm:$0xff]
        %v2482 = vld [vmem:[%s2279 + $0x50] sm:$0xff]
        %v2483 = vld [vmem:[%s2279 + $0x68] sm:$0xff]
        %v2484 = vld [vmem:[%s2279 + $0x70] sm:$0xff]
        %v2485 = vld [vmem:[%s2279 + $0x88] sm:$0xff]
        %v2486 = vld [vmem:[%s2279 + $0x90] sm:$0xff]
        %v2487 = vld [vmem:[%s2279 + $0xa8] sm:$0xff]
        %v2488 = vld [vmem:[%s2279 + $0xb0] sm:$0xff]
        %v2489 = vld [vmem:[%s2279 + $0xc8] sm:$0xff]
        %v2490 = vld [vmem:[%s2279 + $0xd0] sm:$0xff]
        %v2491 = vld [vmem:[%s2279 + $0xe8] sm:$0xff]
        %v2492 = vld [vmem:[%s2279 + $0xf0] sm:$0xff]
        %v2493 = vld [vmem:[%s2279 + $0x108] sm:$0xff]
        %v2494 = vld [vmem:[%s2279 + $0x110] sm:$0xff]
        %v2495 = vld [vmem:[%s2279 + $0x128] sm:$0xff]
        %v2496 = vld [vmem:[%s2279 + $0x130] sm:$0xff]
        %v2497 = vld [vmem:[%s2279 + $0x148] sm:$0xff]
        %v2498 = vld [vmem:[%s2279 + $0x150] sm:$0xff]
        %v2499 = vld [vmem:[%s2279 + $0x168] sm:$0xff]
        %v2500 = vld [vmem:[%s2279 + $0x170] sm:$0xff]
        %v2501 = vld [vmem:[%s2279 + $0x188] sm:$0xff]
        %v2502 = vld [vmem:[%s2279 + $0x190] sm:$0xff]
        %v2503 = vld [vmem:[%s2279 + $0x1a8] sm:$0xff]
        %v2504 = vld [vmem:[%s2279 + $0x1b0] sm:$0xff]
        %v2505 = vld [vmem:[%s2279 + $0x1c8] sm:$0xff]
        %v2506 = vld [vmem:[%s2279 + $0x1d0] sm:$0xff]
        %v2507 = vld [vmem:[%s2279 + $0x1e8] sm:$0xff]
        %v2508 = vld [vmem:[%s2279 + $0x1f0] sm:$0xff]
        %v2509 = vld [vmem:[%s2279 + $0x248] sm:$0xff]
        %v2510 = vld [vmem:[%s2279 + $0x250] sm:$0xff]
        %v2511 = vld [vmem:[%s2279 + $0x268] sm:$0xff]
        %v2512 = vld [vmem:[%s2279 + $0x270] sm:$0xff]
        %v2513 = vld [vmem:[%s2279 + $0x288] sm:$0xff]
        %v2514 = vld [vmem:[%s2279 + $0x290] sm:$0xff]
        %v2515 = vld [vmem:[%s2279 + $0x2a8] sm:$0xff]
        %v2516 = vld [vmem:[%s2279 + $0x2b0] sm:$0xff]
        %v2517 = vld [vmem:[%s2279 + $0x2c8] sm:$0xff]
        %v2518 = vld [vmem:[%s2279 + $0x2d0] sm:$0xff]
        %v2519 = vld [vmem:[%s2279 + $0x2e8] sm:$0xff]
        %v2520 = vld [vmem:[%s2279 + $0x2f0] sm:$0xff]
        %v2521 = vld [vmem:[%s2279 + $0x308] sm:$0xff]
        %v2522 = vld [vmem:[%s2279 + $0x310] sm:$0xff]
        %v2523 = vld [vmem:[%s2279 + $0x328] sm:$0xff]
        %v2524 = vld [vmem:[%s2279 + $0x330] sm:$0xff]
        %v2525 = vld [vmem:[%s2279 + $0x348] sm:$0xff]
        %v2526 = vld [vmem:[%s2279 + $0x350] sm:$0xff]
        %v2527 = vld [vmem:[%s2279 + $0x368] sm:$0xff]
        %v2528 = vld [vmem:[%s2279 + $0x370] sm:$0xff]
        %v2529 = vld [vmem:[%s2279 + $0x388] sm:$0xff]
        %v2530 = vld [vmem:[%s2279 + $0x390] sm:$0xff]
        %v2531 = vld [vmem:[%s2279 + $0x3a8] sm:$0xff]
        %v2532 = vld [vmem:[%s2279 + $0x3b0] sm:$0xff]
        %v2533 = vld [vmem:[%s2279 + $0x3c8] sm:$0xff]
        %v2534 = vld [vmem:[%s2279 + $0x3d0] sm:$0xff]
        %v2535 = vld [vmem:[%s2279 + $0x3e8] sm:$0xff]
        %v2536 = vld [vmem:[%s2279 + $0x3f0] sm:$0xff]
        %v2537 = vld [vmem:[%s2279 + $0x408] sm:$0xff]
        %v2538 = vld [vmem:[%s2279 + $0x410] sm:$0xff]
        %v2539 = vld [vmem:[%s2279 + $0x428] sm:$0xff]
        %v2540 = vld [vmem:[%s2279 + $0x430] sm:$0xff]
        %v2541 = vld [vmem:[#allocation8 + $0x7] sm:$0x1]
        %v2542 = vlaneseq
        %v2543 = vshrl.u32 %v2542, 7
        %v2544 = vsub.s32 0, %v2543
        %v2545 = vrot.slane %v2541, %v2544
        %v2546 = vmul.f32 %v2477, %v2545
        %v2547 = vmul.f32 %v2478, %v2545
        %v2548 = vmul.f32 %v2479, %v2545
        %v2549 = vmul.f32 %v2480, %v2545
        %v2550 = vmul.f32 %v2481, %v2545
        %v2551 = vmul.f32 %v2482, %v2545
        %v2552 = vmul.f32 %v2483, %v2545
        %v2553 = vmul.f32 %v2484, %v2545
        %v2554 = vmul.f32 %v2485, %v2545
        %v2555 = vmul.f32 %v2486, %v2545
        %v2556 = vmul.f32 %v2487, %v2545
        %v2557 = vmul.f32 %v2488, %v2545
        %v2558 = vmul.f32 %v2489, %v2545
        %v2559 = vmul.f32 %v2490, %v2545
        %v2560 = vmul.f32 %v2491, %v2545
        %v2561 = vmul.f32 %v2492, %v2545
        %v2562 = vmul.f32 %v2493, %v2545
        %v2563 = vmul.f32 %v2494, %v2545
        %v2564 = vmul.f32 %v2495, %v2545
        %v2565 = vmul.f32 %v2496, %v2545
        %v2566 = vmul.f32 %v2497, %v2545
        %v2567 = vmul.f32 %v2498, %v2545
        %v2568 = vmul.f32 %v2499, %v2545
        %v2569 = vmul.f32 %v2500, %v2545
        %v2570 = vmul.f32 %v2501, %v2545
        %v2571 = vmul.f32 %v2502, %v2545
        %v2572 = vmul.f32 %v2503, %v2545
        %v2573 = vmul.f32 %v2504, %v2545
        %v2574 = vmul.f32 %v2505, %v2545
        %v2575 = vmul.f32 %v2506, %v2545
        %v2576 = vmul.f32 %v2507, %v2545
        %v2577 = vmul.f32 %v2508, %v2545
        %v2578 = vmul.f32 %v2509, %v2545
        %v2579 = vmul.f32 %v2510, %v2545
        %v2580 = vmul.f32 %v2511, %v2545
        %v2581 = vmul.f32 %v2512, %v2545
        %v2582 = vmul.f32 %v2513, %v2545
        %v2583 = vmul.f32 %v2514, %v2545
        %v2584 = vmul.f32 %v2515, %v2545
        %v2585 = vmul.f32 %v2516, %v2545
        %v2586 = vmul.f32 %v2517, %v2545
        %v2587 = vmul.f32 %v2518, %v2545
        %v2588 = vmul.f32 %v2519, %v2545
        %v2589 = vmul.f32 %v2520, %v2545
        %v2590 = vmul.f32 %v2521, %v2545
        %v2591 = vmul.f32 %v2522, %v2545
        %v2592 = vmul.f32 %v2523, %v2545
        %v2593 = vmul.f32 %v2524, %v2545
        %v2594 = vmul.f32 %v2525, %v2545
        %v2595 = vmul.f32 %v2526, %v2545
        %v2596 = vmul.f32 %v2527, %v2545
        %v2597 = vmul.f32 %v2528, %v2545
        %v2598 = vmul.f32 %v2529, %v2545
        %v2599 = vmul.f32 %v2530, %v2545
        %v2600 = vmul.f32 %v2531, %v2545
        %v2601 = vmul.f32 %v2532, %v2545
        %v2602 = vmul.f32 %v2533, %v2545
        %v2603 = vmul.f32 %v2534, %v2545
        %v2604 = vmul.f32 %v2535, %v2545
        %v2605 = vmul.f32 %v2536, %v2545
        %v2606 = vmul.f32 %v2537, %v2545
        %v2607 = vmul.f32 %v2538, %v2545
        %v2608 = vmul.f32 %v2539, %v2545
        %v2609 = vmul.f32 %v2540, %v2545
        %v2610 = vadd.f32 %v2413, %v2546
        %v2611 = vadd.f32 %v2414, %v2547
        %v2612 = vadd.f32 %v2415, %v2548
        %v2613 = vadd.f32 %v2416, %v2549
        %v2614 = vadd.f32 %v2417, %v2550
        %v2615 = vadd.f32 %v2418, %v2551
        %v2616 = vadd.f32 %v2419, %v2552
        %v2617 = vadd.f32 %v2420, %v2553
        %v2618 = vadd.f32 %v2421, %v2554
        %v2619 = vadd.f32 %v2422, %v2555
        %v2620 = vadd.f32 %v2423, %v2556
        %v2621 = vadd.f32 %v2424, %v2557
        %v2622 = vadd.f32 %v2425, %v2558
        %v2623 = vadd.f32 %v2426, %v2559
        %v2624 = vadd.f32 %v2427, %v2560
        %v2625 = vadd.f32 %v2428, %v2561
        %v2626 = vadd.f32 %v2429, %v2562
        %v2627 = vadd.f32 %v2430, %v2563
        %v2628 = vadd.f32 %v2431, %v2564
        %v2629 = vadd.f32 %v2432, %v2565
        %v2630 = vadd.f32 %v2433, %v2566
        %v2631 = vadd.f32 %v2434, %v2567
        %v2632 = vadd.f32 %v2435, %v2568
        %v2633 = vadd.f32 %v2436, %v2569
        %v2634 = vadd.f32 %v2437, %v2570
        %v2635 = vadd.f32 %v2438, %v2571
        %v2636 = vadd.f32 %v2439, %v2572
        %v2637 = vadd.f32 %v2440, %v2573
        %v2638 = vadd.f32 %v2441, %v2574
        %v2639 = vadd.f32 %v2442, %v2575
        %v2640 = vadd.f32 %v2443, %v2576
        %v2641 = vadd.f32 %v2444, %v2577
        %v2642 = vadd.f32 %v2445, %v2578
        %v2643 = vadd.f32 %v2446, %v2579
        %v2644 = vadd.f32 %v2447, %v2580
        %v2645 = vadd.f32 %v2448, %v2581
        %v2646 = vadd.f32 %v2449, %v2582
        %v2647 = vadd.f32 %v2450, %v2583
        %v2648 = vadd.f32 %v2451, %v2584
        %v2649 = vadd.f32 %v2452, %v2585
        %v2650 = vadd.f32 %v2453, %v2586
        %v2651 = vadd.f32 %v2454, %v2587
        %v2652 = vadd.f32 %v2455, %v2588
        %v2653 = vadd.f32 %v2456, %v2589
        %v2654 = vadd.f32 %v2457, %v2590
        %v2655 = vadd.f32 %v2458, %v2591
        %v2656 = vadd.f32 %v2459, %v2592
        %v2657 = vadd.f32 %v2460, %v2593
        %v2658 = vadd.f32 %v2461, %v2594
        %v2659 = vadd.f32 %v2462, %v2595
        %v2660 = vadd.f32 %v2463, %v2596
        %v2661 = vadd.f32 %v2464, %v2597
        %v2662 = vadd.f32 %v2465, %v2598
        %v2663 = vadd.f32 %v2466, %v2599
        %v2664 = vadd.f32 %v2467, %v2600
        %v2665 = vadd.f32 %v2468, %v2601
        %v2666 = vadd.f32 %v2469, %v2602
        %v2667 = vadd.f32 %v2470, %v2603
        %v2668 = vadd.f32 %v2471, %v2604
        %v2669 = vadd.f32 %v2472, %v2605
        %v2670 = vadd.f32 %v2473, %v2606
        %v2671 = vadd.f32 %v2474, %v2607
        %v2672 = vadd.f32 %v2475, %v2608
        %v2673 = vadd.f32 %v2476, %v2609
        %v2674 = vld [vmem:[%s2279 + $0x9] sm:$0xff]
        %v2675 = vld [vmem:[%s2279 + $0x11] sm:$0xff]
        %v2676 = vld [vmem:[%s2279 + $0x29] sm:$0xff]
        %v2677 = vld [vmem:[%s2279 + $0x31] sm:$0xff]
        %v2678 = vld [vmem:[%s2279 + $0x49] sm:$0xff]
        %v2679 = vld [vmem:[%s2279 + $0x51] sm:$0xff]
        %v2680 = vld [vmem:[%s2279 + $0x69] sm:$0xff]
        %v2681 = vld [vmem:[%s2279 + $0x71] sm:$0xff]
        %v2682 = vld [vmem:[%s2279 + $0x89] sm:$0xff]
        %v2683 = vld [vmem:[%s2279 + $0x91] sm:$0xff]
        %v2684 = vld [vmem:[%s2279 + $0xa9] sm:$0xff]
        %v2685 = vld [vmem:[%s2279 + $0xb1] sm:$0xff]
        %v2686 = vld [vmem:[%s2279 + $0xc9] sm:$0xff]
        %v2687 = vld [vmem:[%s2279 + $0xd1] sm:$0xff]
        %v2688 = vld [vmem:[%s2279 + $0xe9] sm:$0xff]
        %v2689 = vld [vmem:[%s2279 + $0xf1] sm:$0xff]
        %v2690 = vld [vmem:[%s2279 + $0x109] sm:$0xff]
        %v2691 = vld [vmem:[%s2279 + $0x111] sm:$0xff]
        %v2692 = vld [vmem:[%s2279 + $0x129] sm:$0xff]
        %v2693 = vld [vmem:[%s2279 + $0x131] sm:$0xff]
        %v2694 = vld [vmem:[%s2279 + $0x149] sm:$0xff]
        %v2695 = vld [vmem:[%s2279 + $0x151] sm:$0xff]
        %v2696 = vld [vmem:[%s2279 + $0x169] sm:$0xff]
        %v2697 = vld [vmem:[%s2279 + $0x171] sm:$0xff]
        %v2698 = vld [vmem:[%s2279 + $0x189] sm:$0xff]
        %v2699 = vld [vmem:[%s2279 + $0x191] sm:$0xff]
        %v2700 = vld [vmem:[%s2279 + $0x1a9] sm:$0xff]
        %v2701 = vld [vmem:[%s2279 + $0x1b1] sm:$0xff]
        %v2702 = vld [vmem:[%s2279 + $0x1c9] sm:$0xff]
        %v2703 = vld [vmem:[%s2279 + $0x1d1] sm:$0xff]
        %v2704 = vld [vmem:[%s2279 + $0x1e9] sm:$0xff]
        %v2705 = vld [vmem:[%s2279 + $0x1f1] sm:$0xff]
        %v2706 = vld [vmem:[%s2279 + $0x249] sm:$0xff]
        %v2707 = vld [vmem:[%s2279 + $0x251] sm:$0xff]
        %v2708 = vld [vmem:[%s2279 + $0x269] sm:$0xff]
        %v2709 = vld [vmem:[%s2279 + $0x271] sm:$0xff]
        %v2710 = vld [vmem:[%s2279 + $0x289] sm:$0xff]
        %v2711 = vld [vmem:[%s2279 + $0x291] sm:$0xff]
        %v2712 = vld [vmem:[%s2279 + $0x2a9] sm:$0xff]
        %v2713 = vld [vmem:[%s2279 + $0x2b1] sm:$0xff]
        %v2714 = vld [vmem:[%s2279 + $0x2c9] sm:$0xff]
        %v2715 = vld [vmem:[%s2279 + $0x2d1] sm:$0xff]
        %v2716 = vld [vmem:[%s2279 + $0x2e9] sm:$0xff]
        %v2717 = vld [vmem:[%s2279 + $0x2f1] sm:$0xff]
        %v2718 = vld [vmem:[%s2279 + $0x309] sm:$0xff]
        %v2719 = vld [vmem:[%s2279 + $0x311] sm:$0xff]
        %v2720 = vld [vmem:[%s2279 + $0x329] sm:$0xff]
        %v2721 = vld [vmem:[%s2279 + $0x331] sm:$0xff]
        %v2722 = vld [vmem:[%s2279 + $0x349] sm:$0xff]
        %v2723 = vld [vmem:[%s2279 + $0x351] sm:$0xff]
        %v2724 = vld [vmem:[%s2279 + $0x369] sm:$0xff]
        %v2725 = vld [vmem:[%s2279 + $0x371] sm:$0xff]
        %v2726 = vld [vmem:[%s2279 + $0x389] sm:$0xff]
        %v2727 = vld [vmem:[%s2279 + $0x391] sm:$0xff]
        %v2728 = vld [vmem:[%s2279 + $0x3a9] sm:$0xff]
        %v2729 = vld [vmem:[%s2279 + $0x3b1] sm:$0xff]
        %v2730 = vld [vmem:[%s2279 + $0x3c9] sm:$0xff]
        %v2731 = vld [vmem:[%s2279 + $0x3d1] sm:$0xff]
        %v2732 = vld [vmem:[%s2279 + $0x3e9] sm:$0xff]
        %v2733 = vld [vmem:[%s2279 + $0x3f1] sm:$0xff]
        %v2734 = vld [vmem:[%s2279 + $0x409] sm:$0xff]
        %v2735 = vld [vmem:[%s2279 + $0x411] sm:$0xff]
        %v2736 = vld [vmem:[%s2279 + $0x429] sm:$0xff]
        %v2737 = vld [vmem:[%s2279 + $0x431] sm:$0xff]
        %v2738 = vld [vmem:[#allocation8 + $0x8] sm:$0x1]
        %v2739 = vlaneseq
        %v2740 = vshrl.u32 %v2739, 7
        %v2741 = vsub.s32 0, %v2740
        %v2742 = vrot.slane %v2738, %v2741
        %v2743 = vmul.f32 %v2674, %v2742
        %v2744 = vmul.f32 %v2675, %v2742
        %v2745 = vmul.f32 %v2676, %v2742
        %v2746 = vmul.f32 %v2677, %v2742
        %v2747 = vmul.f32 %v2678, %v2742
        %v2748 = vmul.f32 %v2679, %v2742
        %v2749 = vmul.f32 %v2680, %v2742
        %v2750 = vmul.f32 %v2681, %v2742
        %v2751 = vmul.f32 %v2682, %v2742
        %v2752 = vmul.f32 %v2683, %v2742
        %v2753 = vmul.f32 %v2684, %v2742
        %v2754 = vmul.f32 %v2685, %v2742
        %v2755 = vmul.f32 %v2686, %v2742
        %v2756 = vmul.f32 %v2687, %v2742
        %v2757 = vmul.f32 %v2688, %v2742
        %v2758 = vmul.f32 %v2689, %v2742
        %v2759 = vmul.f32 %v2690, %v2742
        %v2760 = vmul.f32 %v2691, %v2742
        %v2761 = vmul.f32 %v2692, %v2742
        %v2762 = vmul.f32 %v2693, %v2742
        %v2763 = vmul.f32 %v2694, %v2742
        %v2764 = vmul.f32 %v2695, %v2742
        %v2765 = vmul.f32 %v2696, %v2742
        %v2766 = vmul.f32 %v2697, %v2742
        %v2767 = vmul.f32 %v2698, %v2742
        %v2768 = vmul.f32 %v2699, %v2742
        %v2769 = vmul.f32 %v2700, %v2742
        %v2770 = vmul.f32 %v2701, %v2742
        %v2771 = vmul.f32 %v2702, %v2742
        %v2772 = vmul.f32 %v2703, %v2742
        %v2773 = vmul.f32 %v2704, %v2742
        %v2774 = vmul.f32 %v2705, %v2742
        %v2775 = vmul.f32 %v2706, %v2742
        %v2776 = vmul.f32 %v2707, %v2742
        %v2777 = vmul.f32 %v2708, %v2742
        %v2778 = vmul.f32 %v2709, %v2742
        %v2779 = vmul.f32 %v2710, %v2742
        %v2780 = vmul.f32 %v2711, %v2742
        %v2781 = vmul.f32 %v2712, %v2742
        %v2782 = vmul.f32 %v2713, %v2742
        %v2783 = vmul.f32 %v2714, %v2742
        %v2784 = vmul.f32 %v2715, %v2742
        %v2785 = vmul.f32 %v2716, %v2742
        %v2786 = vmul.f32 %v2717, %v2742
        %v2787 = vmul.f32 %v2718, %v2742
        %v2788 = vmul.f32 %v2719, %v2742
        %v2789 = vmul.f32 %v2720, %v2742
        %v2790 = vmul.f32 %v2721, %v2742
        %v2791 = vmul.f32 %v2722, %v2742
        %v2792 = vmul.f32 %v2723, %v2742
        %v2793 = vmul.f32 %v2724, %v2742
        %v2794 = vmul.f32 %v2725, %v2742
        %v2795 = vmul.f32 %v2726, %v2742
        %v2796 = vmul.f32 %v2727, %v2742
        %v2797 = vmul.f32 %v2728, %v2742
        %v2798 = vmul.f32 %v2729, %v2742
        %v2799 = vmul.f32 %v2730, %v2742
        %v2800 = vmul.f32 %v2731, %v2742
        %v2801 = vmul.f32 %v2732, %v2742
        %v2802 = vmul.f32 %v2733, %v2742
        %v2803 = vmul.f32 %v2734, %v2742
        %v2804 = vmul.f32 %v2735, %v2742
        %v2805 = vmul.f32 %v2736, %v2742
        %v2806 = vmul.f32 %v2737, %v2742
        %v2807 = vadd.f32 %v2610, %v2743
        %v2808 = vadd.f32 %v2611, %v2744
        %v2809 = vadd.f32 %v2612, %v2745
        %v2810 = vadd.f32 %v2613, %v2746
        %v2811 = vadd.f32 %v2614, %v2747
        %v2812 = vadd.f32 %v2615, %v2748
        %v2813 = vadd.f32 %v2616, %v2749
        %v2814 = vadd.f32 %v2617, %v2750
        %v2815 = vadd.f32 %v2618, %v2751
        %v2816 = vadd.f32 %v2619, %v2752
        %v2817 = vadd.f32 %v2620, %v2753
        %v2818 = vadd.f32 %v2621, %v2754
        %v2819 = vadd.f32 %v2622, %v2755
        %v2820 = vadd.f32 %v2623, %v2756
        %v2821 = vadd.f32 %v2624, %v2757
        %v2822 = vadd.f32 %v2625, %v2758
        %v2823 = vadd.f32 %v2626, %v2759
        %v2824 = vadd.f32 %v2627, %v2760
        %v2825 = vadd.f32 %v2628, %v2761
        %v2826 = vadd.f32 %v2629, %v2762
        %v2827 = vadd.f32 %v2630, %v2763
        %v2828 = vadd.f32 %v2631, %v2764
        %v2829 = vadd.f32 %v2632, %v2765
        %v2830 = vadd.f32 %v2633, %v2766
        %v2831 = vadd.f32 %v2634, %v2767
        %v2832 = vadd.f32 %v2635, %v2768
        %v2833 = vadd.f32 %v2636, %v2769
        %v2834 = vadd.f32 %v2637, %v2770
        %v2835 = vadd.f32 %v2638, %v2771
        %v2836 = vadd.f32 %v2639, %v2772
        %v2837 = vadd.f32 %v2640, %v2773
        %v2838 = vadd.f32 %v2641, %v2774
        %v2839 = vadd.f32 %v2642, %v2775
        %v2840 = vadd.f32 %v2643, %v2776
        %v2841 = vadd.f32 %v2644, %v2777
        %v2842 = vadd.f32 %v2645, %v2778
        %v2843 = vadd.f32 %v2646, %v2779
        %v2844 = vadd.f32 %v2647, %v2780
        %v2845 = vadd.f32 %v2648, %v2781
        %v2846 = vadd.f32 %v2649, %v2782
        %v2847 = vadd.f32 %v2650, %v2783
        %v2848 = vadd.f32 %v2651, %v2784
        %v2849 = vadd.f32 %v2652, %v2785
        %v2850 = vadd.f32 %v2653, %v2786
        %v2851 = vadd.f32 %v2654, %v2787
        %v2852 = vadd.f32 %v2655, %v2788
        %v2853 = vadd.f32 %v2656, %v2789
        %v2854 = vadd.f32 %v2657, %v2790
        %v2855 = vadd.f32 %v2658, %v2791
        %v2856 = vadd.f32 %v2659, %v2792
        %v2857 = vadd.f32 %v2660, %v2793
        %v2858 = vadd.f32 %v2661, %v2794
        %v2859 = vadd.f32 %v2662, %v2795
        %v2860 = vadd.f32 %v2663, %v2796
        %v2861 = vadd.f32 %v2664, %v2797
        %v2862 = vadd.f32 %v2665, %v2798
        %v2863 = vadd.f32 %v2666, %v2799
        %v2864 = vadd.f32 %v2667, %v2800
        %v2865 = vadd.f32 %v2668, %v2801
        %v2866 = vadd.f32 %v2669, %v2802
        %v2867 = vadd.f32 %v2670, %v2803
        %v2868 = vadd.f32 %v2671, %v2804
        %v2869 = vadd.f32 %v2672, %v2805
        %v2870 = vadd.f32 %v2673, %v2806
        %v2871 = vld [vmem:[%s4] sm:$0x1]
        %v2873 = vlaneseq
        %v2874 = vshrl.u32 %v2873, 7
        %v2875 = vsub.s32 0, %v2874
        %v2876 = vrot.slane %v2871, %v2875
        %v2878 = vadd.f32 %v2807, %v2876
        %v2879 = vadd.f32 %v2808, %v2876
        %v2880 = vadd.f32 %v2809, %v2876
        %v2881 = vadd.f32 %v2810, %v2876
        %v2882 = vadd.f32 %v2811, %v2876
        %v2883 = vadd.f32 %v2812, %v2876
        %v2884 = vadd.f32 %v2813, %v2876
        %v2885 = vadd.f32 %v2814, %v2876
        %v2886 = vadd.f32 %v2815, %v2876
        %v2887 = vadd.f32 %v2816, %v2876
        %v2888 = vadd.f32 %v2817, %v2876
        %v2889 = vadd.f32 %v2818, %v2876
        %v2890 = vadd.f32 %v2819, %v2876
        %v2891 = vadd.f32 %v2820, %v2876
        %v2892 = vadd.f32 %v2821, %v2876
        %v2893 = vadd.f32 %v2822, %v2876
        %v2894 = vadd.f32 %v2823, %v2876
        %v2895 = vadd.f32 %v2824, %v2876
        %v2896 = vadd.f32 %v2825, %v2876
        %v2897 = vadd.f32 %v2826, %v2876
        %v2898 = vadd.f32 %v2827, %v2876
        %v2899 = vadd.f32 %v2828, %v2876
        %v2900 = vadd.f32 %v2829, %v2876
        %v2901 = vadd.f32 %v2830, %v2876
        %v2902 = vadd.f32 %v2831, %v2876
        %v2903 = vadd.f32 %v2832, %v2876
        %v2904 = vadd.f32 %v2833, %v2876
        %v2905 = vadd.f32 %v2834, %v2876
        %v2906 = vadd.f32 %v2835, %v2876
        %v2907 = vadd.f32 %v2836, %v2876
        %v2908 = vadd.f32 %v2837, %v2876
        %v2909 = vadd.f32 %v2838, %v2876
        %v2910 = vadd.f32 %v2839, %v2876
        %v2911 = vadd.f32 %v2840, %v2876
        %v2912 = vadd.f32 %v2841, %v2876
        %v2913 = vadd.f32 %v2842, %v2876
        %v2914 = vadd.f32 %v2843, %v2876
        %v2915 = vadd.f32 %v2844, %v2876
        %v2916 = vadd.f32 %v2845, %v2876
        %v2917 = vadd.f32 %v2846, %v2876
        %v2918 = vadd.f32 %v2847, %v2876
        %v2919 = vadd.f32 %v2848, %v2876
        %v2920 = vadd.f32 %v2849, %v2876
        %v2921 = vadd.f32 %v2850, %v2876
        %v2922 = vadd.f32 %v2851, %v2876
        %v2923 = vadd.f32 %v2852, %v2876
        %v2924 = vadd.f32 %v2853, %v2876
        %v2925 = vadd.f32 %v2854, %v2876
        %v2926 = vadd.f32 %v2855, %v2876
        %v2927 = vadd.f32 %v2856, %v2876
        %v2928 = vadd.f32 %v2857, %v2876
        %v2929 = vadd.f32 %v2858, %v2876
        %v2930 = vadd.f32 %v2859, %v2876
        %v2931 = vadd.f32 %v2860, %v2876
        %v2932 = vadd.f32 %v2861, %v2876
        %v2933 = vadd.f32 %v2862, %v2876
        %v2934 = vadd.f32 %v2863, %v2876
        %v2935 = vadd.f32 %v2864, %v2876
        %v2936 = vadd.f32 %v2865, %v2876
        %v2937 = vadd.f32 %v2866, %v2876
        %v2938 = vadd.f32 %v2867, %v2876
        %v2939 = vadd.f32 %v2868, %v2876
        %v2940 = vadd.f32 %v2869, %v2876
        %v2941 = vadd.f32 %v2870, %v2876
        %v2942 = vmax.f32 %v2878, 0.0
        %v2943 = vmax.f32 %v2879, 0.0
        %v2944 = vmax.f32 %v2880, 0.0
        %v2945 = vmax.f32 %v2881, 0.0
        %v2946 = vmax.f32 %v2882, 0.0
        %v2947 = vmax.f32 %v2883, 0.0
        %v2948 = vmax.f32 %v2884, 0.0
        %v2949 = vmax.f32 %v2885, 0.0
        %v2950 = vmax.f32 %v2886, 0.0
        %v2951 = vmax.f32 %v2887, 0.0
        %v2952 = vmax.f32 %v2888, 0.0
        %v2953 = vmax.f32 %v2889, 0.0
        %v2954 = vmax.f32 %v2890, 0.0
        %v2955 = vmax.f32 %v2891, 0.0
        %v2956 = vmax.f32 %v2892, 0.0
        %v2957 = vmax.f32 %v2893, 0.0
        %v2958 = vmax.f32 %v2894, 0.0
        %v2959 = vmax.f32 %v2895, 0.0
        %v2960 = vmax.f32 %v2896, 0.0
        %v2961 = vmax.f32 %v2897, 0.0
        %v2962 = vmax.f32 %v2898, 0.0
        %v2963 = vmax.f32 %v2899, 0.0
        %v2964 = vmax.f32 %v2900, 0.0
        %v2965 = vmax.f32 %v2901, 0.0
        %v2966 = vmax.f32 %v2902, 0.0
        %v2967 = vmax.f32 %v2903, 0.0
        %v2968 = vmax.f32 %v2904, 0.0
        %v2969 = vmax.f32 %v2905, 0.0
        %v2970 = vmax.f32 %v2906, 0.0
        %v2971 = vmax.f32 %v2907, 0.0
        %v2972 = vmax.f32 %v2908, 0.0
        %v2973 = vmax.f32 %v2909, 0.0
        %v2974 = vmax.f32 %v2910, 0.0
        %v2975 = vmax.f32 %v2911, 0.0
        %v2976 = vmax.f32 %v2912, 0.0
        %v2977 = vmax.f32 %v2913, 0.0
        %v2978 = vmax.f32 %v2914, 0.0
        %v2979 = vmax.f32 %v2915, 0.0
        %v2980 = vmax.f32 %v2916, 0.0
        %v2981 = vmax.f32 %v2917, 0.0
        %v2982 = vmax.f32 %v2918, 0.0
        %v2983 = vmax.f32 %v2919, 0.0
        %v2984 = vmax.f32 %v2920, 0.0
        %v2985 = vmax.f32 %v2921, 0.0
        %v2986 = vmax.f32 %v2922, 0.0
        %v2987 = vmax.f32 %v2923, 0.0
        %v2988 = vmax.f32 %v2924, 0.0
        %v2989 = vmax.f32 %v2925, 0.0
        %v2990 = vmax.f32 %v2926, 0.0
        %v2991 = vmax.f32 %v2927, 0.0
        %v2992 = vmax.f32 %v2928, 0.0
        %v2993 = vmax.f32 %v2929, 0.0
        %v2994 = vmax.f32 %v2930, 0.0
        %v2995 = vmax.f32 %v2931, 0.0
        %v2996 = vmax.f32 %v2932, 0.0
        %v2997 = vmax.f32 %v2933, 0.0
        %v2998 = vmax.f32 %v2934, 0.0
        %v2999 = vmax.f32 %v2935, 0.0
        %v3000 = vmax.f32 %v2936, 0.0
        %v3001 = vmax.f32 %v2937, 0.0
        %v3002 = vmax.f32 %v2938, 0.0
        %v3003 = vmax.f32 %v2939, 0.0
        %v3004 = vmax.f32 %v2940, 0.0
        %v3005 = vmax.f32 %v2941, 0.0
        %v3006 = vpack.c.bf16 %v2943, %v2942
        %v3007 = vpack.c.bf16 %v2945, %v2944
        %v3008 = vpack.c.bf16 %v2947, %v2946
        %v3009 = vpack.c.bf16 %v2949, %v2948
        %v3010 = vpack.c.bf16 %v2951, %v2950
        %v3011 = vpack.c.bf16 %v2953, %v2952
        %v3012 = vpack.c.bf16 %v2955, %v2954
        %v3013 = vpack.c.bf16 %v2957, %v2956
        %v3014 = vpack.c.bf16 %v2959, %v2958
        %v3015 = vpack.c.bf16 %v2961, %v2960
        %v3016 = vpack.c.bf16 %v2963, %v2962
        %v3017 = vpack.c.bf16 %v2965, %v2964
        %v3018 = vpack.c.bf16 %v2967, %v2966
        %v3019 = vpack.c.bf16 %v2969, %v2968
        %v3020 = vpack.c.bf16 %v2971, %v2970
        %v3021 = vpack.c.bf16 %v2973, %v2972
        %v3022 = vpack.c.bf16 %v2975, %v2974
        %v3023 = vpack.c.bf16 %v2977, %v2976
        %v3024 = vpack.c.bf16 %v2979, %v2978
        %v3025 = vpack.c.bf16 %v2981, %v2980
        %v3026 = vpack.c.bf16 %v2983, %v2982
        %v3027 = vpack.c.bf16 %v2985, %v2984
        %v3028 = vpack.c.bf16 %v2987, %v2986
        %v3029 = vpack.c.bf16 %v2989, %v2988
        %v3030 = vpack.c.bf16 %v2991, %v2990
        %v3031 = vpack.c.bf16 %v2993, %v2992
        %v3032 = vpack.c.bf16 %v2995, %v2994
        %v3033 = vpack.c.bf16 %v2997, %v2996
        %v3034 = vpack.c.bf16 %v2999, %v2998
        %v3035 = vpack.c.bf16 %v3001, %v3000
        %v3036 = vpack.c.bf16 %v3003, %v3002
        %v3037 = vpack.c.bf16 %v3005, %v3004
        %v3038 = vld [vmem:[#allocation9] sm:$0xf]
        %v3039 = vld [vmem:[#allocation9 + $0x4] sm:$0xf]
        %v3040 = vld [vmem:[#allocation9 + $0x8] sm:$0xf]
        %v3041 = vld [vmem:[#allocation9 + $0xc] sm:$0xf]
        %v3042 = vld [vmem:[#allocation9 + $0x10] sm:$0xf]
        %v3043 = vld [vmem:[#allocation9 + $0x14] sm:$0xf]
        %v3044 = vld [vmem:[#allocation9 + $0x18] sm:$0xf]
        %v3045 = vld [vmem:[#allocation9 + $0x1c] sm:$0xf]
        %v3046 = vld [vmem:[#allocation9 + $0x20] sm:$0xf]
        %v3047 = vld [vmem:[#allocation9 + $0x24] sm:$0xf]
        %v3048 = vld [vmem:[#allocation9 + $0x28] sm:$0xf]
        %v3049 = vld [vmem:[#allocation9 + $0x2c] sm:$0xf]
        %v3050 = vld [vmem:[#allocation9 + $0x30] sm:$0xf]
        %v3051 = vld [vmem:[#allocation9 + $0x34] sm:$0xf]
        %v3052 = vld [vmem:[#allocation9 + $0x38] sm:$0xf]
        %v3053 = vld [vmem:[#allocation9 + $0x3c] sm:$0xf]
        %v3054 = vld [vmem:[%s6] sm:$0x1]
        %v3056 = vlaneseq
        %v3057 = vshrl.u32 %v3056, 7
        %v3058 = vsub.s32 0, %v3057
        %v3059 = vrot.slane %v3054, %v3058
        %v3077 = vunpack.c.l.b16 %v3038
        %v3078 = vunpack.c.l.b16 %v3039
        %v3079 = vunpack.c.l.b16 %v3040
        %v3080 = vunpack.c.l.b16 %v3041
        %v3081 = vunpack.c.l.b16 %v3042
        %v3082 = vunpack.c.l.b16 %v3043
        %v3083 = vunpack.c.l.b16 %v3044
        %v3084 = vunpack.c.l.b16 %v3045
        %v3085 = vunpack.c.l.b16 %v3046
        %v3086 = vunpack.c.l.b16 %v3047
        %v3087 = vunpack.c.l.b16 %v3048
        %v3088 = vunpack.c.l.b16 %v3049
        %v3089 = vunpack.c.l.b16 %v3050
        %v3090 = vunpack.c.l.b16 %v3051
        %v3091 = vunpack.c.l.b16 %v3052
        %v3092 = vunpack.c.l.b16 %v3053
        %v3093 = vpack.c.b16 %v3078, %v3077
        %v3094 = vpack.c.b16 %v3080, %v3079
        %v3095 = vpack.c.b16 %v3082, %v3081
        %v3096 = vpack.c.b16 %v3084, %v3083
        %v3097 = vpack.c.b16 %v3086, %v3085
        %v3098 = vpack.c.b16 %v3088, %v3087
        %v3099 = vpack.c.b16 %v3090, %v3089
        %v3100 = vpack.c.b16 %v3092, %v3091
        %3109 = vmatprep.subr.bf16.mxu0 0
        %3110 = vmatpush1.bf16.msra.mxu0 %v3093
        %3111 = vmatprep.subr.bf16.mxu0 0
        %3112 = vmatpush1.bf16.msra.mxu0 %v3094
        %3113 = vmatprep.subr.bf16.mxu0 0
        %3114 = vmatpush1.bf16.msra.mxu0 %v3095
        %3115 = vmatprep.subr.bf16.mxu0 0
        %3116 = vmatpush1.bf16.msra.mxu0 %v3096
        %3117 = vmatprep.subr.bf16.mxu0 0
        %3118 = vmatpush1.bf16.msra.mxu0 %v3097
        %3119 = vmatprep.subr.bf16.mxu0 0
        %3120 = vmatpush1.bf16.msra.mxu0 %v3098
        %3121 = vmatprep.subr.bf16.mxu0 0
        %3122 = vmatpush1.bf16.msra.mxu0 %v3099
        %3123 = vmatprep.subr.bf16.mxu0 0
        %3124 = vmatpush1.bf16.msra.mxu0 %v3100
        %3125 = vmatprep.subr.bf16.mxu0 0
        %3126 = vmatpush1.bf16.msra.mxu0 0
        %3127 = vmatprep.subr.bf16.mxu0 0
        %3128 = vmatpush1.bf16.msra.mxu0 0
        %3129 = vmatprep.subr.bf16.mxu0 0
        %3130 = vmatpush1.bf16.msra.mxu0 0
        %3131 = vmatprep.subr.bf16.mxu0 0
        %3132 = vmatpush1.bf16.msra.mxu0 0
        %3133 = vmatprep.subr.bf16.mxu0 0
        %3134 = vmatpush1.bf16.msra.mxu0 0
        %3135 = vmatprep.subr.bf16.mxu0 0
        %3136 = vmatpush1.bf16.msra.mxu0 0
        %3137 = vmatprep.subr.bf16.mxu0 0
        %3138 = vmatpush1.bf16.msra.mxu0 0
        %3139 = vmatprep.subr.bf16.mxu0 0
        %3140 = vmatpush1.bf16.msra.mxu0 0
        %3141 = vmatprep.mubr.bf16.mxu0 0
        %3142 = vmatmul.mubr.bf16.gmra.mrb[0].mxu0 %v3006
        %v3143 = vpop.f32.mrb[0].mxu0
        %v3144 = vadd.f32 %v3059, %v3143
        %v3145 = vpop.f32.mrb[0].mxu0
        %v3146 = vpop.f32.mrb[0].mxu0
        %v3147 = vadd.f32 %v3059, %v3146
        %v3148 = vpop.f32.mrb[0].mxu0
        %3149 = vmatprep.mubr.bf16.mxu0 0
        %3150 = vmatmul.mubr.bf16.gmra.mrb[0].mxu0 %v3007
        %v3151 = vpop.f32.mrb[0].mxu0
        %v3152 = vadd.f32 %v3059, %v3151
        %v3153 = vpop.f32.mrb[0].mxu0
        %v3154 = vpop.f32.mrb[0].mxu0
        %v3155 = vadd.f32 %v3059, %v3154
        %v3156 = vpop.f32.mrb[0].mxu0
        %3157 = vmatprep.mubr.bf16.mxu0 0
        %3158 = vmatmul.mubr.bf16.gmra.mrb[0].mxu0 %v3008
        %v3159 = vpop.f32.mrb[0].mxu0
        %v3160 = vadd.f32 %v3059, %v3159
        %v3161 = vpop.f32.mrb[0].mxu0
        %v3162 = vpop.f32.mrb[0].mxu0
        %v3163 = vadd.f32 %v3059, %v3162
        %v3164 = vpop.f32.mrb[0].mxu0
        %3165 = vmatprep.mubr.bf16.mxu0 0
        %3166 = vmatmul.mubr.bf16.gmra.mrb[0].mxu0 %v3009
        %v3167 = vpop.f32.mrb[0].mxu0
        %v3168 = vadd.f32 %v3059, %v3167
        %v3169 = vpop.f32.mrb[0].mxu0
        %v3170 = vpop.f32.mrb[0].mxu0
        %v3171 = vadd.f32 %v3059, %v3170
        %v3172 = vpop.f32.mrb[0].mxu0
        %3173 = vmatprep.mubr.bf16.mxu0 0
        %3174 = vmatmul.mubr.bf16.gmra.mrb[0].mxu0 %v3010
        %v3175 = vpop.f32.mrb[0].mxu0
        %v3176 = vadd.f32 %v3059, %v3175
        %v3177 = vpop.f32.mrb[0].mxu0
        %v3178 = vpop.f32.mrb[0].mxu0
        %v3179 = vadd.f32 %v3059, %v3178
        %v3180 = vpop.f32.mrb[0].mxu0
        %3181 = vmatprep.mubr.bf16.mxu0 0
        %3182 = vmatmul.mubr.bf16.gmra.mrb[0].mxu0 %v3011
        %v3183 = vpop.f32.mrb[0].mxu0
        %v3184 = vadd.f32 %v3059, %v3183
        %v3185 = vpop.f32.mrb[0].mxu0
        %v3186 = vpop.f32.mrb[0].mxu0
        %v3187 = vadd.f32 %v3059, %v3186
        %v3188 = vpop.f32.mrb[0].mxu0
        %3189 = vmatprep.mubr.bf16.mxu0 0
        %3190 = vmatmul.mubr.bf16.gmra.mrb[0].mxu0 %v3012
        %v3191 = vpop.f32.mrb[0].mxu0
        %v3192 = vadd.f32 %v3059, %v3191
        %v3193 = vpop.f32.mrb[0].mxu0
        %v3194 = vpop.f32.mrb[0].mxu0
        %v3195 = vadd.f32 %v3059, %v3194
        %v3196 = vpop.f32.mrb[0].mxu0
        %3197 = vmatprep.mubr.bf16.mxu0 0
        %3198 = vmatmul.mubr.bf16.gmra.mrb[0].mxu0 %v3013
        %v3199 = vpop.f32.mrb[0].mxu0
        %v3200 = vadd.f32 %v3059, %v3199
        %v3201 = vpop.f32.mrb[0].mxu0
        %v3202 = vpop.f32.mrb[0].mxu0
        %v3203 = vadd.f32 %v3059, %v3202
        %v3204 = vpop.f32.mrb[0].mxu0
        %3205 = vmatprep.mubr.bf16.mxu0 0
        %3206 = vmatmul.mubr.bf16.gmra.mrb[0].mxu0 %v3014
        %v3207 = vpop.f32.mrb[0].mxu0
        %v3208 = vadd.f32 %v3059, %v3207
        %v3209 = vpop.f32.mrb[0].mxu0
        %v3210 = vpop.f32.mrb[0].mxu0
        %v3211 = vadd.f32 %v3059, %v3210
        %v3212 = vpop.f32.mrb[0].mxu0
        %3213 = vmatprep.mubr.bf16.mxu0 0
        %3214 = vmatmul.mubr.bf16.gmra.mrb[0].mxu0 %v3015
        %v3215 = vpop.f32.mrb[0].mxu0
        %v3216 = vadd.f32 %v3059, %v3215
        %v3217 = vpop.f32.mrb[0].mxu0
        %v3218 = vpop.f32.mrb[0].mxu0
        %v3219 = vadd.f32 %v3059, %v3218
        %v3220 = vpop.f32.mrb[0].mxu0
        %3221 = vmatprep.mubr.bf16.mxu0 0
        %3222 = vmatmul.mubr.bf16.gmra.mrb[0].mxu0 %v3016
        %v3223 = vpop.f32.mrb[0].mxu0
        %v3224 = vadd.f32 %v3059, %v3223
        %v3225 = vpop.f32.mrb[0].mxu0
        %v3226 = vpop.f32.mrb[0].mxu0
        %v3227 = vadd.f32 %v3059, %v3226
        %v3228 = vpop.f32.mrb[0].mxu0
        %3229 = vmatprep.mubr.bf16.mxu0 0
        %3230 = vmatmul.mubr.bf16.gmra.mrb[0].mxu0 %v3017
        %v3231 = vpop.f32.mrb[0].mxu0
        %v3232 = vadd.f32 %v3059, %v3231
        %v3233 = vpop.f32.mrb[0].mxu0
        %v3234 = vpop.f32.mrb[0].mxu0
        %v3235 = vadd.f32 %v3059, %v3234
        %v3236 = vpop.f32.mrb[0].mxu0
        %3237 = vmatprep.mubr.bf16.mxu0 0
        %3238 = vmatmul.mubr.bf16.gmra.mrb[0].mxu0 %v3018
        %v3239 = vpop.f32.mrb[0].mxu0
        %v3240 = vadd.f32 %v3059, %v3239
        %v3241 = vpop.f32.mrb[0].mxu0
        %v3242 = vpop.f32.mrb[0].mxu0
        %v3243 = vadd.f32 %v3059, %v3242
        %v3244 = vpop.f32.mrb[0].mxu0
        %3245 = vmatprep.mubr.bf16.mxu0 0
        %3246 = vmatmul.mubr.bf16.gmra.mrb[0].mxu0 %v3019
        %v3247 = vpop.f32.mrb[0].mxu0
        %v3248 = vadd.f32 %v3059, %v3247
        %v3249 = vpop.f32.mrb[0].mxu0
        %v3250 = vpop.f32.mrb[0].mxu0
        %v3251 = vadd.f32 %v3059, %v3250
        %v3252 = vpop.f32.mrb[0].mxu0
        %3253 = vmatprep.mubr.bf16.mxu0 0
        %3254 = vmatmul.mubr.bf16.gmra.mrb[0].mxu0 %v3020
        %v3255 = vpop.f32.mrb[0].mxu0
        %v3256 = vadd.f32 %v3059, %v3255
        %v3257 = vpop.f32.mrb[0].mxu0
        %v3258 = vpop.f32.mrb[0].mxu0
        %v3259 = vadd.f32 %v3059, %v3258
        %v3260 = vpop.f32.mrb[0].mxu0
        %3261 = vmatprep.mubr.bf16.mxu0 0
        %3262 = vmatmul.mubr.bf16.gmra.mrb[0].mxu0 %v3021
        %v3263 = vpop.f32.mrb[0].mxu0
        %v3264 = vadd.f32 %v3059, %v3263
        %v3265 = vpop.f32.mrb[0].mxu0
        %v3266 = vpop.f32.mrb[0].mxu0
        %v3267 = vadd.f32 %v3059, %v3266
        %v3268 = vpop.f32.mrb[0].mxu0
        %3269 = vmatprep.mubr.bf16.mxu0 0
        %3270 = vmatmul.mubr.bf16.gmra.mrb[0].mxu0 %v3022
        %v3271 = vpop.f32.mrb[0].mxu0
        %v3272 = vadd.f32 %v3059, %v3271
        %v3273 = vpop.f32.mrb[0].mxu0
        %v3274 = vpop.f32.mrb[0].mxu0
        %v3275 = vadd.f32 %v3059, %v3274
        %v3276 = vpop.f32.mrb[0].mxu0
        %3277 = vmatprep.mubr.bf16.mxu0 0
        %3278 = vmatmul.mubr.bf16.gmra.mrb[0].mxu0 %v3023
        %v3279 = vpop.f32.mrb[0].mxu0
        %v3280 = vadd.f32 %v3059, %v3279
        %v3281 = vpop.f32.mrb[0].mxu0
        %v3282 = vpop.f32.mrb[0].mxu0
        %v3283 = vadd.f32 %v3059, %v3282
        %v3284 = vpop.f32.mrb[0].mxu0
        %3285 = vmatprep.mubr.bf16.mxu0 0
        %3286 = vmatmul.mubr.bf16.gmra.mrb[0].mxu0 %v3024
        %v3287 = vpop.f32.mrb[0].mxu0
        %v3288 = vadd.f32 %v3059, %v3287
        %v3289 = vpop.f32.mrb[0].mxu0
        %v3290 = vpop.f32.mrb[0].mxu0
        %v3291 = vadd.f32 %v3059, %v3290
        %v3292 = vpop.f32.mrb[0].mxu0
        %3293 = vmatprep.mubr.bf16.mxu0 0
        %3294 = vmatmul.mubr.bf16.gmra.mrb[0].mxu0 %v3025
        %v3295 = vpop.f32.mrb[0].mxu0
        %v3296 = vadd.f32 %v3059, %v3295
        %v3297 = vpop.f32.mrb[0].mxu0
        %v3298 = vpop.f32.mrb[0].mxu0
        %v3299 = vadd.f32 %v3059, %v3298
        %v3300 = vpop.f32.mrb[0].mxu0
        %3301 = vmatprep.mubr.bf16.mxu0 0
        %3302 = vmatmul.mubr.bf16.gmra.mrb[0].mxu0 %v3026
        %v3303 = vpop.f32.mrb[0].mxu0
        %v3304 = vadd.f32 %v3059, %v3303
        %v3305 = vpop.f32.mrb[0].mxu0
        %v3306 = vpop.f32.mrb[0].mxu0
        %v3307 = vadd.f32 %v3059, %v3306
        %v3308 = vpop.f32.mrb[0].mxu0
        %3309 = vmatprep.mubr.bf16.mxu0 0
        %3310 = vmatmul.mubr.bf16.gmra.mrb[0].mxu0 %v3027
        %v3311 = vpop.f32.mrb[0].mxu0
        %v3312 = vadd.f32 %v3059, %v3311
        %v3313 = vpop.f32.mrb[0].mxu0
        %v3314 = vpop.f32.mrb[0].mxu0
        %v3315 = vadd.f32 %v3059, %v3314
        %v3316 = vpop.f32.mrb[0].mxu0
        %3317 = vmatprep.mubr.bf16.mxu0 0
        %3318 = vmatmul.mubr.bf16.gmra.mrb[0].mxu0 %v3028
        %v3319 = vpop.f32.mrb[0].mxu0
        %v3320 = vadd.f32 %v3059, %v3319
        %v3321 = vpop.f32.mrb[0].mxu0
        %v3322 = vpop.f32.mrb[0].mxu0
        %v3323 = vadd.f32 %v3059, %v3322
        %v3324 = vpop.f32.mrb[0].mxu0
        %3325 = vmatprep.mubr.bf16.mxu0 0
        %3326 = vmatmul.mubr.bf16.gmra.mrb[0].mxu0 %v3029
        %v3327 = vpop.f32.mrb[0].mxu0
        %v3328 = vadd.f32 %v3059, %v3327
        %v3329 = vpop.f32.mrb[0].mxu0
        %v3330 = vpop.f32.mrb[0].mxu0
        %v3331 = vadd.f32 %v3059, %v3330
        %v3332 = vpop.f32.mrb[0].mxu0
        %3333 = vmatprep.mubr.bf16.mxu0 0
        %3334 = vmatmul.mubr.bf16.gmra.mrb[0].mxu0 %v3030
        %v3335 = vpop.f32.mrb[0].mxu0
        %v3336 = vadd.f32 %v3059, %v3335
        %v3337 = vpop.f32.mrb[0].mxu0
        %v3338 = vpop.f32.mrb[0].mxu0
        %v3339 = vadd.f32 %v3059, %v3338
        %v3340 = vpop.f32.mrb[0].mxu0
        %3341 = vmatprep.mubr.bf16.mxu0 0
        %3342 = vmatmul.mubr.bf16.gmra.mrb[0].mxu0 %v3031
        %v3343 = vpop.f32.mrb[0].mxu0
        %v3344 = vadd.f32 %v3059, %v3343
        %v3345 = vpop.f32.mrb[0].mxu0
        %v3346 = vpop.f32.mrb[0].mxu0
        %v3347 = vadd.f32 %v3059, %v3346
        %v3348 = vpop.f32.mrb[0].mxu0
        %3349 = vmatprep.mubr.bf16.mxu0 0
        %3350 = vmatmul.mubr.bf16.gmra.mrb[0].mxu0 %v3032
        %v3351 = vpop.f32.mrb[0].mxu0
        %v3352 = vadd.f32 %v3059, %v3351
        %v3353 = vpop.f32.mrb[0].mxu0
        %v3354 = vpop.f32.mrb[0].mxu0
        %v3355 = vadd.f32 %v3059, %v3354
        %v3356 = vpop.f32.mrb[0].mxu0
        %3357 = vmatprep.mubr.bf16.mxu0 0
        %3358 = vmatmul.mubr.bf16.gmra.mrb[0].mxu0 %v3033
        %v3359 = vpop.f32.mrb[0].mxu0
        %v3360 = vadd.f32 %v3059, %v3359
        %v3361 = vpop.f32.mrb[0].mxu0
        %v3362 = vpop.f32.mrb[0].mxu0
        %v3363 = vadd.f32 %v3059, %v3362
        %v3364 = vpop.f32.mrb[0].mxu0
        %3365 = vmatprep.mubr.bf16.mxu0 0
        %3366 = vmatmul.mubr.bf16.gmra.mrb[0].mxu0 %v3034
        %v3367 = vpop.f32.mrb[0].mxu0
        %v3368 = vadd.f32 %v3059, %v3367
        %v3369 = vpop.f32.mrb[0].mxu0
        %v3370 = vpop.f32.mrb[0].mxu0
        %v3371 = vadd.f32 %v3059, %v3370
        %v3372 = vpop.f32.mrb[0].mxu0
        %3373 = vmatprep.mubr.bf16.mxu0 0
        %3374 = vmatmul.mubr.bf16.gmra.mrb[0].mxu0 %v3035
        %v3375 = vpop.f32.mrb[0].mxu0
        %v3376 = vadd.f32 %v3059, %v3375
        %v3377 = vpop.f32.mrb[0].mxu0
        %v3378 = vpop.f32.mrb[0].mxu0
        %v3379 = vadd.f32 %v3059, %v3378
        %v3380 = vpop.f32.mrb[0].mxu0
        %3381 = vmatprep.mubr.bf16.mxu0 0
        %3382 = vmatmul.mubr.bf16.gmra.mrb[0].mxu0 %v3036
        %v3383 = vpop.f32.mrb[0].mxu0
        %v3384 = vadd.f32 %v3059, %v3383
        %v3385 = vpop.f32.mrb[0].mxu0
        %v3386 = vpop.f32.mrb[0].mxu0
        %v3387 = vadd.f32 %v3059, %v3386
        %v3388 = vpop.f32.mrb[0].mxu0
        %3389 = vmatprep.mubr.bf16.mxu0 0
        %3390 = vmatmul.mubr.bf16.gmra.mrb[0].mxu0 %v3037
        %v3391 = vpop.f32.mrb[0].mxu0
        %v3392 = vadd.f32 %v3059, %v3391
        %v3393 = vpop.f32.mrb[0].mxu0
        %v3394 = vpop.f32.mrb[0].mxu0
        %v3395 = vadd.f32 %v3059, %v3394
        %v3396 = vpop.f32.mrb[0].mxu0
        %3397 = vdwg.mxu0
        %v3398 = vadd.f32 %v3144, %v635
        %v3399 = vadd.f32 %v3147, %v639
        %v3400 = vadd.f32 %v3152, %v645
        %v3401 = vadd.f32 %v3155, %v649
        %v3402 = vadd.f32 %v3160, %v655
        %v3403 = vadd.f32 %v3163, %v659
        %v3404 = vadd.f32 %v3168, %v665
        %v3405 = vadd.f32 %v3171, %v669
        %v3406 = vadd.f32 %v3176, %v675
        %v3407 = vadd.f32 %v3179, %v679
        %v3408 = vadd.f32 %v3184, %v685
        %v3409 = vadd.f32 %v3187, %v689
        %v3410 = vadd.f32 %v3192, %v695
        %v3411 = vadd.f32 %v3195, %v699
        %v3412 = vadd.f32 %v3200, %v705
        %v3413 = vadd.f32 %v3203, %v709
        %v3414 = vadd.f32 %v3208, %v715
        %v3415 = vadd.f32 %v3211, %v719
        %v3416 = vadd.f32 %v3216, %v725
        %v3417 = vadd.f32 %v3219, %v729
        %v3418 = vadd.f32 %v3224, %v735
        %v3419 = vadd.f32 %v3227, %v739
        %v3420 = vadd.f32 %v3232, %v745
        %v3421 = vadd.f32 %v3235, %v749
        %v3422 = vadd.f32 %v3240, %v755
        %v3423 = vadd.f32 %v3243, %v759
        %v3424 = vadd.f32 %v3248, %v765
        %v3425 = vadd.f32 %v3251, %v769
        %v3426 = vadd.f32 %v3256, %v775
        %v3427 = vadd.f32 %v3259, %v779
        %v3428 = vadd.f32 %v3264, %v785
        %v3429 = vadd.f32 %v3267, %v789
        %v3430 = vadd.f32 %v3272, %v795
        %v3431 = vadd.f32 %v3275, %v799
        %v3432 = vadd.f32 %v3280, %v805
        %v3433 = vadd.f32 %v3283, %v809
        %v3434 = vadd.f32 %v3288, %v815
        %v3435 = vadd.f32 %v3291, %v819
        %v3436 = vadd.f32 %v3296, %v825
        %v3437 = vadd.f32 %v3299, %v829
        %v3438 = vadd.f32 %v3304, %v835
        %v3439 = vadd.f32 %v3307, %v839
        %v3440 = vadd.f32 %v3312, %v845
        %v3441 = vadd.f32 %v3315, %v849
        %v3442 = vadd.f32 %v3320, %v855
        %v3443 = vadd.f32 %v3323, %v859
        %v3444 = vadd.f32 %v3328, %v865
        %v3445 = vadd.f32 %v3331, %v869
        %v3446 = vadd.f32 %v3336, %v875
        %v3447 = vadd.f32 %v3339, %v879
        %v3448 = vadd.f32 %v3344, %v885
        %v3449 = vadd.f32 %v3347, %v889
        %v3450 = vadd.f32 %v3352, %v895
        %v3451 = vadd.f32 %v3355, %v899
        %v3452 = vadd.f32 %v3360, %v905
        %v3453 = vadd.f32 %v3363, %v909
        %v3454 = vadd.f32 %v3368, %v915
        %v3455 = vadd.f32 %v3371, %v919
        %v3456 = vadd.f32 %v3376, %v925
        %v3457 = vadd.f32 %v3379, %v929
        %v3458 = vadd.f32 %v3384, %v935
        %v3459 = vadd.f32 %v3387, %v939
        %v3460 = vadd.f32 %v3392, %v945
        %v3461 = vadd.f32 %v3395, %v949
        %v3462 = vmax.f32 %v3398, 0.0
        %v3463 = vmax.f32 %v3399, 0.0
        %v3464 = vmax.f32 %v3400, 0.0
        %v3465 = vmax.f32 %v3401, 0.0
        %v3466 = vmax.f32 %v3402, 0.0
        %v3467 = vmax.f32 %v3403, 0.0
        %v3468 = vmax.f32 %v3404, 0.0
        %v3469 = vmax.f32 %v3405, 0.0
        %v3470 = vmax.f32 %v3406, 0.0
        %v3471 = vmax.f32 %v3407, 0.0
        %v3472 = vmax.f32 %v3408, 0.0
        %v3473 = vmax.f32 %v3409, 0.0
        %v3474 = vmax.f32 %v3410, 0.0
        %v3475 = vmax.f32 %v3411, 0.0
        %v3476 = vmax.f32 %v3412, 0.0
        %v3477 = vmax.f32 %v3413, 0.0
        %v3478 = vmax.f32 %v3414, 0.0
        %v3479 = vmax.f32 %v3415, 0.0
        %v3480 = vmax.f32 %v3416, 0.0
        %v3481 = vmax.f32 %v3417, 0.0
        %v3482 = vmax.f32 %v3418, 0.0
        %v3483 = vmax.f32 %v3419, 0.0
        %v3484 = vmax.f32 %v3420, 0.0
        %v3485 = vmax.f32 %v3421, 0.0
        %v3486 = vmax.f32 %v3422, 0.0
        %v3487 = vmax.f32 %v3423, 0.0
        %v3488 = vmax.f32 %v3424, 0.0
        %v3489 = vmax.f32 %v3425, 0.0
        %v3490 = vmax.f32 %v3426, 0.0
        %v3491 = vmax.f32 %v3427, 0.0
        %v3492 = vmax.f32 %v3428, 0.0
        %v3493 = vmax.f32 %v3429, 0.0
        %v3494 = vmax.f32 %v3430, 0.0
        %v3495 = vmax.f32 %v3431, 0.0
        %v3496 = vmax.f32 %v3432, 0.0
        %v3497 = vmax.f32 %v3433, 0.0
        %v3498 = vmax.f32 %v3434, 0.0
        %v3499 = vmax.f32 %v3435, 0.0
        %v3500 = vmax.f32 %v3436, 0.0
        %v3501 = vmax.f32 %v3437, 0.0
        %v3502 = vmax.f32 %v3438, 0.0
        %v3503 = vmax.f32 %v3439, 0.0
        %v3504 = vmax.f32 %v3440, 0.0
        %v3505 = vmax.f32 %v3441, 0.0
        %v3506 = vmax.f32 %v3442, 0.0
        %v3507 = vmax.f32 %v3443, 0.0
        %v3508 = vmax.f32 %v3444, 0.0
        %v3509 = vmax.f32 %v3445, 0.0
        %v3510 = vmax.f32 %v3446, 0.0
        %v3511 = vmax.f32 %v3447, 0.0
        %v3512 = vmax.f32 %v3448, 0.0
        %v3513 = vmax.f32 %v3449, 0.0
        %v3514 = vmax.f32 %v3450, 0.0
        %v3515 = vmax.f32 %v3451, 0.0
        %v3516 = vmax.f32 %v3452, 0.0
        %v3517 = vmax.f32 %v3453, 0.0
        %v3518 = vmax.f32 %v3454, 0.0
        %v3519 = vmax.f32 %v3455, 0.0
        %v3520 = vmax.f32 %v3456, 0.0
        %v3521 = vmax.f32 %v3457, 0.0
        %v3522 = vmax.f32 %v3458, 0.0
        %v3523 = vmax.f32 %v3459, 0.0
        %v3524 = vmax.f32 %v3460, 0.0
        %v3525 = vmax.f32 %v3461, 0.0
        %3526 = vst [vmem:[%s341] sm:$0xff] %v3462
        %3527 = vst [vmem:[%s341 + $0x8] sm:$0xff] %v3463
        %3528 = vst [vmem:[%s341 + $0x10] sm:$0xff] %v3464
        %3529 = vst [vmem:[%s341 + $0x18] sm:$0xff] %v3465
        %3530 = vst [vmem:[%s341 + $0x20] sm:$0xff] %v3466
        %3531 = vst [vmem:[%s341 + $0x28] sm:$0xff] %v3467
        %3532 = vst [vmem:[%s341 + $0x30] sm:$0xff] %v3468
        %3533 = vst [vmem:[%s341 + $0x38] sm:$0xff] %v3469
        %3534 = vst [vmem:[%s341 + $0x40] sm:$0xff] %v3470
        %3535 = vst [vmem:[%s341 + $0x48] sm:$0xff] %v3471
        %3536 = vst [vmem:[%s341 + $0x50] sm:$0xff] %v3472
        %3537 = vst [vmem:[%s341 + $0x58] sm:$0xff] %v3473
        %3538 = vst [vmem:[%s341 + $0x60] sm:$0xff] %v3474
        %3539 = vst [vmem:[%s341 + $0x68] sm:$0xff] %v3475
        %3540 = vst [vmem:[%s341 + $0x70] sm:$0xff] %v3476
        %3541 = vst [vmem:[%s341 + $0x78] sm:$0xff] %v3477
        %3542 = vst [vmem:[%s341 + $0x80] sm:$0xff] %v3478
        %3543 = vst [vmem:[%s341 + $0x88] sm:$0xff] %v3479
        %3544 = vst [vmem:[%s341 + $0x90] sm:$0xff] %v3480
        %3545 = vst [vmem:[%s341 + $0x98] sm:$0xff] %v3481
        %3546 = vst [vmem:[%s341 + $0xa0] sm:$0xff] %v3482
        %3547 = vst [vmem:[%s341 + $0xa8] sm:$0xff] %v3483
        %3548 = vst [vmem:[%s341 + $0xb0] sm:$0xff] %v3484
        %3549 = vst [vmem:[%s341 + $0xb8] sm:$0xff] %v3485
        %3550 = vst [vmem:[%s341 + $0xc0] sm:$0xff] %v3486
        %3551 = vst [vmem:[%s341 + $0xc8] sm:$0xff] %v3487
        %3552 = vst [vmem:[%s341 + $0xd0] sm:$0xff] %v3488
        %3553 = vst [vmem:[%s341 + $0xd8] sm:$0xff] %v3489
        %3554 = vst [vmem:[%s341 + $0xe0] sm:$0xff] %v3490
        %3555 = vst [vmem:[%s341 + $0xe8] sm:$0xff] %v3491
        %3556 = vst [vmem:[%s341 + $0xf0] sm:$0xff] %v3492
        %3557 = vst [vmem:[%s341 + $0xf8] sm:$0xff] %v3493
        %3558 = vst [vmem:[%s341 + $0x100] sm:$0xff] %v3494
        %3559 = vst [vmem:[%s341 + $0x108] sm:$0xff] %v3495
        %3560 = vst [vmem:[%s341 + $0x110] sm:$0xff] %v3496
        %3561 = vst [vmem:[%s341 + $0x118] sm:$0xff] %v3497
        %3562 = vst [vmem:[%s341 + $0x120] sm:$0xff] %v3498
        %3563 = vst [vmem:[%s341 + $0x128] sm:$0xff] %v3499
        %3564 = vst [vmem:[%s341 + $0x130] sm:$0xff] %v3500
        %3565 = vst [vmem:[%s341 + $0x138] sm:$0xff] %v3501
        %3566 = vst [vmem:[%s341 + $0x140] sm:$0xff] %v3502
        %3567 = vst [vmem:[%s341 + $0x148] sm:$0xff] %v3503
        %3568 = vst [vmem:[%s341 + $0x150] sm:$0xff] %v3504
        %3569 = vst [vmem:[%s341 + $0x158] sm:$0xff] %v3505
        %3570 = vst [vmem:[%s341 + $0x160] sm:$0xff] %v3506
        %3571 = vst [vmem:[%s341 + $0x168] sm:$0xff] %v3507
        %3572 = vst [vmem:[%s341 + $0x170] sm:$0xff] %v3508
        %3573 = vst [vmem:[%s341 + $0x178] sm:$0xff] %v3509
        %3574 = vst [vmem:[%s341 + $0x180] sm:$0xff] %v3510
        %3575 = vst [vmem:[%s341 + $0x188] sm:$0xff] %v3511
        %3576 = vst [vmem:[%s341 + $0x190] sm:$0xff] %v3512
        %3577 = vst [vmem:[%s341 + $0x198] sm:$0xff] %v3513
        %3578 = vst [vmem:[%s341 + $0x1a0] sm:$0xff] %v3514
        %3579 = vst [vmem:[%s341 + $0x1a8] sm:$0xff] %v3515
        %3580 = vst [vmem:[%s341 + $0x1b0] sm:$0xff] %v3516
        %3581 = vst [vmem:[%s341 + $0x1b8] sm:$0xff] %v3517
        %3582 = vst [vmem:[%s341 + $0x1c0] sm:$0xff] %v3518
        %3583 = vst [vmem:[%s341 + $0x1c8] sm:$0xff] %v3519
        %3584 = vst [vmem:[%s341 + $0x1d0] sm:$0xff] %v3520
        %3585 = vst [vmem:[%s341 + $0x1d8] sm:$0xff] %v3521
        %3586 = vst [vmem:[%s341 + $0x1e0] sm:$0xff] %v3522
        %3587 = vst [vmem:[%s341 + $0x1e8] sm:$0xff] %v3523
        %3588 = vst [vmem:[%s341 + $0x1f0] sm:$0xff] %v3524
        %3589 = vst [vmem:[%s341 + $0x1f8] sm:$0xff] %v3525
        %s3590 = sand.u32 %s186, 1
        %s3591 = scalar_lea.sflag [#allocation5], %s3590
        %s3592 = sand.u32 %s186, 1
        %s3593 = smul.addr %s3592, 512
        %s3594 = scalar_lea.vmem [#allocation11], %s3593
        // Predicated region
        $region65: #{tpu_custom_call.1} parent=47 // pred_check
          %p3595 = pneg %p196
        $region66: #{tpu_custom_call.1} parent=47 // pred_check_branch
          %3597 = sbr.rel (%p3595) target = $region68
        $region67: #{tpu_custom_call.1} parent=47 // pred_region
          %s3598 = smul.u32 2, %s26
          %s3600 = ssub.s32 8192, 8192
          %3601 = vsyncadd %s3591, %s3600
          %s3602 = smul.addr %s3598, 32
          %s3603 = smul.addr %s3602, 128
          %s3604 = scalar_lea.hbm %s7, %s3603
          %s3605 = sshll.u32 %s3594, 4
          %s3606 = int_to_ptr.vmem [resolvable:$true] %s3605
          %3611 = dma.vmem_to_hbm [thread:$0]  %s3606, 8192, %s3604, %s3591, 128, 128, 8
        $region68: #{tpu_custom_call.1} parent=47 // pred_fallthru
          _
      $region48: #{tpu_custom_call.1} parent=5 // pred_fallthru
        _
      %p3612 = scmp.le.s32.totalorder 2, %s21
      // Predicated region
      $region69: #{tpu_custom_call.1} parent=5 // pred_check
        %p3613 = pneg %p3612
      $region70: #{tpu_custom_call.1} parent=5 // pred_check_branch
        %3615 = sbr.rel (%p3613) target = $region72
      $region71: #{tpu_custom_call.1} parent=5 // pred_region
        %s3616 = ssub.s32 %s21, 2
        // Predicated region
        $region73: #{tpu_custom_call.1} parent=71 // pred_check
          %p3617 = pneg %p202
        $region74: #{tpu_custom_call.1} parent=71 // pred_check_branch
          %3619 = sbr.rel (%p3617) target = $region76
        $region75: #{tpu_custom_call.1} parent=71 // pred_region
          %s3620 = sand.u32 %s187, 1
          %s3621 = scalar_lea.sflag [#allocation5], %s3620
          %s3622 = sand.u32 %s187, 1
          %s3623 = smul.addr %s3622, 512
          %s3624 = scalar_lea.vmem [#allocation11], %s3623
          %3625 = dma.done %s3621, 8192
        $region76: #{tpu_custom_call.1} parent=71 // pred_fallthru
          _
      $region72: #{tpu_custom_call.1} parent=5 // pred_fallthru
        _
    $region6: #{tpu_custom_call.1} parent=1 // loop_footer
      %s25 = sadd.s32 1, %s21
    $region7: #{tpu_custom_call.1} parent=1 // loop_footer_branch
      %20 = sbr.rel target = $region3
    $region8: #{tpu_custom_call.1} parent=1 // loop_exit
      _
    %3626 = vsyncpa [#allocation4], 1
    %s3627 = scalar_lea.sflag [#allocation4], 1
    %3628 = vsyncpa %s3627, 1
    %3629 = vsyncpa [#allocation7], 1
    %3630 = vsyncpa [#allocation10], 1
    %3631 = vsyncpa [#allocation5], 1
    %s3632 = scalar_lea.sflag [#allocation5], 1
    %3633 = vsyncpa %s3632, 1

</llo_original>
